<compile_context>
chip_gen: v5e
topology: v5e:2x2
jax: 0.10.0
libtpu: 0.0.40
codegen_flags: <defaults>
</compile_context>

<pallas_src>
import jax
import jax.numpy as jnp
from jax.experimental import pallas as pl
from jax.experimental.pallas import tpu as pltpu


# ----------------------------- Pallas kernels ------------------------------

def _conv_bias_lrelu_kernel(p_ref, w_ref, b_ref, o_ref):
    # p_ref: (1, K, TP) bf16   w_ref: (C, K) bf16   b_ref: (C, 1) f32
    # o_ref: (1, C, TP) f32
    y = jnp.dot(w_ref[...], p_ref[0], preferred_element_type=jnp.float32)
    y = y + b_ref[...]
    o_ref[0] = jnp.where(y > 0, y, 0.2 * y)


def _conv_in_lrelu_kernel(p_ref, w_ref, g_ref, be_ref, o_ref):
    # Conv(no bias) -> InstanceNorm2d(affine, eps=1e-5, biased var) -> LeakyReLU(0.2)
    # p_ref: (1, K, P) bf16   w_ref: (C, K) bf16   g/be: (C, 1) f32   o_ref: (1, C, P) f32
    y = jnp.dot(w_ref[...], p_ref[0], preferred_element_type=jnp.float32)   # [C, P]
    mean = jnp.mean(y, axis=-1, keepdims=True)                # lane (XLU) reduce
    var = jnp.mean(jnp.square(y - mean), axis=-1, keepdims=True)
    y = (y - mean) * jax.lax.rsqrt(var + 1e-5)
    y = y * g_ref[...] + be_ref[...]
    o_ref[0] = jnp.where(y > 0, y, 0.2 * y)


def _block_final_kernel(p_ref, w_ref, g_ref, be_ref, w6_ref, b6_ref, o_ref):
    # Last block (conv + InstanceNorm + LeakyReLU) with the final
    # Conv2d(fd*16, 1, 4, 2, 0) folded in as a multiply+reduce epilogue
    # (its only output window is the whole 4x4 feature map).
    y = jnp.dot(w_ref[...], p_ref[0], preferred_element_type=jnp.float32)   # [C, 16]
    mean = jnp.mean(y, axis=-1, keepdims=True)
    var = jnp.mean(jnp.square(y - mean), axis=-1, keepdims=True)
    y = (y - mean) * jax.lax.rsqrt(var + 1e-5)
    y = y * g_ref[...] + be_ref[...]
    y = jnp.where(y > 0, y, 0.2 * y)                          # [C, 16]
    s = jnp.sum(y * w6_ref[...], axis=-1, keepdims=True)      # [C, 1] lane reduce
    o_ref[0] = jnp.sum(s, axis=0, keepdims=True) + b6_ref[...]  # [1, 1]


# ------------------------------ host wrappers -------------------------------

def _layer_call(kernel, patches, w2, *extras, out_c, tile_p=None):
    """patches: [N, K, P] bf16, w2: [out_c, K] bf16, extras: small f32 vectors."""
    N, K, P = patches.shape
    tp = P if tile_p is None else tile_p
    return pl.pallas_call(
        kernel,
        out_shape=jax.ShapeDtypeStruct((N, out_c, P), jnp.float32),
        grid=(N, P // tp),
        in_specs=[pl.BlockSpec((1, K, tp), lambda n, j: (n, 0, j)),
                  pl.BlockSpec(w2.shape, lambda n, j: (0, 0))]
                 + [pl.BlockSpec(e.shape, lambda n, j: (0, 0)) for e in extras],
        out_specs=pl.BlockSpec((1, out_c, tp), lambda n, j: (n, 0, j)),
        compiler_params=pltpu.CompilerParams(
            dimension_semantics=("parallel", "parallel")),
    )(patches, w2, *extras)


def _final_block_call(patches, w2, g, be, w6, b6):
    N, K, P = patches.shape
    C = w2.shape[0]
    return pl.pallas_call(
        _block_final_kernel,
        out_shape=jax.ShapeDtypeStruct((N, 1, 1), jnp.float32),
        grid=(N,),
        in_specs=[pl.BlockSpec((1, K, P), lambda n: (n, 0, 0)),
                  pl.BlockSpec((C, K), lambda n: (0, 0)),
                  pl.BlockSpec((C, 1), lambda n: (0, 0)),
                  pl.BlockSpec((C, 1), lambda n: (0, 0)),
                  pl.BlockSpec((C, P), lambda n: (0, 0)),
                  pl.BlockSpec((1, 1), lambda n: (0, 0))],
        out_specs=pl.BlockSpec((1, 1, 1), lambda n: (n, 0, 0)),
        compiler_params=pltpu.CompilerParams(dimension_semantics=("parallel",)),
    )(patches, w2, g, be, w6, b6)


def _im2col_kp(x, k, s, p):
    """x: [N, C, H, W] -> patches [N, C*k*k, Ho*Wo], K ordered (ci, ki, kj).

    Produces the lane-dense [K, P] layout directly (no transpose needed)."""
    N, C, H, W = x.shape
    xp = jnp.pad(x, ((0, 0), (0, 0), (p, p), (p, p))) if p else x
    Ho = (H + 2 * p - k) // s + 1
    Wo = (W + 2 * p - k) // s + 1
    cols = jnp.stack([xp[:, :, ki:ki + s * Ho:s, kj:kj + s * Wo:s]
                      for ki in range(k) for kj in range(k)],
                     axis=2)                              # [N, C, k*k, Ho, Wo]
    return cols.reshape(N, C * k * k, Ho * Wo), Ho, Wo


def init_critic_params(key, channels_img, features_d):
    """Deterministic synthetic parameters matching the torch module's shapes."""
    fd = features_d
    chans = [channels_img, fd, fd * 2, fd * 4, fd * 8, fd * 16, 1]
    keys = jax.random.split(key, 16)
    params = {}
    # layer 1: Conv2d(channels_img, fd, 4, 2, 1) with bias
    params["w1"] = 0.02 * jax.random.normal(keys[0], (fd, channels_img, 4, 4), jnp.float32)
    params["b1"] = 0.01 * jax.random.normal(keys[1], (fd,), jnp.float32)
    # blocks 0..3: Conv2d(no bias) + InstanceNorm2d(affine)
    for i in range(4):
        cin, cout = chans[i + 1], chans[i + 2]
        params[f"wb{i}"] = 0.02 * jax.random.normal(keys[2 + 3 * i], (cout, cin, 4, 4), jnp.float32)
        params[f"g{i}"] = 1.0 + 0.1 * jax.random.normal(keys[3 + 3 * i], (cout,), jnp.float32)
        params[f"be{i}"] = 0.1 * jax.random.normal(keys[4 + 3 * i], (cout,), jnp.float32)
    # final: Conv2d(fd*16, 1, 4, 2, 0) with bias
    params["w6"] = 0.02 * jax.random.normal(keys[14], (1, fd * 16, 4, 4), jnp.float32)
    params["b6"] = 0.01 * jax.random.normal(keys[15], (1,), jnp.float32)
    return params


@jax.jit
def critic_forward(params, x):
    """x: [N, C_img, 128, 128] (NCHW)  ->  [N, 1, 1, 1]"""
    N = x.shape[0]

    # Layer 1: Conv + bias + LeakyReLU(0.2). P = 64*64 = 4096, lane-tiled.
    patches, Ho, Wo = _im2col_kp(x, 4, 2, 1)
    w2 = params["w1"].reshape(params["w1"].shape[0], -1).astype(jnp.bfloat16)
    tile_p = 1024 if (Ho * Wo) % 1024 == 0 else None
    y = _layer_call(_conv_bias_lrelu_kernel, patches.astype(jnp.bfloat16), w2,
                    params["b1"].reshape(-1, 1),
                    out_c=w2.shape[0], tile_p=tile_p)
    x = y.reshape(N, w2.shape[0], Ho, Wo)

    # Blocks 0..2: Conv(no bias) + InstanceNorm2d(affine) + LeakyReLU(0.2).
    for i in range(3):
        patches, Ho, Wo = _im2col_kp(x, 4, 2, 1)
        w = params[f"wb{i}"]
        w2 = w.reshape(w.shape[0], -1).astype(jnp.bfloat16)
        y = _layer_call(_conv_in_lrelu_kernel, patches.astype(jnp.bfloat16), w2,
                        params[f"g{i}"].reshape(-1, 1),
                        params[f"be{i}"].reshape(-1, 1),
                        out_c=w2.shape[0])
        x = y.reshape(N, w2.shape[0], Ho, Wo)

    # Block 3 + final Conv2d(fd*16, 1, 4, 2, 0), fused into one kernel.
    patches, Ho, Wo = _im2col_kp(x, 4, 2, 1)              # -> 4x4 spatial, P=16
    w = params["wb3"]
    w2 = w.reshape(w.shape[0], -1).astype(jnp.bfloat16)
    w6 = params["w6"].reshape(w2.shape[0], Ho * Wo)        # [fd*16, 16] f32
    y = _final_block_call(patches.astype(jnp.bfloat16), w2,
                          params["g3"].reshape(-1, 1),
                          params["be3"].reshape(-1, 1),
                          w6, params["b6"].reshape(1, 1))
    return y.reshape(N, 1, 1, 1)


if __name__ == "__main__":
    # Architecture needs 128x128 input (5 stride-2 halvings + final 4x4 conv).
    channels_img, features_d = 3, 4
    key = jax.random.PRNGKey(0)
    k_params, k_x = jax.random.split(key)
    params = init_critic_params(k_params, channels_img, features_d)
    x = jax.random.normal(k_x, (2, channels_img, 128, 128), jnp.float32)

    out = jax.block_until_ready(critic_forward(params, x))
    assert out.shape == (2, 1, 1, 1), out.shape
    assert bool(jnp.all(jnp.isfinite(out)))
    print("KERNEL_OK")
</pallas_src>

<mosaic_0001>
module attributes {stable_mosaic.version = 11 : i64} {
  func.func @_conv_bias_lrelu_kernel(%arg0: i32, %arg1: i32, %arg2: memref<1x48x1024xbf16, #tpu.memory_space<vmem>>, %arg3: memref<4x48xbf16, #tpu.memory_space<vmem>>, %arg4: memref<4x1xf32, #tpu.memory_space<vmem>>, %arg5: memref<1x4x1024xf32, #tpu.memory_space<vmem>>) attributes {dimension_semantics = [#tpu.dimension_semantics<parallel>, #tpu.dimension_semantics<parallel>], iteration_bounds = array<i64: 2, 4>, scalar_prefetch = 0 : i64, scratch_operands = 0 : i64, tpu.core_type = #tpu.core_type<tc>, window_params = [{transform_indices = @transform_0, window_bounds = array<i64: 1, 48, 1024>}, {pipeline_mode = #tpu.pipeline_mode<synchronous>, transform_indices = @transform_1, window_bounds = array<i64: 4, 48>}, {pipeline_mode = #tpu.pipeline_mode<synchronous>, transform_indices = @transform_2, window_bounds = array<i64: 4, 1>}, {transform_indices = @transform_3, window_bounds = array<i64: 1, 4, 1024>}]} {
    %c0 = arith.constant 0 : index
    %c0_0 = arith.constant 0 : index
    %0 = vector.load %arg3[%c0, %c0_0] : memref<4x48xbf16, #tpu.memory_space<vmem>>, vector<4x48xbf16>
    %c0_1 = arith.constant 0 : index
    %c0_2 = arith.constant 0 : index
    %c0_3 = arith.constant 0 : index
    %1 = vector.load %arg2[%c0_1, %c0_2, %c0_3] : memref<1x48x1024xbf16, #tpu.memory_space<vmem>>, vector<1x48x1024xbf16>
    %2 = vector.shape_cast %1 : vector<1x48x1024xbf16> to vector<48x1024xbf16>
    %cst = arith.constant dense<0.000000e+00> : vector<4x1024xf32>
    %3 = tpu.matmul %0, %2, %cst {dimension_numbers = #tpu.dot_dimension_numbers<[1], [0], [0], [1], [0, 0, 1, 1], [], []>} : vector<4x48xbf16>, vector<48x1024xbf16>, vector<4x1024xf32> -> vector<4x1024xf32>
    %c0_4 = arith.constant 0 : index
    %c0_5 = arith.constant 0 : index
    %4 = vector.load %arg4[%c0_4, %c0_5] : memref<4x1xf32, #tpu.memory_space<vmem>>, vector<4x1xf32>
    %5 = vector.broadcast %4 : vector<4x1xf32> to vector<4x1024xf32>
    %6 = arith.addf %3, %5 : vector<4x1024xf32>
    %cst_6 = arith.constant 0.000000e+00 : f32
    %7 = vector.broadcast %cst_6 : f32 to vector<4x1024xf32>
    %8 = arith.cmpf ogt, %6, %7 : vector<4x1024xf32>
    %cst_7 = arith.constant 2.000000e-01 : f32
    %9 = vector.broadcast %cst_7 : f32 to vector<4x1024xf32>
    %10 = arith.mulf %9, %6 : vector<4x1024xf32>
    %11 = arith.select %8, %6, %10 : vector<4x1024xi1>, vector<4x1024xf32>
    %c0_8 = arith.constant 0 : index
    %c0_9 = arith.constant 0 : index
    %c0_10 = arith.constant 0 : index
    %12 = vector.load %arg5[%c0_8, %c0_9, %c0_10] : memref<1x4x1024xf32, #tpu.memory_space<vmem>>, vector<1x4x1024xf32>
    %13 = vector.shape_cast %12 : vector<1x4x1024xf32> to vector<4x1024xf32>
    %14 = vector.shape_cast %11 : vector<4x1024xf32> to vector<1x4x1024xf32>
    tpu.vector_store %arg5[%c0_8, %c0_9, %c0_10], %14 {strides = array<i32>} : memref<1x4x1024xf32, #tpu.memory_space<vmem>>, vector<1x4x1024xf32>,
    return
  }
  func.func @transform_0(%arg0: i32, %arg1: i32) -> (i32, i32, i32) {
    %c0_i32 = arith.constant 0 : i32
    %c0_i32_0 = arith.constant 0 : i32
    return %arg0, %c0_i32, %arg1 : i32, i32, i32
  }
  func.func @transform_1(%arg0: i32, %arg1: i32) -> (i32, i32) {
    %c0_i32 = arith.constant 0 : i32
    %c0_i32_0 = arith.constant 0 : i32
    %c0_i32_1 = arith.constant 0 : i32
    return %c0_i32, %c0_i32_0 : i32, i32
  }
  func.func @transform_2(%arg0: i32, %arg1: i32) -> (i32, i32) {
    %c0_i32 = arith.constant 0 : i32
    %c0_i32_0 = arith.constant 0 : i32
    %c0_i32_1 = arith.constant 0 : i32
    return %c0_i32, %c0_i32_0 : i32, i32
  }
  func.func @transform_3(%arg0: i32, %arg1: i32) -> (i32, i32, i32) {
    %c0_i32 = arith.constant 0 : i32
    %c0_i32_0 = arith.constant 0 : i32
    return %arg0, %c0_i32, %arg1 : i32, i32, i32
  }
}

module attributes {stable_mosaic.version = 11 : i64} {
  func.func @_conv_in_lrelu_kernel(%arg0: i32, %arg1: i32, %arg2: memref<1x64x1024xbf16, #tpu.memory_space<vmem>>, %arg3: memref<8x64xbf16, #tpu.memory_space<vmem>>, %arg4: memref<8x1xf32, #tpu.memory_space<vmem>>, %arg5: memref<8x1xf32, #tpu.memory_space<vmem>>, %arg6: memref<1x8x1024xf32, #tpu.memory_space<vmem>>) attributes {dimension_semantics = [#tpu.dimension_semantics<parallel>, #tpu.dimension_semantics<parallel>], iteration_bounds = array<i64: 2, 1>, scalar_prefetch = 0 : i64, scratch_operands = 0 : i64, tpu.core_type = #tpu.core_type<tc>, window_params = [{transform_indices = @transform_0, window_bounds = array<i64: 1, 64, 1024>}, {pipeline_mode = #tpu.pipeline_mode<synchronous>, transform_indices = @transform_1, window_bounds = array<i64: 8, 64>}, {pipeline_mode = #tpu.pipeline_mode<synchronous>, transform_indices = @transform_2, window_bounds = array<i64: 8, 1>}, {pipeline_mode = #tpu.pipeline_mode<synchronous>, transform_indices = @transform_3, window_bounds = array<i64: 8, 1>}, {transform_indices = @transform_4, window_bounds = array<i64: 1, 8, 1024>}]} {
    %c0 = arith.constant 0 : index
    %c0_0 = arith.constant 0 : index
    %0 = vector.load %arg3[%c0, %c0_0] : memref<8x64xbf16, #tpu.memory_space<vmem>>, vector<8x64xbf16>
    %c0_1 = arith.constant 0 : index
    %c0_2 = arith.constant 0 : index
    %c0_3 = arith.constant 0 : index
    %1 = vector.load %arg2[%c0_1, %c0_2, %c0_3] : memref<1x64x1024xbf16, #tpu.memory_space<vmem>>, vector<1x64x1024xbf16>
    %2 = vector.shape_cast %1 : vector<1x64x1024xbf16> to vector<64x1024xbf16>
    %cst = arith.constant dense<0.000000e+00> : vector<8x1024xf32>
    %3 = tpu.matmul %0, %2, %cst {dimension_numbers = #tpu.dot_dimension_numbers<[1], [0], [0], [1], [0, 0, 1, 1], [], []>} : vector<8x64xbf16>, vector<64x1024xbf16>, vector<8x1024xf32> -> vector<8x1024xf32>
    %cst_4 = arith.constant dense<0.000000e+00> : vector<8xf32>
    %4 = vector.multi_reduction <add>, %3, %cst_4 [1] : vector<8x1024xf32> to vector<8xf32>
    %5 = vector.shape_cast %4 : vector<8xf32> to vector<8x1xf32>
    %cst_5 = arith.constant 1.024000e+03 : f32
    %6 = vector.broadcast %cst_5 : f32 to vector<8x1xf32>
    %7 = arith.divf %5, %6 : vector<8x1xf32>
    %8 = vector.broadcast %7 : vector<8x1xf32> to vector<8x1024xf32>
    %9 = arith.subf %3, %8 : vector<8x1024xf32>
    %10 = arith.mulf %9, %9 : vector<8x1024xf32>
    %cst_6 = arith.constant dense<0.000000e+00> : vector<8xf32>
    %11 = vector.multi_reduction <add>, %10, %cst_6 [1] : vector<8x1024xf32> to vector<8xf32>
    %12 = vector.shape_cast %11 : vector<8xf32> to vector<8x1xf32>
    %cst_7 = arith.constant 1.024000e+03 : f32
    %13 = vector.broadcast %cst_7 : f32 to vector<8x1xf32>
    %14 = arith.divf %12, %13 : vector<8x1xf32>
    %15 = vector.broadcast %7 : vector<8x1xf32> to vector<8x1024xf32>
    %16 = arith.subf %3, %15 : vector<8x1024xf32>
    %cst_8 = arith.constant 9.99999974E-6 : f32
    %17 = vector.broadcast %cst_8 : f32 to vector<8x1xf32>
    %18 = arith.addf %14, %17 : vector<8x1xf32>
    %19 = math.rsqrt %18 : vector<8x1xf32>
    %20 = vector.broadcast %19 : vector<8x1xf32> to vector<8x1024xf32>
    %21 = arith.mulf %16, %20 : vector<8x1024xf32>
    %c0_9 = arith.constant 0 : index
    %c0_10 = arith.constant 0 : index
    %22 = vector.load %arg4[%c0_9, %c0_10] : memref<8x1xf32, #tpu.memory_space<vmem>>, vector<8x1xf32>
    %23 = vector.broadcast %22 : vector<8x1xf32> to vector<8x1024xf32>
    %24 = arith.mulf %21, %23 : vector<8x1024xf32>
    %c0_11 = arith.constant 0 : index
    %c0_12 = arith.constant 0 : index
    %25 = vector.load %arg5[%c0_11, %c0_12] : memref<8x1xf32, #tpu.memory_space<vmem>>, vector<8x1xf32>
    %26 = vector.broadcast %25 : vector<8x1xf32> to vector<8x1024xf32>
    %27 = arith.addf %24, %26 : vector<8x1024xf32>
    %cst_13 = arith.constant 0.000000e+00 : f32
    %28 = vector.broadcast %cst_13 : f32 to vector<8x1024xf32>
    %29 = arith.cmpf ogt, %27, %28 : vector<8x1024xf32>
    %cst_14 = arith.constant 2.000000e-01 : f32
    %30 = vector.broadcast %cst_14 : f32 to vector<8x1024xf32>
    %31 = arith.mulf %30, %27 : vector<8x1024xf32>
    %32 = arith.select %29, %27, %31 : vector<8x1024xi1>, vector<8x1024xf32>
    %c0_15 = arith.constant 0 : index
    %c0_16 = arith.constant 0 : index
    %c0_17 = arith.constant 0 : index
    %33 = vector.load %arg6[%c0_15, %c0_16, %c0_17] : memref<1x8x1024xf32, #tpu.memory_space<vmem>>, vector<1x8x1024xf32>
    %34 = vector.shape_cast %33 : vector<1x8x1024xf32> to vector<8x1024xf32>
    %35 = vector.shape_cast %32 : vector<8x1024xf32> to vector<1x8x1024xf32>
    tpu.vector_store %arg6[%c0_15, %c0_16, %c0_17], %35 {strides = array<i32>} : memref<1x8x1024xf32, #tpu.memory_space<vmem>>, vector<1x8x1024xf32>,
    return
  }
  func.func @transform_0(%arg0: i32, %arg1: i32) -> (i32, i32, i32) {
    %c0_i32 = arith.constant 0 : i32
    %c0_i32_0 = arith.constant 0 : i32
    return %arg0, %c0_i32, %arg1 : i32, i32, i32
  }
  func.func @transform_1(%arg0: i32, %arg1: i32) -> (i32, i32) {
    %c0_i32 = arith.constant 0 : i32
    %c0_i32_0 = arith.constant 0 : i32
    %c0_i32_1 = arith.constant 0 : i32
    return %c0_i32, %c0_i32_0 : i32, i32
  }
  func.func @transform_2(%arg0: i32, %arg1: i32) -> (i32, i32) {
    %c0_i32 = arith.constant 0 : i32
    %c0_i32_0 = arith.constant 0 : i32
    %c0_i32_1 = arith.constant 0 : i32
    return %c0_i32, %c0_i32_0 : i32, i32
  }
  func.func @transform_3(%arg0: i32, %arg1: i32) -> (i32, i32) {
    %c0_i32 = arith.constant 0 : i32
    %c0_i32_0 = arith.constant 0 : i32
    %c0_i32_1 = arith.constant 0 : i32
    return %c0_i32, %c0_i32_0 : i32, i32
  }
  func.func @transform_4(%arg0: i32, %arg1: i32) -> (i32, i32, i32) {
    %c0_i32 = arith.constant 0 : i32
    %c0_i32_0 = arith.constant 0 : i32
    return %arg0, %c0_i32, %arg1 : i32, i32, i32
  }
}

module attributes {stable_mosaic.version = 11 : i64} {
  func.func @_conv_in_lrelu_kernel(%arg0: i32, %arg1: i32, %arg2: memref<1x128x256xbf16, #tpu.memory_space<vmem>>, %arg3: memref<16x128xbf16, #tpu.memory_space<vmem>>, %arg4: memref<16x1xf32, #tpu.memory_space<vmem>>, %arg5: memref<16x1xf32, #tpu.memory_space<vmem>>, %arg6: memref<1x16x256xf32, #tpu.memory_space<vmem>>) attributes {dimension_semantics = [#tpu.dimension_semantics<parallel>, #tpu.dimension_semantics<parallel>], iteration_bounds = array<i64: 2, 1>, scalar_prefetch = 0 : i64, scratch_operands = 0 : i64, tpu.core_type = #tpu.core_type<tc>, window_params = [{transform_indices = @transform_0, window_bounds = array<i64: 1, 128, 256>}, {pipeline_mode = #tpu.pipeline_mode<synchronous>, transform_indices = @transform_1, window_bounds = array<i64: 16, 128>}, {pipeline_mode = #tpu.pipeline_mode<synchronous>, transform_indices = @transform_2, window_bounds = array<i64: 16, 1>}, {pipeline_mode = #tpu.pipeline_mode<synchronous>, transform_indices = @transform_3, window_bounds = array<i64: 16, 1>}, {transform_indices = @transform_4, window_bounds = array<i64: 1, 16, 256>}]} {
    %c0 = arith.constant 0 : index
    %c0_0 = arith.constant 0 : index
    %0 = vector.load %arg3[%c0, %c0_0] : memref<16x128xbf16, #tpu.memory_space<vmem>>, vector<16x128xbf16>
    %c0_1 = arith.constant 0 : index
    %c0_2 = arith.constant 0 : index
    %c0_3 = arith.constant 0 : index
    %1 = vector.load %arg2[%c0_1, %c0_2, %c0_3] : memref<1x128x256xbf16, #tpu.memory_space<vmem>>, vector<1x128x256xbf16>
    %2 = vector.shape_cast %1 : vector<1x128x256xbf16> to vector<128x256xbf16>
    %cst = arith.constant dense<0.000000e+00> : vector<16x256xf32>
    %3 = tpu.matmul %0, %2, %cst {dimension_numbers = #tpu.dot_dimension_numbers<[1], [0], [0], [1], [0, 0, 1, 1], [], []>} : vector<16x128xbf16>, vector<128x256xbf16>, vector<16x256xf32> -> vector<16x256xf32>
    %cst_4 = arith.constant dense<0.000000e+00> : vector<16xf32>
    %4 = vector.multi_reduction <add>, %3, %cst_4 [1] : vector<16x256xf32> to vector<16xf32>
    %5 = vector.shape_cast %4 : vector<16xf32> to vector<16x1xf32>
    %cst_5 = arith.constant 2.560000e+02 : f32
    %6 = vector.broadcast %cst_5 : f32 to vector<16x1xf32>
    %7 = arith.divf %5, %6 : vector<16x1xf32>
    %8 = vector.broadcast %7 : vector<16x1xf32> to vector<16x256xf32>
    %9 = arith.subf %3, %8 : vector<16x256xf32>
    %10 = arith.mulf %9, %9 : vector<16x256xf32>
    %cst_6 = arith.constant dense<0.000000e+00> : vector<16xf32>
    %11 = vector.multi_reduction <add>, %10, %cst_6 [1] : vector<16x256xf32> to vector<16xf32>
    %12 = vector.shape_cast %11 : vector<16xf32> to vector<16x1xf32>
    %cst_7 = arith.constant 2.560000e+02 : f32
    %13 = vector.broadcast %cst_7 : f32 to vector<16x1xf32>
    %14 = arith.divf %12, %13 : vector<16x1xf32>
    %15 = vector.broadcast %7 : vector<16x1xf32> to vector<16x256xf32>
    %16 = arith.subf %3, %15 : vector<16x256xf32>
    %cst_8 = arith.constant 9.99999974E-6 : f32
    %17 = vector.broadcast %cst_8 : f32 to vector<16x1xf32>
    %18 = arith.addf %14, %17 : vector<16x1xf32>
    %19 = math.rsqrt %18 : vector<16x1xf32>
    %20 = vector.broadcast %19 : vector<16x1xf32> to vector<16x256xf32>
    %21 = arith.mulf %16, %20 : vector<16x256xf32>
    %c0_9 = arith.constant 0 : index
    %c0_10 = arith.constant 0 : index
    %22 = vector.load %arg4[%c0_9, %c0_10] : memref<16x1xf32, #tpu.memory_space<vmem>>, vector<16x1xf32>
    %23 = vector.broadcast %22 : vector<16x1xf32> to vector<16x256xf32>
    %24 = arith.mulf %21, %23 : vector<16x256xf32>
    %c0_11 = arith.constant 0 : index
    %c0_12 = arith.constant 0 : index
    %25 = vector.load %arg5[%c0_11, %c0_12] : memref<16x1xf32, #tpu.memory_space<vmem>>, vector<16x1xf32>
    %26 = vector.broadcast %25 : vector<16x1xf32> to vector<16x256xf32>
    %27 = arith.addf %24, %26 : vector<16x256xf32>
    %cst_13 = arith.constant 0.000000e+00 : f32
    %28 = vector.broadcast %cst_13 : f32 to vector<16x256xf32>
    %29 = arith.cmpf ogt, %27, %28 : vector<16x256xf32>
    %cst_14 = arith.constant 2.000000e-01 : f32
    %30 = vector.broadcast %cst_14 : f32 to vector<16x256xf32>
    %31 = arith.mulf %30, %27 : vector<16x256xf32>
    %32 = arith.select %29, %27, %31 : vector<16x256xi1>, vector<16x256xf32>
    %c0_15 = arith.constant 0 : index
    %c0_16 = arith.constant 0 : index
    %c0_17 = arith.constant 0 : index
    %33 = vector.load %arg6[%c0_15, %c0_16, %c0_17] : memref<1x16x256xf32, #tpu.memory_space<vmem>>, vector<1x16x256xf32>
    %34 = vector.shape_cast %33 : vector<1x16x256xf32> to vector<16x256xf32>
    %35 = vector.shape_cast %32 : vector<16x256xf32> to vector<1x16x256xf32>
    tpu.vector_store %arg6[%c0_15, %c0_16, %c0_17], %35 {strides = array<i32>} : memref<1x16x256xf32, #tpu.memory_space<vmem>>, vector<1x16x256xf32>,
    return
  }
  func.func @transform_0(%arg0: i32, %arg1: i32) -> (i32, i32, i32) {
    %c0_i32 = arith.constant 0 : i32
    %c0_i32_0 = arith.constant 0 : i32
    return %arg0, %c0_i32, %arg1 : i32, i32, i32
  }
  func.func @transform_1(%arg0: i32, %arg1: i32) -> (i32, i32) {
    %c0_i32 = arith.constant 0 : i32
    %c0_i32_0 = arith.constant 0 : i32
    %c0_i32_1 = arith.constant 0 : i32
    return %c0_i32, %c0_i32_0 : i32, i32
  }
  func.func @transform_2(%arg0: i32, %arg1: i32) -> (i32, i32) {
    %c0_i32 = arith.constant 0 : i32
    %c0_i32_0 = arith.constant 0 : i32
    %c0_i32_1 = arith.constant 0 : i32
    return %c0_i32, %c0_i32_0 : i32, i32
  }
  func.func @transform_3(%arg0: i32, %arg1: i32) -> (i32, i32) {
    %c0_i32 = arith.constant 0 : i32
    %c0_i32_0 = arith.constant 0 : i32
    %c0_i32_1 = arith.constant 0 : i32
    return %c0_i32, %c0_i32_0 : i32, i32
  }
  func.func @transform_4(%arg0: i32, %arg1: i32) -> (i32, i32, i32) {
    %c0_i32 = arith.constant 0 : i32
    %c0_i32_0 = arith.constant 0 : i32
    return %arg0, %c0_i32, %arg1 : i32, i32, i32
  }
}

module attributes {stable_mosaic.version = 11 : i64} {
  func.func @_conv_in_lrelu_kernel(%arg0: i32, %arg1: i32, %arg2: memref<1x256x64xbf16, #tpu.memory_space<vmem>>, %arg3: memref<32x256xbf16, #tpu.memory_space<vmem>>, %arg4: memref<32x1xf32, #tpu.memory_space<vmem>>, %arg5: memref<32x1xf32, #tpu.memory_space<vmem>>, %arg6: memref<1x32x64xf32, #tpu.memory_space<vmem>>) attributes {dimension_semantics = [#tpu.dimension_semantics<parallel>, #tpu.dimension_semantics<parallel>], iteration_bounds = array<i64: 2, 1>, scalar_prefetch = 0 : i64, scratch_operands = 0 : i64, tpu.core_type = #tpu.core_type<tc>, window_params = [{transform_indices = @transform_0, window_bounds = array<i64: 1, 256, 64>}, {pipeline_mode = #tpu.pipeline_mode<synchronous>, transform_indices = @transform_1, window_bounds = array<i64: 32, 256>}, {pipeline_mode = #tpu.pipeline_mode<synchronous>, transform_indices = @transform_2, window_bounds = array<i64: 32, 1>}, {pipeline_mode = #tpu.pipeline_mode<synchronous>, transform_indices = @transform_3, window_bounds = array<i64: 32, 1>}, {transform_indices = @transform_4, window_bounds = array<i64: 1, 32, 64>}]} {
    %c0 = arith.constant 0 : index
    %c0_0 = arith.constant 0 : index
    %0 = vector.load %arg3[%c0, %c0_0] : memref<32x256xbf16, #tpu.memory_space<vmem>>, vector<32x256xbf16>
    %c0_1 = arith.constant 0 : index
    %c0_2 = arith.constant 0 : index
    %c0_3 = arith.constant 0 : index
    %1 = vector.load %arg2[%c0_1, %c0_2, %c0_3] : memref<1x256x64xbf16, #tpu.memory_space<vmem>>, vector<1x256x64xbf16>
    %2 = vector.shape_cast %1 : vector<1x256x64xbf16> to vector<256x64xbf16>
    %cst = arith.constant dense<0.000000e+00> : vector<32x64xf32>
    %3 = tpu.matmul %0, %2, %cst {dimension_numbers = #tpu.dot_dimension_numbers<[1], [0], [0], [1], [0, 0, 1, 1], [], []>} : vector<32x256xbf16>, vector<256x64xbf16>, vector<32x64xf32> -> vector<32x64xf32>
    %cst_4 = arith.constant dense<0.000000e+00> : vector<32xf32>
    %4 = vector.multi_reduction <add>, %3, %cst_4 [1] : vector<32x64xf32> to vector<32xf32>
    %5 = vector.shape_cast %4 : vector<32xf32> to vector<32x1xf32>
    %cst_5 = arith.constant 6.400000e+01 : f32
    %6 = vector.broadcast %cst_5 : f32 to vector<32x1xf32>
    %7 = arith.divf %5, %6 : vector<32x1xf32>
    %8 = vector.broadcast %7 : vector<32x1xf32> to vector<32x64xf32>
    %9 = arith.subf %3, %8 : vector<32x64xf32>
    %10 = arith.mulf %9, %9 : vector<32x64xf32>
    %cst_6 = arith.constant dense<0.000000e+00> : vector<32xf32>
    %11 = vector.multi_reduction <add>, %10, %cst_6 [1] : vector<32x64xf32> to vector<32xf32>
    %12 = vector.shape_cast %11 : vector<32xf32> to vector<32x1xf32>
    %cst_7 = arith.constant 6.400000e+01 : f32
    %13 = vector.broadcast %cst_7 : f32 to vector<32x1xf32>
    %14 = arith.divf %12, %13 : vector<32x1xf32>
    %15 = vector.broadcast %7 : vector<32x1xf32> to vector<32x64xf32>
    %16 = arith.subf %3, %15 : vector<32x64xf32>
    %cst_8 = arith.constant 9.99999974E-6 : f32
    %17 = vector.broadcast %cst_8 : f32 to vector<32x1xf32>
    %18 = arith.addf %14, %17 : vector<32x1xf32>
    %19 = math.rsqrt %18 : vector<32x1xf32>
    %20 = vector.broadcast %19 : vector<32x1xf32> to vector<32x64xf32>
    %21 = arith.mulf %16, %20 : vector<32x64xf32>
    %c0_9 = arith.constant 0 : index
    %c0_10 = arith.constant 0 : index
    %22 = vector.load %arg4[%c0_9, %c0_10] : memref<32x1xf32, #tpu.memory_space<vmem>>, vector<32x1xf32>
    %23 = vector.broadcast %22 : vector<32x1xf32> to vector<32x64xf32>
    %24 = arith.mulf %21, %23 : vector<32x64xf32>
    %c0_11 = arith.constant 0 : index
    %c0_12 = arith.constant 0 : index
    %25 = vector.load %arg5[%c0_11, %c0_12] : memref<32x1xf32, #tpu.memory_space<vmem>>, vector<32x1xf32>
    %26 = vector.broadcast %25 : vector<32x1xf32> to vector<32x64xf32>
    %27 = arith.addf %24, %26 : vector<32x64xf32>
    %cst_13 = arith.constant 0.000000e+00 : f32
    %28 = vector.broadcast %cst_13 : f32 to vector<32x64xf32>
    %29 = arith.cmpf ogt, %27, %28 : vector<32x64xf32>
    %cst_14 = arith.constant 2.000000e-01 : f32
    %30 = vector.broadcast %cst_14 : f32 to vector<32x64xf32>
    %31 = arith.mulf %30, %27 : vector<32x64xf32>
    %32 = arith.select %29, %27, %31 : vector<32x64xi1>, vector<32x64xf32>
    %c0_15 = arith.constant 0 : index
    %c0_16 = arith.constant 0 : index
    %c0_17 = arith.constant 0 : index
    %33 = vector.load %arg6[%c0_15, %c0_16, %c0_17] : memref<1x32x64xf32, #tpu.memory_space<vmem>>, vector<1x32x64xf32>
    %34 = vector.shape_cast %33 : vector<1x32x64xf32> to vector<32x64xf32>
    %35 = vector.shape_cast %32 : vector<32x64xf32> to vector<1x32x64xf32>
    tpu.vector_store %arg6[%c0_15, %c0_16, %c0_17], %35 {strides = array<i32>} : memref<1x32x64xf32, #tpu.memory_space<vmem>>, vector<1x32x64xf32>,
    return
  }
  func.func @transform_0(%arg0: i32, %arg1: i32) -> (i32, i32, i32) {
    %c0_i32 = arith.constant 0 : i32
    %c0_i32_0 = arith.constant 0 : i32
    return %arg0, %c0_i32, %arg1 : i32, i32, i32
  }
  func.func @transform_1(%arg0: i32, %arg1: i32) -> (i32, i32) {
    %c0_i32 = arith.constant 0 : i32
    %c0_i32_0 = arith.constant 0 : i32
    %c0_i32_1 = arith.constant 0 : i32
    return %c0_i32, %c0_i32_0 : i32, i32
  }
  func.func @transform_2(%arg0: i32, %arg1: i32) -> (i32, i32) {
    %c0_i32 = arith.constant 0 : i32
    %c0_i32_0 = arith.constant 0 : i32
    %c0_i32_1 = arith.constant 0 : i32
    return %c0_i32, %c0_i32_0 : i32, i32
  }
  func.func @transform_3(%arg0: i32, %arg1: i32) -> (i32, i32) {
    %c0_i32 = arith.constant 0 : i32
    %c0_i32_0 = arith.constant 0 : i32
    %c0_i32_1 = arith.constant 0 : i32
    return %c0_i32, %c0_i32_0 : i32, i32
  }
  func.func @transform_4(%arg0: i32, %arg1: i32) -> (i32, i32, i32) {
    %c0_i32 = arith.constant 0 : i32
    %c0_i32_0 = arith.constant 0 : i32
    return %arg0, %c0_i32, %arg1 : i32, i32, i32
  }
}

module attributes {stable_mosaic.version = 11 : i64} {
  func.func @_block_final_kernel(%arg0: i32, %arg1: memref<1x512x16xbf16, #tpu.memory_space<vmem>>, %arg2: memref<64x512xbf16, #tpu.memory_space<vmem>>, %arg3: memref<64x1xf32, #tpu.memory_space<vmem>>, %arg4: memref<64x1xf32, #tpu.memory_space<vmem>>, %arg5: memref<64x16xf32, #tpu.memory_space<vmem>>, %arg6: memref<1x1xf32, #tpu.memory_space<vmem>>, %arg7: memref<1x1x1xf32, #tpu.memory_space<vmem>>) attributes {dimension_semantics = [#tpu.dimension_semantics<parallel>], iteration_bounds = array<i64: 2>, scalar_prefetch = 0 : i64, scratch_operands = 0 : i64, tpu.core_type = #tpu.core_type<tc>, window_params = [{transform_indices = @transform_0, window_bounds = array<i64: 1, 512, 16>}, {pipeline_mode = #tpu.pipeline_mode<synchronous>, transform_indices = @transform_1, window_bounds = array<i64: 64, 512>}, {pipeline_mode = #tpu.pipeline_mode<synchronous>, transform_indices = @transform_2, window_bounds = array<i64: 64, 1>}, {pipeline_mode = #tpu.pipeline_mode<synchronous>, transform_indices = @transform_3, window_bounds = array<i64: 64, 1>}, {pipeline_mode = #tpu.pipeline_mode<synchronous>, transform_indices = @transform_4, window_bounds = array<i64: 64, 16>}, {pipeline_mode = #tpu.pipeline_mode<synchronous>, transform_indices = @transform_5, window_bounds = array<i64: 1, 1>}, {transform_indices = @transform_6, window_bounds = array<i64: 1, 1, 1>}]} {
    %c0 = arith.constant 0 : index
    %c0_0 = arith.constant 0 : index
    %0 = vector.load %arg2[%c0, %c0_0] : memref<64x512xbf16, #tpu.memory_space<vmem>>, vector<64x512xbf16>
    %c0_1 = arith.constant 0 : index
    %c0_2 = arith.constant 0 : index
    %c0_3 = arith.constant 0 : index
    %1 = vector.load %arg1[%c0_1, %c0_2, %c0_3] : memref<1x512x16xbf16, #tpu.memory_space<vmem>>, vector<1x512x16xbf16>
    %2 = vector.shape_cast %1 : vector<1x512x16xbf16> to vector<512x16xbf16>
    %cst = arith.constant dense<0.000000e+00> : vector<64x16xf32>
    %3 = tpu.matmul %0, %2, %cst {dimension_numbers = #tpu.dot_dimension_numbers<[1], [0], [0], [1], [0, 0, 1, 1], [], []>} : vector<64x512xbf16>, vector<512x16xbf16>, vector<64x16xf32> -> vector<64x16xf32>
    %cst_4 = arith.constant dense<0.000000e+00> : vector<64xf32>
    %4 = vector.multi_reduction <add>, %3, %cst_4 [1] : vector<64x16xf32> to vector<64xf32>
    %5 = vector.shape_cast %4 : vector<64xf32> to vector<64x1xf32>
    %cst_5 = arith.constant 1.600000e+01 : f32
    %6 = vector.broadcast %cst_5 : f32 to vector<64x1xf32>
    %7 = arith.divf %5, %6 : vector<64x1xf32>
    %8 = vector.broadcast %7 : vector<64x1xf32> to vector<64x16xf32>
    %9 = arith.subf %3, %8 : vector<64x16xf32>
    %10 = arith.mulf %9, %9 : vector<64x16xf32>
    %cst_6 = arith.constant dense<0.000000e+00> : vector<64xf32>
    %11 = vector.multi_reduction <add>, %10, %cst_6 [1] : vector<64x16xf32> to vector<64xf32>
    %12 = vector.shape_cast %11 : vector<64xf32> to vector<64x1xf32>
    %cst_7 = arith.constant 1.600000e+01 : f32
    %13 = vector.broadcast %cst_7 : f32 to vector<64x1xf32>
    %14 = arith.divf %12, %13 : vector<64x1xf32>
    %15 = vector.broadcast %7 : vector<64x1xf32> to vector<64x16xf32>
    %16 = arith.subf %3, %15 : vector<64x16xf32>
    %cst_8 = arith.constant 9.99999974E-6 : f32
    %17 = vector.broadcast %cst_8 : f32 to vector<64x1xf32>
    %18 = arith.addf %14, %17 : vector<64x1xf32>
    %19 = math.rsqrt %18 : vector<64x1xf32>
    %20 = vector.broadcast %19 : vector<64x1xf32> to vector<64x16xf32>
    %21 = arith.mulf %16, %20 : vector<64x16xf32>
    %c0_9 = arith.constant 0 : index
    %c0_10 = arith.constant 0 : index
    %22 = vector.load %arg3[%c0_9, %c0_10] : memref<64x1xf32, #tpu.memory_space<vmem>>, vector<64x1xf32>
    %23 = vector.broadcast %22 : vector<64x1xf32> to vector<64x16xf32>
    %24 = arith.mulf %21, %23 : vector<64x16xf32>
    %c0_11 = arith.constant 0 : index
    %c0_12 = arith.constant 0 : index
    %25 = vector.load %arg4[%c0_11, %c0_12] : memref<64x1xf32, #tpu.memory_space<vmem>>, vector<64x1xf32>
    %26 = vector.broadcast %25 : vector<64x1xf32> to vector<64x16xf32>
    %27 = arith.addf %24, %26 : vector<64x16xf32>
    %cst_13 = arith.constant 0.000000e+00 : f32
    %28 = vector.broadcast %cst_13 : f32 to vector<64x16xf32>
    %29 = arith.cmpf ogt, %27, %28 : vector<64x16xf32>
    %cst_14 = arith.constant 2.000000e-01 : f32
    %30 = vector.broadcast %cst_14 : f32 to vector<64x16xf32>
    %31 = arith.mulf %30, %27 : vector<64x16xf32>
    %32 = arith.select %29, %27, %31 : vector<64x16xi1>, vector<64x16xf32>
    %c0_15 = arith.constant 0 : index
    %c0_16 = arith.constant 0 : index
    %33 = vector.load %arg5[%c0_15, %c0_16] : memref<64x16xf32, #tpu.memory_space<vmem>>, vector<64x16xf32>
    %34 = arith.mulf %32, %33 : vector<64x16xf32>
    %cst_17 = arith.constant dense<0.000000e+00> : vector<64xf32>
    %35 = vector.multi_reduction <add>, %34, %cst_17 [1] : vector<64x16xf32> to vector<64xf32>
    %36 = vector.shape_cast %35 : vector<64xf32> to vector<64x1xf32>
    %cst_18 = arith.constant dense<0.000000e+00> : vector<1xf32>
    %37 = vector.multi_reduction <add>, %36, %cst_18 [0] : vector<64x1xf32> to vector<1xf32>
    %38 = vector.shape_cast %37 : vector<1xf32> to vector<1x1xf32>
    %c0_19 = arith.constant 0 : index
    %c0_20 = arith.constant 0 : index
    %39 = vector.load %arg6[%c0_19, %c0_20] : memref<1x1xf32, #tpu.memory_space<vmem>>, vector<1x1xf32>
    %40 = arith.addf %38, %39 : vector<1x1xf32>
    %c0_21 = arith.constant 0 : index
    %c0_22 = arith.constant 0 : index
    %c0_23 = arith.constant 0 : index
    %41 = vector.load %arg7[%c0_21, %c0_22, %c0_23] : memref<1x1x1xf32, #tpu.memory_space<vmem>>, vector<1x1x1xf32>
    %42 = vector.shape_cast %41 : vector<1x1x1xf32> to vector<1x1xf32>
    %43 = vector.shape_cast %40 : vector<1x1xf32> to vector<1x1x1xf32>
    tpu.vector_store %arg7[%c0_21, %c0_22, %c0_23], %43 {strides = array<i32>} : memref<1x1x1xf32, #tpu.memory_space<vmem>>, vector<1x1x1xf32>,
    return
  }
  func.func @transform_0(%arg0: i32) -> (i32, i32, i32) {
    %c0_i32 = arith.constant 0 : i32
    %c0_i32_0 = arith.constant 0 : i32
    %c0_i32_1 = arith.constant 0 : i32
    return %arg0, %c0_i32, %c0_i32_0 : i32, i32, i32
  }
  func.func @transform_1(%arg0: i32) -> (i32, i32) {
    %c0_i32 = arith.constant 0 : i32
    %c0_i32_0 = arith.constant 0 : i32
    %c0_i32_1 = arith.constant 0 : i32
    return %c0_i32, %c0_i32_0 : i32, i32
  }
  func.func @transform_2(%arg0: i32) -> (i32, i32) {
    %c0_i32 = arith.constant 0 : i32
    %c0_i32_0 = arith.constant 0 : i32
    %c0_i32_1 = arith.constant 0 : i32
    return %c0_i32, %c0_i32_0 : i32, i32
  }
  func.func @transform_3(%arg0: i32) -> (i32, i32) {
    %c0_i32 = arith.constant 0 : i32
    %c0_i32_0 = arith.constant 0 : i32
    %c0_i32_1 = arith.constant 0 : i32
    return %c0_i32, %c0_i32_0 : i32, i32
  }
  func.func @transform_4(%arg0: i32) -> (i32, i32) {
    %c0_i32 = arith.constant 0 : i32
    %c0_i32_0 = arith.constant 0 : i32
    %c0_i32_1 = arith.constant 0 : i32
    return %c0_i32, %c0_i32_0 : i32, i32
  }
  func.func @transform_5(%arg0: i32) -> (i32, i32) {
    %c0_i32 = arith.constant 0 : i32
    %c0_i32_0 = arith.constant 0 : i32
    %c0_i32_1 = arith.constant 0 : i32
    return %c0_i32, %c0_i32_0 : i32, i32
  }
  func.func @transform_6(%arg0: i32) -> (i32, i32, i32) {
    %c0_i32 = arith.constant 0 : i32
    %c0_i32_0 = arith.constant 0 : i32
    %c0_i32_1 = arith.constant 0 : i32
    return %arg0, %c0_i32, %c0_i32_0 : i32, i32, i32
  }
}

</mosaic_0001>

<llo_original>
// kernel: critic_forward.5
$region0: #{critic_forward.5}
  #allocation0 [shape = 'u32[]', space=smem, size = 0x4, offset = 0x4, fixed_abs, tag = 'smem constant byte address 0x4 - core index']
  #allocation1 [shape = 'u32[72,128]{1,0:T(1,128)}', space=vmem, size = 0x9000, scoped, tag = 'internal scratch']
  %s0 = inlined_call_operand.vmem [shape: bf16[2,48,4096], index: 0, kind: input, shape index: {}]
  %s1 = inlined_call_operand.vmem [shape: bf16[4,48], index: 1, kind: input, shape index: {}]
  %s2 = inlined_call_operand.vmem [shape: f32[4,1], index: 2, kind: input, shape index: {}]
  %s3 = inlined_call_operand.vmem [shape: f32[2,4,4096], index: 3, kind: output, shape index: {}]
  %s4 = sld [smem:[#allocation0]]
  $region68: #{critic_forward.5} parent=0
    _
  %s6 = ssub.s32 1, %s4
  %s7 = scalar_select 0, %s6, %s4
  $region1: #{critic_forward.5} parent=0
    #allocation2 [shape = 'u8[196608]{0}', space=vmem, size = 0x30000, scoped, tag = 'input window, operand 0']
    loop: start=0, step=1, limit=10
    $region2: #{critic_forward.5} parent=1 // loop_pre_header
      _
    $region3: #{critic_forward.5} parent=1 // loop_header
      %s9 = sphi 0, %s13
      %p10 = scmp.ge.s32.totalorder %s9, 10
      %s16 = sphi 0, %s28
      %s17 = sphi 0, %s24
      %s18 = sphi 0, %s16
      %s19 = sphi 0, %s17
      %s20 = sphi 0, %s18
      %s21 = sphi 0, %s19
      %s33 = sphi 0, %s35
      %s36 = sphi 0, %s33
      %s37 = sphi 0, %s36
      %s53 = sphi 0, %s37
      %s57 = sphi 0, %s57
      %s59 = sphi 0, %s57
      %s60 = sphi 0, %s59
      %s74 = sphi 0, %s60
      %s78 = sphi 0, %s78
      %s80 = sphi 0, %s78
      %s81 = sphi 0, %s80
      %s95 = sphi 0, %s81
      %s103 = sphi 0, %s105
      %s106 = sphi 0, %s103
      %s107 = sphi 0, %s106
      %s123 = sphi 0, %s107
    $region4: #{critic_forward.5} parent=1 // loop_header_branch
      %12 = sbr.rel (%p10) target = $region8
    $region5: #{critic_forward.5} parent=1 // loop_body
      %s14 = ssub.s32 %s9, 1
      %s15 = ssub.s32 %s9, 2
      %s22 = sadd.s32 1, %s17
      %p23 = scmp.ge.s32.totalorder %s22, 4
      %s24 = scalar_select %p23, 0, %s22
      %s25 = sadd.s32 1, %s16
      %s26 = scalar_select %p23, %s25, %s16
      %p27 = scmp.ge.s32.totalorder %s26, 2
      %s28 = scalar_select %p27, 0, %s26
      %s29 = ssub.s32 %s16, %s28
      %s30 = ssub.s32 %s17, %s24
      %s31 = sor.u32 %s29, %s30
      %p32 = scmp.eq.s32.totalorder %s31, 0
      %s34 = sadd.s32 %s33, 1
      %s35 = scalar_select %p32, %s33, %s34
      %p38 = pneg %p32
      %p39 = scmp.eq.s32.totalorder %s9, 7
      %p40 = por %p38, %p39
      %p41 = scmp.ne.s32.totalorder %s33, %s36
      %p42 = scmp.eq.s32.totalorder %s9, 0
      %p43 = por %p41, %p42
      %p44 = scmp.ne.s32.totalorder %s33, %s36
      %p45 = scmp.eq.s32.totalorder %s14, 7
      %p46 = por %p44, %p45
      %p47 = scmp.ne.s32.totalorder %s36, %s37
      %p48 = scmp.eq.s32.totalorder %s14, 0
      %p49 = por %p47, %p48
      %p50 = scmp.ne.s32.totalorder %s36, %s37
      %p51 = scmp.eq.s32.totalorder %s15, 7
      %p52 = por %p50, %p51
      %p54 = scmp.ne.s32.totalorder %s37, %s53
      %p55 = scmp.eq.s32.totalorder %s15, 0
      %p56 = por %p54, %p55
      %s58 = sadd.s32 %s57, 1
      %p61 = scmp.eq.s32.totalorder %s9, 7
      %p62 = scmp.ne.s32.totalorder %s57, %s59
      %p63 = scmp.eq.s32.totalorder %s9, 0
      %p64 = por %p62, %p63
      %p65 = scmp.ne.s32.totalorder %s57, %s59
      %p66 = scmp.eq.s32.totalorder %s14, 7
      %p67 = por %p65, %p66
      %p68 = scmp.ne.s32.totalorder %s59, %s60
      %p69 = scmp.eq.s32.totalorder %s14, 0
      %p70 = por %p68, %p69
      %p71 = scmp.ne.s32.totalorder %s59, %s60
      %p72 = scmp.eq.s32.totalorder %s15, 7
      %p73 = por %p71, %p72
      %p75 = scmp.ne.s32.totalorder %s60, %s74
      %p76 = scmp.eq.s32.totalorder %s15, 0
      %p77 = por %p75, %p76
      %s79 = sadd.s32 %s78, 1
      %p82 = scmp.eq.s32.totalorder %s9, 7
      %p83 = scmp.ne.s32.totalorder %s78, %s80
      %p84 = scmp.eq.s32.totalorder %s9, 0
      %p85 = por %p83, %p84
      %p86 = scmp.ne.s32.totalorder %s78, %s80
      %p87 = scmp.eq.s32.totalorder %s14, 7
      %p88 = por %p86, %p87
      %p89 = scmp.ne.s32.totalorder %s80, %s81
      %p90 = scmp.eq.s32.totalorder %s14, 0
      %p91 = por %p89, %p90
      %p92 = scmp.ne.s32.totalorder %s80, %s81
      %p93 = scmp.eq.s32.totalorder %s15, 7
      %p94 = por %p92, %p93
      %p96 = scmp.ne.s32.totalorder %s81, %s95
      %p97 = scmp.eq.s32.totalorder %s15, 0
      %p98 = por %p96, %p97
      %s99 = ssub.s32 %s16, %s28
      %s100 = ssub.s32 %s17, %s24
      %s101 = sor.u32 %s99, %s100
      %p102 = scmp.eq.s32.totalorder %s101, 0
      %s104 = sadd.s32 %s103, 1
      %s105 = scalar_select %p102, %s103, %s104
      %p108 = pneg %p102
      %p109 = scmp.eq.s32.totalorder %s9, 7
      %p110 = por %p108, %p109
      %p111 = scmp.ne.s32.totalorder %s103, %s106
      %p112 = scmp.eq.s32.totalorder %s9, 0
      %p113 = por %p111, %p112
      %p114 = scmp.ne.s32.totalorder %s103, %s106
      %p115 = scmp.eq.s32.totalorder %s14, 7
      %p116 = por %p114, %p115
      %p117 = scmp.ne.s32.totalorder %s106, %s107
      %p118 = scmp.eq.s32.totalorder %s14, 0
      %p119 = por %p117, %p118
      %p120 = scmp.ne.s32.totalorder %s106, %s107
      %p121 = scmp.eq.s32.totalorder %s15, 7
      %p122 = por %p120, %p121
      %p124 = scmp.ne.s32.totalorder %s107, %s123
      %p125 = scmp.eq.s32.totalorder %s15, 0
      %p126 = por %p124, %p125
      %p127 = scmp.le.s32.totalorder 1, %s9
      %p128 = scmp.lt.s32.totalorder %s9, 9
      %p129 = pnand %p127, %p128
      %p130 = pneg %p129
      // Predicated region
      $region9: #{critic_forward.5} parent=5 // pred_check
        _
      $region10: #{critic_forward.5} parent=5 // pred_check_branch
        %132 = sbr.rel (%p129) target = $region12
      $region11: #{critic_forward.5} parent=5 // pred_region
        %s133 = ssub.s32 %s9, 1
        // Predicated region
        $region13: #{critic_forward.5} parent=11 // pred_check
          %p134 = pneg %p70
        $region14: #{critic_forward.5} parent=11 // pred_check_branch
          %136 = sbr.rel (%p134) target = $region16
        $region15: #{critic_forward.5} parent=11 // pred_region
          _
        $region16: #{critic_forward.5} parent=11 // pred_fallthru
          _
        // Predicated region
        $region17: #{critic_forward.5} parent=11 // pred_check
          %p137 = pneg %p91
        $region18: #{critic_forward.5} parent=11 // pred_check_branch
          %139 = sbr.rel (%p137) target = $region20
        $region19: #{critic_forward.5} parent=11 // pred_region
          _
        $region20: #{critic_forward.5} parent=11 // pred_fallthru
          _
      $region12: #{critic_forward.5} parent=5 // pred_fallthru
        _
      %p140 = scmp.lt.s32.totalorder %s9, 8
      // Predicated region
      $region21: #{critic_forward.5} parent=5 // pred_check
        %p141 = pneg %p140
      $region22: #{critic_forward.5} parent=5 // pred_check_branch
        %143 = sbr.rel (%p141) target = $region24
      $region23: #{critic_forward.5} parent=5 // pred_region
        // Predicated region
        $region25: #{critic_forward.5} parent=23 // pred_check
          %p144 = pneg %p43
        $region26: #{critic_forward.5} parent=23 // pred_check_branch
          %146 = sbr.rel (%p144) target = $region28
        $region27: #{critic_forward.5} parent=23 // pred_region
          %s147 = sand.u32 %s33, 1
          %s148 = sand.u32 %s33, 1
          %s149 = smul.addr %s148, 192
          %s150 = scalar_lea.vmem [#allocation2], %s149
          %s151 = smul.u32 8, %s17
          %s152 = smul.addr %s16, 192
          %s153 = sadd.s32 %s151, %s152
          %s154 = smul.addr %s153, 4
          %s155 = scalar_lea.vmem %s0, %s154
          // Predicated region
          $region29: #{critic_forward.5} parent=27 // pred_check
            _
          $region30: #{critic_forward.5} parent=27 // pred_check_branch
            %157 = sbr.rel (0) target = $region32
          $region31: #{critic_forward.5} parent=27 // pred_region
            // Predicated region
            $region33: #{critic_forward.5} parent=31 // pred_check
              _
            $region34: #{critic_forward.5} parent=31 // pred_check_branch
              %159 = sbr.rel (0) target = $region36
            $region35: #{critic_forward.5} parent=31 // pred_region
              loop: start=0, step=1, limit=1
              $region37: #{critic_forward.5} parent=35 // loop_pre_header
                _
              $region38: #{critic_forward.5} parent=35 // loop_header
                %s161 = sphi 0, %s165
                %p162 = scmp.ge.s32.totalorder %s161, 1
                %s166 = sphi %s155, %s155
                %s167 = sphi %s150, %s150
              $region39: #{critic_forward.5} parent=35 // loop_header_branch
                %164 = sbr.rel (%p162) target = $region43
              $region40: #{critic_forward.5} parent=35 // loop_body
                %v168 = vld [vmem:[%s166] sm:$0xff]
                %169 = vst [vmem:[%s167] sm:$0xff] %v168
                %v170 = vld [vmem:[%s166 + $0x8] sm:$0xff]
                %171 = vst [vmem:[%s167 + $0x8] sm:$0xff] %v170
                %v172 = vld [vmem:[%s166 + $0x10] sm:$0xff]
                %173 = vst [vmem:[%s167 + $0x10] sm:$0xff] %v172
                %v174 = vld [vmem:[%s166 + $0x18] sm:$0xff]
                %175 = vst [vmem:[%s167 + $0x18] sm:$0xff] %v174
                %v176 = vld [vmem:[%s166 + $0x80] sm:$0xff]
                %177 = vst [vmem:[%s167 + $0x20] sm:$0xff] %v176
                %v178 = vld [vmem:[%s166 + $0x88] sm:$0xff]
                %179 = vst [vmem:[%s167 + $0x28] sm:$0xff] %v178
                %v180 = vld [vmem:[%s166 + $0x90] sm:$0xff]
                %181 = vst [vmem:[%s167 + $0x30] sm:$0xff] %v180
                %v182 = vld [vmem:[%s166 + $0x98] sm:$0xff]
                %183 = vst [vmem:[%s167 + $0x38] sm:$0xff] %v182
                %v184 = vld [vmem:[%s166 + $0x100] sm:$0xff]
                %185 = vst [vmem:[%s167 + $0x40] sm:$0xff] %v184
                %v186 = vld [vmem:[%s166 + $0x108] sm:$0xff]
                %187 = vst [vmem:[%s167 + $0x48] sm:$0xff] %v186
                %v188 = vld [vmem:[%s166 + $0x110] sm:$0xff]
                %189 = vst [vmem:[%s167 + $0x50] sm:$0xff] %v188
                %v190 = vld [vmem:[%s166 + $0x118] sm:$0xff]
                %191 = vst [vmem:[%s167 + $0x58] sm:$0xff] %v190
                %v192 = vld [vmem:[%s166 + $0x180] sm:$0xff]
                %193 = vst [vmem:[%s167 + $0x60] sm:$0xff] %v192
                %v194 = vld [vmem:[%s166 + $0x188] sm:$0xff]
                %195 = vst [vmem:[%s167 + $0x68] sm:$0xff] %v194
                %v196 = vld [vmem:[%s166 + $0x190] sm:$0xff]
                %197 = vst [vmem:[%s167 + $0x70] sm:$0xff] %v196
                %v198 = vld [vmem:[%s166 + $0x198] sm:$0xff]
                %199 = vst [vmem:[%s167 + $0x78] sm:$0xff] %v198
                %v200 = vld [vmem:[%s166 + $0x200] sm:$0xff]
                %201 = vst [vmem:[%s167 + $0x80] sm:$0xff] %v200
                %v202 = vld [vmem:[%s166 + $0x208] sm:$0xff]
                %203 = vst [vmem:[%s167 + $0x88] sm:$0xff] %v202
                %v204 = vld [vmem:[%s166 + $0x210] sm:$0xff]
                %205 = vst [vmem:[%s167 + $0x90] sm:$0xff] %v204
                %v206 = vld [vmem:[%s166 + $0x218] sm:$0xff]
                %207 = vst [vmem:[%s167 + $0x98] sm:$0xff] %v206
                %v208 = vld [vmem:[%s166 + $0x280] sm:$0xff]
                %209 = vst [vmem:[%s167 + $0xa0] sm:$0xff] %v208
                %v210 = vld [vmem:[%s166 + $0x288] sm:$0xff]
                %211 = vst [vmem:[%s167 + $0xa8] sm:$0xff] %v210
                %v212 = vld [vmem:[%s166 + $0x290] sm:$0xff]
                %213 = vst [vmem:[%s167 + $0xb0] sm:$0xff] %v212
                %v214 = vld [vmem:[%s166 + $0x298] sm:$0xff]
                %215 = vst [vmem:[%s167 + $0xb8] sm:$0xff] %v214
              $region41: #{critic_forward.5} parent=35 // loop_footer
                %s165 = sadd.s32 1, %s161
              $region42: #{critic_forward.5} parent=35 // loop_footer_branch
                %160 = sbr.rel target = $region38
              $region43: #{critic_forward.5} parent=35 // loop_exit
                _
            $region36: #{critic_forward.5} parent=31 // pred_fallthru
              _
            // Predicated region
            $region44: #{critic_forward.5} parent=31 // pred_check
              _
            $region45: #{critic_forward.5} parent=31 // pred_check_branch
              %217 = sbr.rel target = $region47
            $region46: #{critic_forward.5} parent=31 // pred_region
              _
            $region47: #{critic_forward.5} parent=31 // pred_fallthru
              _
          $region32: #{critic_forward.5} parent=27 // pred_fallthru
            _
          %218 = vnop
        $region28: #{critic_forward.5} parent=23 // pred_fallthru
          _
      $region24: #{critic_forward.5} parent=5 // pred_fallthru
        _
      %p219 = scmp.le.s32.totalorder 1, %s9
      %p220 = scmp.lt.s32.totalorder %s9, 9
      %p221 = pnand %p219, %p220
      %p222 = pneg %p221
      // Predicated region
      $region48: #{critic_forward.5} parent=5 // pred_check
        _
      $region49: #{critic_forward.5} parent=5 // pred_check_branch
        %224 = sbr.rel (%p221) target = $region51
      $region50: #{critic_forward.5} parent=5 // pred_region
        %s225 = ssub.s32 %s9, 1
        %s226 = sand.u32 %s36, 1
        %s227 = sand.u32 %s36, 1
        %s228 = smul.addr %s227, 192
        %s229 = scalar_lea.vmem [#allocation2], %s228
        // Predicated region
        $region52: #{critic_forward.5} parent=50 // pred_check
          %p230 = pneg %p49
        $region53: #{critic_forward.5} parent=50 // pred_check_branch
          %232 = sbr.rel (%p230) target = $region55
        $region54: #{critic_forward.5} parent=50 // pred_region
          _
        $region55: #{critic_forward.5} parent=50 // pred_fallthru
          _
        %s233 = sand.u32 %s36, 1
        %s234 = sand.u32 %s36, 1
        %s235 = smul.addr %s234, 192
        %s236 = scalar_lea.vmem [#allocation2], %s235
        %p237 = pneg %p49
        %p238 = pneg %p46
        %p239 = pneg %p70
        %p240 = pneg %p67
        %p241 = pneg %p91
        %p242 = pneg %p88
        %p243 = pneg %p119
        %p244 = pneg %p116
        %s245 = smul.u32 8, %s19
        %p246 = scmp.lt.s32.totalorder %s18, 1
        %s247 = scalar_select %p246, %s18, 1
        %p248 = scmp.lt.s32.totalorder %s245, 31
        %s249 = scalar_select %p248, %s245, 31
        %s250 = smul.addr %s247, 32
        %s251 = sadd.s32 %s249, %s250
        %s252 = smul.addr %s251, 4
        %s253 = scalar_lea.vmem %s3, %s252
        %s254 = smul.u32 8, %s19
        %s255 = smul.u32 8, %s19
        %p256 = scmp.lt.s32.totalorder %s18, 1
        %s257 = scalar_select %p256, %s18, 1
        %p258 = scmp.lt.s32.totalorder %s255, 31
        %s259 = scalar_select %p258, %s255, 31
        %s260 = smul.addr %s257, 32
        %s261 = sadd.s32 %s259, %s260
        %s262 = smul.addr %s261, 4
        %s263 = scalar_lea.vmem %s3, %s262
        %s264 = smul.u32 8, %s19
        %v266 = vld [vmem:[%s1] sm:$0x3]
        %v267 = vld [vmem:[%s229] sm:$0xff]
        %v268 = vld [vmem:[%s229 + $0x8] sm:$0xff]
        %v269 = vld [vmem:[%s229 + $0x10] sm:$0xff]
        %v270 = vld [vmem:[%s229 + $0x18] sm:$0xff]
        %v271 = vld [vmem:[%s229 + $0x20] sm:$0xff]
        %v272 = vld [vmem:[%s229 + $0x28] sm:$0xff]
        %v273 = vld [vmem:[%s229 + $0x30] sm:$0xff]
        %v274 = vld [vmem:[%s229 + $0x38] sm:$0xff]
        %v275 = vld [vmem:[%s229 + $0x40] sm:$0xff]
        %v276 = vld [vmem:[%s229 + $0x48] sm:$0xff]
        %v277 = vld [vmem:[%s229 + $0x50] sm:$0xff]
        %v278 = vld [vmem:[%s229 + $0x58] sm:$0xff]
        %v279 = vld [vmem:[%s229 + $0x60] sm:$0xff]
        %v280 = vld [vmem:[%s229 + $0x68] sm:$0xff]
        %v281 = vld [vmem:[%s229 + $0x70] sm:$0xff]
        %v282 = vld [vmem:[%s229 + $0x78] sm:$0xff]
        %v283 = vld [vmem:[%s229 + $0x80] sm:$0xff]
        %v284 = vld [vmem:[%s229 + $0x88] sm:$0xff]
        %v285 = vld [vmem:[%s229 + $0x90] sm:$0xff]
        %v286 = vld [vmem:[%s229 + $0x98] sm:$0xff]
        %v287 = vld [vmem:[%s229 + $0xa0] sm:$0xff]
        %v288 = vld [vmem:[%s229 + $0xa8] sm:$0xff]
        %v289 = vld [vmem:[%s229 + $0xb0] sm:$0xff]
        %v290 = vld [vmem:[%s229 + $0xb8] sm:$0xff]
        %v291 = vld [vmem:[%s2] sm:$0xf]
        %293 = vset.pattern.permute.xlu0 0
        %294 = vperm.xlu0 %293, %v291
        %v295 = vpop.permute.xlu0 %294
        %v321 = vunpack.c.l.b16 %v267
        %v322 = vunpack.c.h.b16 %v267
        %v323 = vunpack.c.l.b16 %v268
        %v324 = vunpack.c.h.b16 %v268
        %v325 = vunpack.c.l.b16 %v269
        %v326 = vunpack.c.h.b16 %v269
        %v327 = vunpack.c.l.b16 %v270
        %v328 = vunpack.c.h.b16 %v270
        %v329 = vunpack.c.l.b16 %v271
        %v330 = vunpack.c.h.b16 %v271
        %v331 = vunpack.c.l.b16 %v272
        %v332 = vunpack.c.h.b16 %v272
        %v333 = vunpack.c.l.b16 %v273
        %v334 = vunpack.c.h.b16 %v273
        %v335 = vunpack.c.l.b16 %v274
        %v336 = vunpack.c.h.b16 %v274
        %v337 = vunpack.c.l.b16 %v275
        %v338 = vunpack.c.h.b16 %v275
        %v339 = vunpack.c.l.b16 %v276
        %v340 = vunpack.c.h.b16 %v276
        %v341 = vunpack.c.l.b16 %v277
        %v342 = vunpack.c.h.b16 %v277
        %v343 = vunpack.c.l.b16 %v278
        %v344 = vunpack.c.h.b16 %v278
        %v345 = vunpack.c.l.b16 %v279
        %v346 = vunpack.c.h.b16 %v279
        %v347 = vunpack.c.l.b16 %v280
        %v348 = vunpack.c.h.b16 %v280
        %v349 = vunpack.c.l.b16 %v281
        %v350 = vunpack.c.h.b16 %v281
        %v351 = vunpack.c.l.b16 %v282
        %v352 = vunpack.c.h.b16 %v282
        %v353 = vunpack.c.l.b16 %v283
        %v354 = vunpack.c.h.b16 %v283
        %v355 = vunpack.c.l.b16 %v284
        %v356 = vunpack.c.h.b16 %v284
        %v357 = vunpack.c.l.b16 %v285
        %v358 = vunpack.c.h.b16 %v285
        %v359 = vunpack.c.l.b16 %v286
        %v360 = vunpack.c.h.b16 %v286
        %v361 = vunpack.c.l.b16 %v287
        %v362 = vunpack.c.h.b16 %v287
        %v363 = vunpack.c.l.b16 %v288
        %v364 = vunpack.c.h.b16 %v288
        %v365 = vunpack.c.l.b16 %v289
        %v366 = vunpack.c.h.b16 %v289
        %v367 = vunpack.c.l.b16 %v290
        %v368 = vunpack.c.h.b16 %v290
        %v369 = vpack.c.b16 %v329, %v321
        %v370 = vpack.c.b16 %v330, %v322
        %v371 = vpack.c.b16 %v331, %v323
        %v372 = vpack.c.b16 %v332, %v324
        %v373 = vpack.c.b16 %v333, %v325
        %v374 = vpack.c.b16 %v334, %v326
        %v375 = vpack.c.b16 %v335, %v327
        %v376 = vpack.c.b16 %v336, %v328
        %v377 = vpack.c.b16 %v345, %v337
        %v378 = vpack.c.b16 %v346, %v338
        %v379 = vpack.c.b16 %v347, %v339
        %v380 = vpack.c.b16 %v348, %v340
        %v381 = vpack.c.b16 %v349, %v341
        %v382 = vpack.c.b16 %v350, %v342
        %v383 = vpack.c.b16 %v351, %v343
        %v384 = vpack.c.b16 %v352, %v344
        %v385 = vpack.c.b16 %v361, %v353
        %v386 = vpack.c.b16 %v362, %v354
        %v387 = vpack.c.b16 %v363, %v355
        %v388 = vpack.c.b16 %v364, %v356
        %v389 = vpack.c.b16 %v365, %v357
        %v390 = vpack.c.b16 %v366, %v358
        %v391 = vpack.c.b16 %v367, %v359
        %v392 = vpack.c.b16 %v368, %v360
        %vm417 = vcmask 392192
        %v419 = vsel %vm417, %v266, 0
        %421 = vmatpush.bf16.msra.mxu0 0
        %422 = vmatpush.bf16.msra.mxu0 0
        %423 = vmatpush.bf16.msra.mxu0 0
        %424 = vmatpush.bf16.msra.mxu0 0
        %425 = vmatpush.bf16.msra.mxu0 0
        %426 = vmatpush.bf16.msra.mxu0 %v385
        %427 = vmatpush.bf16.msra.mxu0 %v377
        %428 = vmatpush.bf16.msra.mxu0 %v369
        %429 = vmatmul.bf16.gmra.mxu0 %v419
        %v430 = vpop.f32.mrf.mxu0
        %v431 = vadd.f32 %v295, %v430
        %v432 = vpop.f32.mrf.mxu0
        %433 = vdwg.mxu0
        %434 = vmatpush.bf16.msra.mxu0 0
        %435 = vmatpush.bf16.msra.mxu0 0
        %436 = vmatpush.bf16.msra.mxu0 0
        %437 = vmatpush.bf16.msra.mxu0 0
        %438 = vmatpush.bf16.msra.mxu0 0
        %439 = vmatpush.bf16.msra.mxu0 %v386
        %440 = vmatpush.bf16.msra.mxu0 %v378
        %441 = vmatpush.bf16.msra.mxu0 %v370
        %442 = vmatmul.bf16.gmra.mxu0 %v419
        %v443 = vpop.f32.mrf.mxu0
        %v444 = vadd.f32 %v295, %v443
        %v445 = vpop.f32.mrf.mxu0
        %446 = vdwg.mxu0
        %447 = vmatpush.bf16.msra.mxu0 0
        %448 = vmatpush.bf16.msra.mxu0 0
        %449 = vmatpush.bf16.msra.mxu0 0
        %450 = vmatpush.bf16.msra.mxu0 0
        %451 = vmatpush.bf16.msra.mxu0 0
        %452 = vmatpush.bf16.msra.mxu0 %v387
        %453 = vmatpush.bf16.msra.mxu0 %v379
        %454 = vmatpush.bf16.msra.mxu0 %v371
        %455 = vmatmul.bf16.gmra.mxu0 %v419
        %v456 = vpop.f32.mrf.mxu0
        %v457 = vadd.f32 %v295, %v456
        %v458 = vpop.f32.mrf.mxu0
        %459 = vdwg.mxu0
        %460 = vmatpush.bf16.msra.mxu0 0
        %461 = vmatpush.bf16.msra.mxu0 0
        %462 = vmatpush.bf16.msra.mxu0 0
        %463 = vmatpush.bf16.msra.mxu0 0
        %464 = vmatpush.bf16.msra.mxu0 0
        %465 = vmatpush.bf16.msra.mxu0 %v388
        %466 = vmatpush.bf16.msra.mxu0 %v380
        %467 = vmatpush.bf16.msra.mxu0 %v372
        %468 = vmatmul.bf16.gmra.mxu0 %v419
        %v469 = vpop.f32.mrf.mxu0
        %v470 = vadd.f32 %v295, %v469
        %v471 = vpop.f32.mrf.mxu0
        %472 = vdwg.mxu0
        %473 = vmatpush.bf16.msra.mxu0 0
        %474 = vmatpush.bf16.msra.mxu0 0
        %475 = vmatpush.bf16.msra.mxu0 0
        %476 = vmatpush.bf16.msra.mxu0 0
        %477 = vmatpush.bf16.msra.mxu0 0
        %478 = vmatpush.bf16.msra.mxu0 %v389
        %479 = vmatpush.bf16.msra.mxu0 %v381
        %480 = vmatpush.bf16.msra.mxu0 %v373
        %481 = vmatmul.bf16.gmra.mxu0 %v419
        %v482 = vpop.f32.mrf.mxu0
        %v483 = vadd.f32 %v295, %v482
        %v484 = vpop.f32.mrf.mxu0
        %485 = vdwg.mxu0
        %486 = vmatpush.bf16.msra.mxu0 0
        %487 = vmatpush.bf16.msra.mxu0 0
        %488 = vmatpush.bf16.msra.mxu0 0
        %489 = vmatpush.bf16.msra.mxu0 0
        %490 = vmatpush.bf16.msra.mxu0 0
        %491 = vmatpush.bf16.msra.mxu0 %v390
        %492 = vmatpush.bf16.msra.mxu0 %v382
        %493 = vmatpush.bf16.msra.mxu0 %v374
        %494 = vmatmul.bf16.gmra.mxu0 %v419
        %v495 = vpop.f32.mrf.mxu0
        %v496 = vadd.f32 %v295, %v495
        %v497 = vpop.f32.mrf.mxu0
        %498 = vdwg.mxu0
        %499 = vmatpush.bf16.msra.mxu0 0
        %500 = vmatpush.bf16.msra.mxu0 0
        %501 = vmatpush.bf16.msra.mxu0 0
        %502 = vmatpush.bf16.msra.mxu0 0
        %503 = vmatpush.bf16.msra.mxu0 0
        %504 = vmatpush.bf16.msra.mxu0 %v391
        %505 = vmatpush.bf16.msra.mxu0 %v383
        %506 = vmatpush.bf16.msra.mxu0 %v375
        %507 = vmatmul.bf16.gmra.mxu0 %v419
        %v508 = vpop.f32.mrf.mxu0
        %v509 = vadd.f32 %v295, %v508
        %v510 = vpop.f32.mrf.mxu0
        %511 = vdwg.mxu0
        %512 = vmatpush.bf16.msra.mxu0 0
        %513 = vmatpush.bf16.msra.mxu0 0
        %514 = vmatpush.bf16.msra.mxu0 0
        %515 = vmatpush.bf16.msra.mxu0 0
        %516 = vmatpush.bf16.msra.mxu0 0
        %517 = vmatpush.bf16.msra.mxu0 %v392
        %518 = vmatpush.bf16.msra.mxu0 %v384
        %519 = vmatpush.bf16.msra.mxu0 %v376
        %520 = vmatmul.bf16.gmra.mxu0 %v419
        %v521 = vpop.f32.mrf.mxu0
        %v522 = vadd.f32 %v295, %v521
        %v523 = vpop.f32.mrf.mxu0
        %524 = vdwg.mxu0
        %vm525 = vcmp.gt.f32.partialorder %v431, 0.0
        %vm526 = vcmp.gt.f32.partialorder %v444, 0.0
        %vm527 = vcmp.gt.f32.partialorder %v457, 0.0
        %vm528 = vcmp.gt.f32.partialorder %v470, 0.0
        %vm529 = vcmp.gt.f32.partialorder %v483, 0.0
        %vm530 = vcmp.gt.f32.partialorder %v496, 0.0
        %vm531 = vcmp.gt.f32.partialorder %v509, 0.0
        %vm532 = vcmp.gt.f32.partialorder %v522, 0.0
        %v533 = vmul.f32 %v431, 0.2
        %v534 = vmul.f32 %v444, 0.2
        %v535 = vmul.f32 %v457, 0.2
        %v536 = vmul.f32 %v470, 0.2
        %v537 = vmul.f32 %v483, 0.2
        %v538 = vmul.f32 %v496, 0.2
        %v539 = vmul.f32 %v509, 0.2
        %v540 = vmul.f32 %v522, 0.2
        %v541 = vsel %vm525, %v431, %v533
        %v542 = vsel %vm526, %v444, %v534
        %v543 = vsel %vm527, %v457, %v535
        %v544 = vsel %vm528, %v470, %v536
        %v545 = vsel %vm529, %v483, %v537
        %v546 = vsel %vm530, %v496, %v538
        %v547 = vsel %vm531, %v509, %v539
        %v548 = vsel %vm532, %v522, %v540
        %v557 = vrot.slane %v542, 4
        %v558 = vrot.slane %v544, 4
        %v559 = vrot.slane %v546, 4
        %v560 = vrot.slane %v548, 4
        %vm561 = vcmask 1043456
        %v562 = vsel %vm561, %v541, %v557
        %v563 = vsel %vm561, %v543, %v558
        %v564 = vsel %vm561, %v545, %v559
        %v565 = vsel %vm561, %v547, %v560
        %570 = vst [vmem:[%s263] sm:$0xff] %v562
        %571 = vst [vmem:[%s263 + $0x8] sm:$0xff] %v563
        %572 = vst [vmem:[%s263 + $0x10] sm:$0xff] %v564
        %573 = vst [vmem:[%s263 + $0x18] sm:$0xff] %v565
        %s574 = smul.u32 8, %s19
        %p575 = scmp.lt.s32.totalorder %s18, 1
        %s576 = scalar_select %p575, %s18, 1
        %p577 = scmp.lt.s32.totalorder %s574, 31
        %s578 = scalar_select %p577, %s574, 31
        %s579 = smul.addr %s576, 32
        %s580 = sadd.s32 %s578, %s579
        %s581 = smul.addr %s580, 4
        %s582 = scalar_lea.vmem %s3, %s581
        // Predicated region
        $region56: #{critic_forward.5} parent=50 // pred_check
          %p583 = pneg %p116
        $region57: #{critic_forward.5} parent=50 // pred_check_branch
          %585 = sbr.rel (%p583) target = $region59
        $region58: #{critic_forward.5} parent=50 // pred_region
          %s586 = smul.u32 8, %s19
        $region59: #{critic_forward.5} parent=50 // pred_fallthru
          _
      $region51: #{critic_forward.5} parent=5 // pred_fallthru
        _
      %p587 = scmp.le.s32.totalorder 2, %s9
      // Predicated region
      $region60: #{critic_forward.5} parent=5 // pred_check
        %p588 = pneg %p587
      $region61: #{critic_forward.5} parent=5 // pred_check_branch
        %590 = sbr.rel (%p588) target = $region63
      $region62: #{critic_forward.5} parent=5 // pred_region
        %s591 = ssub.s32 %s9, 2
        // Predicated region
        $region64: #{critic_forward.5} parent=62 // pred_check
          %p592 = pneg %p122
        $region65: #{critic_forward.5} parent=62 // pred_check_branch
          %594 = sbr.rel (%p592) target = $region67
        $region66: #{critic_forward.5} parent=62 // pred_region
          %s595 = smul.u32 8, %s21
          %p596 = scmp.lt.s32.totalorder %s20, 1
          %s597 = scalar_select %p596, %s20, 1
          %p598 = scmp.lt.s32.totalorder %s595, 31
          %s599 = scalar_select %p598, %s595, 31
          %s600 = smul.addr %s597, 32
          %s601 = sadd.s32 %s599, %s600
          %s602 = smul.addr %s601, 4
          %s603 = scalar_lea.vmem %s3, %s602
        $region67: #{critic_forward.5} parent=62 // pred_fallthru
          _
      $region63: #{critic_forward.5} parent=5 // pred_fallthru
        _
    $region6: #{critic_forward.5} parent=1 // loop_footer
      %s13 = sadd.s32 1, %s9
    $region7: #{critic_forward.5} parent=1 // loop_footer_branch
      %8 = sbr.rel target = $region3
    $region8: #{critic_forward.5} parent=1 // loop_exit
      _

// kernel: critic_forward.6
$region0: #{critic_forward.6}
  #allocation0 [shape = 'u32[]', space=smem, size = 0x4, offset = 0x4, fixed_abs, tag = 'smem constant byte address 0x4 - core index']
  #allocation1 [shape = 'u32[72,128]{1,0:T(1,128)}', space=vmem, size = 0x9000, scoped, tag = 'internal scratch']
  %s0 = inlined_call_operand.vmem [shape: bf16[2,64,1024], index: 0, kind: input, shape index: {}]
  %s1 = inlined_call_operand.vmem [shape: bf16[8,64], index: 1, kind: input, shape index: {}]
  %s2 = inlined_call_operand.vmem [shape: f32[8,1], index: 2, kind: input, shape index: {}]
  %s3 = inlined_call_operand.vmem [shape: f32[8,1], index: 3, kind: input, shape index: {}]
  %s4 = inlined_call_operand.vmem [shape: f32[2,8,1024], index: 4, kind: output, shape index: {}]
  %s5 = sld [smem:[#allocation0]]
  $region49: #{critic_forward.6} parent=0
    _
  %s7 = ssub.s32 1, %s5
  %s8 = scalar_select 0, %s7, %s5
  loop: start=0, step=1, limit=4
  $region2: #{critic_forward.6} parent=0 // loop_pre_header
    _
  $region3: #{critic_forward.6} parent=0 // loop_header
    %s10 = sphi 0, %s14
    %p11 = scmp.ge.s32.totalorder %s10, 4
    %s17 = sphi 0, %s29
    %s18 = sphi 0, %s25
    %s19 = sphi 0, %s17
    %s20 = sphi 0, %s18
    %s21 = sphi 0, %s19
    %s22 = sphi 0, %s20
    %s34 = sphi 0, %s36
    %s37 = sphi 0, %s34
    %s38 = sphi 0, %s37
    %s54 = sphi 0, %s38
    %s58 = sphi 0, %s58
    %s60 = sphi 0, %s58
    %s61 = sphi 0, %s60
    %s75 = sphi 0, %s61
    %s79 = sphi 0, %s79
    %s81 = sphi 0, %s79
    %s82 = sphi 0, %s81
    %s96 = sphi 0, %s82
    %s100 = sphi 0, %s100
    %s102 = sphi 0, %s100
    %s103 = sphi 0, %s102
    %s117 = sphi 0, %s103
    %s125 = sphi 0, %s127
    %s128 = sphi 0, %s125
    %s129 = sphi 0, %s128
    %s145 = sphi 0, %s129
  $region4: #{critic_forward.6} parent=0 // loop_header_branch
    %13 = sbr.rel (%p11) target = $region8
  $region5: #{critic_forward.6} parent=0 // loop_body
    %s15 = ssub.s32 %s10, 1
    %s16 = ssub.s32 %s10, 2
    %s23 = sadd.s32 1, %s18
    %p24 = scmp.ge.s32.totalorder %s23, 1
    %s25 = scalar_select %p24, 0, %s23
    %s26 = sadd.s32 1, %s17
    %s27 = scalar_select %p24, %s26, %s17
    %p28 = scmp.ge.s32.totalorder %s27, 2
    %s29 = scalar_select %p28, 0, %s27
    %s30 = ssub.s32 %s17, %s29
    %s31 = ssub.s32 %s18, %s25
    %s32 = sor.u32 %s30, %s31
    %p33 = scmp.eq.s32.totalorder %s32, 0
    %s35 = sadd.s32 %s34, 1
    %s36 = scalar_select %p33, %s34, %s35
    %p39 = pneg %p33
    %p40 = scmp.eq.s32.totalorder %s10, 1
    %p41 = por %p39, %p40
    %p42 = scmp.ne.s32.totalorder %s34, %s37
    %p43 = scmp.eq.s32.totalorder %s10, 0
    %p44 = por %p42, %p43
    %p45 = scmp.ne.s32.totalorder %s34, %s37
    %p46 = scmp.eq.s32.totalorder %s15, 1
    %p47 = por %p45, %p46
    %p48 = scmp.ne.s32.totalorder %s37, %s38
    %p49 = scmp.eq.s32.totalorder %s15, 0
    %p50 = por %p48, %p49
    %p51 = scmp.ne.s32.totalorder %s37, %s38
    %p52 = scmp.eq.s32.totalorder %s16, 1
    %p53 = por %p51, %p52
    %p55 = scmp.ne.s32.totalorder %s38, %s54
    %p56 = scmp.eq.s32.totalorder %s16, 0
    %p57 = por %p55, %p56
    %s59 = sadd.s32 %s58, 1
    %p62 = scmp.eq.s32.totalorder %s10, 1
    %p63 = scmp.ne.s32.totalorder %s58, %s60
    %p64 = scmp.eq.s32.totalorder %s10, 0
    %p65 = por %p63, %p64
    %p66 = scmp.ne.s32.totalorder %s58, %s60
    %p67 = scmp.eq.s32.totalorder %s15, 1
    %p68 = por %p66, %p67
    %p69 = scmp.ne.s32.totalorder %s60, %s61
    %p70 = scmp.eq.s32.totalorder %s15, 0
    %p71 = por %p69, %p70
    %p72 = scmp.ne.s32.totalorder %s60, %s61
    %p73 = scmp.eq.s32.totalorder %s16, 1
    %p74 = por %p72, %p73
    %p76 = scmp.ne.s32.totalorder %s61, %s75
    %p77 = scmp.eq.s32.totalorder %s16, 0
    %p78 = por %p76, %p77
    %s80 = sadd.s32 %s79, 1
    %p83 = scmp.eq.s32.totalorder %s10, 1
    %p84 = scmp.ne.s32.totalorder %s79, %s81
    %p85 = scmp.eq.s32.totalorder %s10, 0
    %p86 = por %p84, %p85
    %p87 = scmp.ne.s32.totalorder %s79, %s81
    %p88 = scmp.eq.s32.totalorder %s15, 1
    %p89 = por %p87, %p88
    %p90 = scmp.ne.s32.totalorder %s81, %s82
    %p91 = scmp.eq.s32.totalorder %s15, 0
    %p92 = por %p90, %p91
    %p93 = scmp.ne.s32.totalorder %s81, %s82
    %p94 = scmp.eq.s32.totalorder %s16, 1
    %p95 = por %p93, %p94
    %p97 = scmp.ne.s32.totalorder %s82, %s96
    %p98 = scmp.eq.s32.totalorder %s16, 0
    %p99 = por %p97, %p98
    %s101 = sadd.s32 %s100, 1
    %p104 = scmp.eq.s32.totalorder %s10, 1
    %p105 = scmp.ne.s32.totalorder %s100, %s102
    %p106 = scmp.eq.s32.totalorder %s10, 0
    %p107 = por %p105, %p106
    %p108 = scmp.ne.s32.totalorder %s100, %s102
    %p109 = scmp.eq.s32.totalorder %s15, 1
    %p110 = por %p108, %p109
    %p111 = scmp.ne.s32.totalorder %s102, %s103
    %p112 = scmp.eq.s32.totalorder %s15, 0
    %p113 = por %p111, %p112
    %p114 = scmp.ne.s32.totalorder %s102, %s103
    %p115 = scmp.eq.s32.totalorder %s16, 1
    %p116 = por %p114, %p115
    %p118 = scmp.ne.s32.totalorder %s103, %s117
    %p119 = scmp.eq.s32.totalorder %s16, 0
    %p120 = por %p118, %p119
    %s121 = ssub.s32 %s17, %s29
    %s122 = ssub.s32 %s18, %s25
    %s123 = sor.u32 %s121, %s122
    %p124 = scmp.eq.s32.totalorder %s123, 0
    %s126 = sadd.s32 %s125, 1
    %s127 = scalar_select %p124, %s125, %s126
    %p130 = pneg %p124
    %p131 = scmp.eq.s32.totalorder %s10, 1
    %p132 = por %p130, %p131
    %p133 = scmp.ne.s32.totalorder %s125, %s128
    %p134 = scmp.eq.s32.totalorder %s10, 0
    %p135 = por %p133, %p134
    %p136 = scmp.ne.s32.totalorder %s125, %s128
    %p137 = scmp.eq.s32.totalorder %s15, 1
    %p138 = por %p136, %p137
    %p139 = scmp.ne.s32.totalorder %s128, %s129
    %p140 = scmp.eq.s32.totalorder %s15, 0
    %p141 = por %p139, %p140
    %p142 = scmp.ne.s32.totalorder %s128, %s129
    %p143 = scmp.eq.s32.totalorder %s16, 1
    %p144 = por %p142, %p143
    %p146 = scmp.ne.s32.totalorder %s129, %s145
    %p147 = scmp.eq.s32.totalorder %s16, 0
    %p148 = por %p146, %p147
    %p149 = scmp.le.s32.totalorder 1, %s10
    %p150 = scmp.lt.s32.totalorder %s10, 3
    %p151 = pnand %p149, %p150
    %p152 = pneg %p151
    // Predicated region
    $region9: #{critic_forward.6} parent=5 // pred_check
      _
    $region10: #{critic_forward.6} parent=5 // pred_check_branch
      %154 = sbr.rel (%p151) target = $region12
    $region11: #{critic_forward.6} parent=5 // pred_region
      %s155 = ssub.s32 %s10, 1
      // Predicated region
      $region13: #{critic_forward.6} parent=11 // pred_check
        %p156 = pneg %p71
      $region14: #{critic_forward.6} parent=11 // pred_check_branch
        %158 = sbr.rel (%p156) target = $region16
      $region15: #{critic_forward.6} parent=11 // pred_region
        _
      $region16: #{critic_forward.6} parent=11 // pred_fallthru
        _
      // Predicated region
      $region17: #{critic_forward.6} parent=11 // pred_check
        %p159 = pneg %p92
      $region18: #{critic_forward.6} parent=11 // pred_check_branch
        %161 = sbr.rel (%p159) target = $region20
      $region19: #{critic_forward.6} parent=11 // pred_region
        _
      $region20: #{critic_forward.6} parent=11 // pred_fallthru
        _
      // Predicated region
      $region21: #{critic_forward.6} parent=11 // pred_check
        %p162 = pneg %p113
      $region22: #{critic_forward.6} parent=11 // pred_check_branch
        %164 = sbr.rel (%p162) target = $region24
      $region23: #{critic_forward.6} parent=11 // pred_region
        _
      $region24: #{critic_forward.6} parent=11 // pred_fallthru
        _
    $region12: #{critic_forward.6} parent=5 // pred_fallthru
      _
    %p165 = scmp.lt.s32.totalorder %s10, 2
    // Predicated region
    $region25: #{critic_forward.6} parent=5 // pred_check
      %p166 = pneg %p165
    $region26: #{critic_forward.6} parent=5 // pred_check_branch
      %168 = sbr.rel (%p166) target = $region28
    $region27: #{critic_forward.6} parent=5 // pred_region
      // Predicated region
      $region29: #{critic_forward.6} parent=27 // pred_check
        %p169 = pneg %p44
      $region30: #{critic_forward.6} parent=27 // pred_check_branch
        %171 = sbr.rel (%p169) target = $region32
      $region31: #{critic_forward.6} parent=27 // pred_region
        %s172 = smul.u32 8, %s18
        %p173 = scmp.lt.s32.totalorder %s17, 1
        %s174 = scalar_select %p173, %s17, 1
        %p175 = scmp.lt.s32.totalorder %s172, 7
        %s176 = scalar_select %p175, %s172, 7
        %s177 = smul.addr %s174, 64
        %s178 = sadd.s32 %s176, %s177
        %s179 = smul.addr %s178, 4
        %s180 = scalar_lea.vmem %s0, %s179
        %s181 = smul.u32 8, %s18
      $region32: #{critic_forward.6} parent=27 // pred_fallthru
        _
    $region28: #{critic_forward.6} parent=5 // pred_fallthru
      _
    %p182 = scmp.le.s32.totalorder 1, %s10
    %p183 = scmp.lt.s32.totalorder %s10, 3
    %p184 = pnand %p182, %p183
    %p185 = pneg %p184
    // Predicated region
    $region33: #{critic_forward.6} parent=5 // pred_check
      _
    $region34: #{critic_forward.6} parent=5 // pred_check_branch
      %187 = sbr.rel (%p184) target = $region36
    $region35: #{critic_forward.6} parent=5 // pred_region
      %s188 = ssub.s32 %s10, 1
      %s189 = smul.u32 8, %s20
      %p190 = scmp.lt.s32.totalorder %s19, 1
      %s191 = scalar_select %p190, %s19, 1
      %p192 = scmp.lt.s32.totalorder %s189, 7
      %s193 = scalar_select %p192, %s189, 7
      %s194 = smul.addr %s191, 64
      %s195 = sadd.s32 %s193, %s194
      %s196 = smul.addr %s195, 4
      %s197 = scalar_lea.vmem %s0, %s196
      %p198 = pneg %p50
      %p199 = pneg %p47
      %p200 = pneg %p71
      %p201 = pneg %p68
      %p202 = pneg %p92
      %p203 = pneg %p89
      %p204 = pneg %p113
      %p205 = pneg %p110
      %p206 = pneg %p141
      %p207 = pneg %p138
      %s208 = smul.u32 8, %s20
      %p209 = scmp.lt.s32.totalorder %s19, 1
      %s210 = scalar_select %p209, %s19, 1
      %p211 = scmp.lt.s32.totalorder %s208, 7
      %s212 = scalar_select %p211, %s208, 7
      %s213 = smul.addr %s210, 8
      %s214 = sadd.s32 %s212, %s213
      %s215 = smul.addr %s214, 8
      %s216 = scalar_lea.vmem %s4, %s215
      %s217 = smul.u32 8, %s20
      %p218 = scmp.lt.s32.totalorder %s19, 1
      %s219 = scalar_select %p218, %s19, 1
      %p220 = scmp.lt.s32.totalorder %s217, 7
      %s221 = scalar_select %p220, %s217, 7
      %s222 = smul.addr %s219, 64
      %s223 = sadd.s32 %s221, %s222
      %s224 = smul.addr %s223, 4
      %s225 = scalar_lea.vmem %s0, %s224
      %s226 = smul.u32 8, %s20
      %s227 = smul.u32 8, %s20
      %p228 = scmp.lt.s32.totalorder %s19, 1
      %s229 = scalar_select %p228, %s19, 1
      %p230 = scmp.lt.s32.totalorder %s227, 7
      %s231 = scalar_select %p230, %s227, 7
      %s232 = smul.addr %s229, 8
      %s233 = sadd.s32 %s231, %s232
      %s234 = smul.addr %s233, 8
      %s235 = scalar_lea.vmem %s4, %s234
      %s236 = smul.u32 8, %s20
      %v238 = vld [vmem:[%s1] sm:$0xf]
      %v239 = vld [vmem:[%s225] sm:$0xff]
      %v240 = vld [vmem:[%s225 + $0x8] sm:$0xff]
      %v241 = vld [vmem:[%s225 + $0x10] sm:$0xff]
      %v242 = vld [vmem:[%s225 + $0x18] sm:$0xff]
      %v243 = vld [vmem:[%s225 + $0x20] sm:$0xff]
      %v244 = vld [vmem:[%s225 + $0x28] sm:$0xff]
      %v245 = vld [vmem:[%s225 + $0x30] sm:$0xff]
      %v246 = vld [vmem:[%s225 + $0x38] sm:$0xff]
      %v247 = vld [vmem:[%s225 + $0x40] sm:$0xff]
      %v248 = vld [vmem:[%s225 + $0x48] sm:$0xff]
      %v249 = vld [vmem:[%s225 + $0x50] sm:$0xff]
      %v250 = vld [vmem:[%s225 + $0x58] sm:$0xff]
      %v251 = vld [vmem:[%s225 + $0x60] sm:$0xff]
      %v252 = vld [vmem:[%s225 + $0x68] sm:$0xff]
      %v253 = vld [vmem:[%s225 + $0x70] sm:$0xff]
      %v254 = vld [vmem:[%s225 + $0x78] sm:$0xff]
      %v255 = vld [vmem:[%s225 + $0x80] sm:$0xff]
      %v256 = vld [vmem:[%s225 + $0x88] sm:$0xff]
      %v257 = vld [vmem:[%s225 + $0x90] sm:$0xff]
      %v258 = vld [vmem:[%s225 + $0x98] sm:$0xff]
      %v259 = vld [vmem:[%s225 + $0xa0] sm:$0xff]
      %v260 = vld [vmem:[%s225 + $0xa8] sm:$0xff]
      %v261 = vld [vmem:[%s225 + $0xb0] sm:$0xff]
      %v262 = vld [vmem:[%s225 + $0xb8] sm:$0xff]
      %v263 = vld [vmem:[%s225 + $0xc0] sm:$0xff]
      %v264 = vld [vmem:[%s225 + $0xc8] sm:$0xff]
      %v265 = vld [vmem:[%s225 + $0xd0] sm:$0xff]
      %v266 = vld [vmem:[%s225 + $0xd8] sm:$0xff]
      %v267 = vld [vmem:[%s225 + $0xe0] sm:$0xff]
      %v268 = vld [vmem:[%s225 + $0xe8] sm:$0xff]
      %v269 = vld [vmem:[%s225 + $0xf0] sm:$0xff]
      %v270 = vld [vmem:[%s225 + $0xf8] sm:$0xff]
      %v303 = vunpack.c.l.b16 %v239
      %v304 = vunpack.c.h.b16 %v239
      %v305 = vunpack.c.l.b16 %v240
      %v306 = vunpack.c.h.b16 %v240
      %v307 = vunpack.c.l.b16 %v241
      %v308 = vunpack.c.h.b16 %v241
      %v309 = vunpack.c.l.b16 %v242
      %v310 = vunpack.c.h.b16 %v242
      %v311 = vunpack.c.l.b16 %v243
      %v312 = vunpack.c.h.b16 %v243
      %v313 = vunpack.c.l.b16 %v244
      %v314 = vunpack.c.h.b16 %v244
      %v315 = vunpack.c.l.b16 %v245
      %v316 = vunpack.c.h.b16 %v245
      %v317 = vunpack.c.l.b16 %v246
      %v318 = vunpack.c.h.b16 %v246
      %v319 = vunpack.c.l.b16 %v247
      %v320 = vunpack.c.h.b16 %v247
      %v321 = vunpack.c.l.b16 %v248
      %v322 = vunpack.c.h.b16 %v248
      %v323 = vunpack.c.l.b16 %v249
      %v324 = vunpack.c.h.b16 %v249
      %v325 = vunpack.c.l.b16 %v250
      %v326 = vunpack.c.h.b16 %v250
      %v327 = vunpack.c.l.b16 %v251
      %v328 = vunpack.c.h.b16 %v251
      %v329 = vunpack.c.l.b16 %v252
      %v330 = vunpack.c.h.b16 %v252
      %v331 = vunpack.c.l.b16 %v253
      %v332 = vunpack.c.h.b16 %v253
      %v333 = vunpack.c.l.b16 %v254
      %v334 = vunpack.c.h.b16 %v254
      %v335 = vunpack.c.l.b16 %v255
      %v336 = vunpack.c.h.b16 %v255
      %v337 = vunpack.c.l.b16 %v256
      %v338 = vunpack.c.h.b16 %v256
      %v339 = vunpack.c.l.b16 %v257
      %v340 = vunpack.c.h.b16 %v257
      %v341 = vunpack.c.l.b16 %v258
      %v342 = vunpack.c.h.b16 %v258
      %v343 = vunpack.c.l.b16 %v259
      %v344 = vunpack.c.h.b16 %v259
      %v345 = vunpack.c.l.b16 %v260
      %v346 = vunpack.c.h.b16 %v260
      %v347 = vunpack.c.l.b16 %v261
      %v348 = vunpack.c.h.b16 %v261
      %v349 = vunpack.c.l.b16 %v262
      %v350 = vunpack.c.h.b16 %v262
      %v351 = vunpack.c.l.b16 %v263
      %v352 = vunpack.c.h.b16 %v263
      %v353 = vunpack.c.l.b16 %v264
      %v354 = vunpack.c.h.b16 %v264
      %v355 = vunpack.c.l.b16 %v265
      %v356 = vunpack.c.h.b16 %v265
      %v357 = vunpack.c.l.b16 %v266
      %v358 = vunpack.c.h.b16 %v266
      %v359 = vunpack.c.l.b16 %v267
      %v360 = vunpack.c.h.b16 %v267
      %v361 = vunpack.c.l.b16 %v268
      %v362 = vunpack.c.h.b16 %v268
      %v363 = vunpack.c.l.b16 %v269
      %v364 = vunpack.c.h.b16 %v269
      %v365 = vunpack.c.l.b16 %v270
      %v366 = vunpack.c.h.b16 %v270
      %v367 = vpack.c.b16 %v311, %v303
      %v368 = vpack.c.b16 %v312, %v304
      %v369 = vpack.c.b16 %v313, %v305
      %v370 = vpack.c.b16 %v314, %v306
      %v371 = vpack.c.b16 %v315, %v307
      %v372 = vpack.c.b16 %v316, %v308
      %v373 = vpack.c.b16 %v317, %v309
      %v374 = vpack.c.b16 %v318, %v310
      %v375 = vpack.c.b16 %v327, %v319
      %v376 = vpack.c.b16 %v328, %v320
      %v377 = vpack.c.b16 %v329, %v321
      %v378 = vpack.c.b16 %v330, %v322
      %v379 = vpack.c.b16 %v331, %v323
      %v380 = vpack.c.b16 %v332, %v324
      %v381 = vpack.c.b16 %v333, %v325
      %v382 = vpack.c.b16 %v334, %v326
      %v383 = vpack.c.b16 %v343, %v335
      %v384 = vpack.c.b16 %v344, %v336
      %v385 = vpack.c.b16 %v345, %v337
      %v386 = vpack.c.b16 %v346, %v338
      %v387 = vpack.c.b16 %v347, %v339
      %v388 = vpack.c.b16 %v348, %v340
      %v389 = vpack.c.b16 %v349, %v341
      %v390 = vpack.c.b16 %v350, %v342
      %v391 = vpack.c.b16 %v359, %v351
      %v392 = vpack.c.b16 %v360, %v352
      %v393 = vpack.c.b16 %v361, %v353
      %v394 = vpack.c.b16 %v362, %v354
      %v395 = vpack.c.b16 %v363, %v355
      %v396 = vpack.c.b16 %v364, %v356
      %v397 = vpack.c.b16 %v365, %v357
      %v398 = vpack.c.b16 %v366, %v358
      %vm431 = vcmask 523264
      %v433 = vsel %vm431, %v238, 0
      %435 = vmatpush.bf16.msra.mxu0 0
      %436 = vmatpush.bf16.msra.mxu0 0
      %437 = vmatpush.bf16.msra.mxu0 0
      %438 = vmatpush.bf16.msra.mxu0 0
      %439 = vmatpush.bf16.msra.mxu0 %v391
      %440 = vmatpush.bf16.msra.mxu0 %v383
      %441 = vmatpush.bf16.msra.mxu0 %v375
      %442 = vmatpush.bf16.msra.mxu0 %v367
      %443 = vmatmul.bf16.gmra.mxu0 %v433
      %v444 = vpop.f32.mrf.mxu0
      %v445 = vadd.f32 0.0, %v444
      %v446 = vpop.f32.mrf.mxu0
      %447 = vdwg.mxu0
      %448 = vmatpush.bf16.msra.mxu0 0
      %449 = vmatpush.bf16.msra.mxu0 0
      %450 = vmatpush.bf16.msra.mxu0 0
      %451 = vmatpush.bf16.msra.mxu0 0
      %452 = vmatpush.bf16.msra.mxu0 %v392
      %453 = vmatpush.bf16.msra.mxu0 %v384
      %454 = vmatpush.bf16.msra.mxu0 %v376
      %455 = vmatpush.bf16.msra.mxu0 %v368
      %456 = vmatmul.bf16.gmra.mxu0 %v433
      %v457 = vpop.f32.mrf.mxu0
      %v458 = vadd.f32 0.0, %v457
      %v459 = vpop.f32.mrf.mxu0
      %460 = vdwg.mxu0
      %461 = vmatpush.bf16.msra.mxu0 0
      %462 = vmatpush.bf16.msra.mxu0 0
      %463 = vmatpush.bf16.msra.mxu0 0
      %464 = vmatpush.bf16.msra.mxu0 0
      %465 = vmatpush.bf16.msra.mxu0 %v393
      %466 = vmatpush.bf16.msra.mxu0 %v385
      %467 = vmatpush.bf16.msra.mxu0 %v377
      %468 = vmatpush.bf16.msra.mxu0 %v369
      %469 = vmatmul.bf16.gmra.mxu0 %v433
      %v470 = vpop.f32.mrf.mxu0
      %v471 = vadd.f32 0.0, %v470
      %v472 = vpop.f32.mrf.mxu0
      %473 = vdwg.mxu0
      %474 = vmatpush.bf16.msra.mxu0 0
      %475 = vmatpush.bf16.msra.mxu0 0
      %476 = vmatpush.bf16.msra.mxu0 0
      %477 = vmatpush.bf16.msra.mxu0 0
      %478 = vmatpush.bf16.msra.mxu0 %v394
      %479 = vmatpush.bf16.msra.mxu0 %v386
      %480 = vmatpush.bf16.msra.mxu0 %v378
      %481 = vmatpush.bf16.msra.mxu0 %v370
      %482 = vmatmul.bf16.gmra.mxu0 %v433
      %v483 = vpop.f32.mrf.mxu0
      %v484 = vadd.f32 0.0, %v483
      %v485 = vpop.f32.mrf.mxu0
      %486 = vdwg.mxu0
      %487 = vmatpush.bf16.msra.mxu0 0
      %488 = vmatpush.bf16.msra.mxu0 0
      %489 = vmatpush.bf16.msra.mxu0 0
      %490 = vmatpush.bf16.msra.mxu0 0
      %491 = vmatpush.bf16.msra.mxu0 %v395
      %492 = vmatpush.bf16.msra.mxu0 %v387
      %493 = vmatpush.bf16.msra.mxu0 %v379
      %494 = vmatpush.bf16.msra.mxu0 %v371
      %495 = vmatmul.bf16.gmra.mxu0 %v433
      %v496 = vpop.f32.mrf.mxu0
      %v497 = vadd.f32 0.0, %v496
      %v498 = vpop.f32.mrf.mxu0
      %499 = vdwg.mxu0
      %500 = vmatpush.bf16.msra.mxu0 0
      %501 = vmatpush.bf16.msra.mxu0 0
      %502 = vmatpush.bf16.msra.mxu0 0
      %503 = vmatpush.bf16.msra.mxu0 0
      %504 = vmatpush.bf16.msra.mxu0 %v396
      %505 = vmatpush.bf16.msra.mxu0 %v388
      %506 = vmatpush.bf16.msra.mxu0 %v380
      %507 = vmatpush.bf16.msra.mxu0 %v372
      %508 = vmatmul.bf16.gmra.mxu0 %v433
      %v509 = vpop.f32.mrf.mxu0
      %v510 = vadd.f32 0.0, %v509
      %v511 = vpop.f32.mrf.mxu0
      %512 = vdwg.mxu0
      %513 = vmatpush.bf16.msra.mxu0 0
      %514 = vmatpush.bf16.msra.mxu0 0
      %515 = vmatpush.bf16.msra.mxu0 0
      %516 = vmatpush.bf16.msra.mxu0 0
      %517 = vmatpush.bf16.msra.mxu0 %v397
      %518 = vmatpush.bf16.msra.mxu0 %v389
      %519 = vmatpush.bf16.msra.mxu0 %v381
      %520 = vmatpush.bf16.msra.mxu0 %v373
      %521 = vmatmul.bf16.gmra.mxu0 %v433
      %v522 = vpop.f32.mrf.mxu0
      %v523 = vadd.f32 0.0, %v522
      %v524 = vpop.f32.mrf.mxu0
      %525 = vdwg.mxu0
      %526 = vmatpush.bf16.msra.mxu0 0
      %527 = vmatpush.bf16.msra.mxu0 0
      %528 = vmatpush.bf16.msra.mxu0 0
      %529 = vmatpush.bf16.msra.mxu0 0
      %530 = vmatpush.bf16.msra.mxu0 %v398
      %531 = vmatpush.bf16.msra.mxu0 %v390
      %532 = vmatpush.bf16.msra.mxu0 %v382
      %533 = vmatpush.bf16.msra.mxu0 %v374
      %534 = vmatmul.bf16.gmra.mxu0 %v433
      %v535 = vpop.f32.mrf.mxu0
      %v536 = vadd.f32 0.0, %v535
      %v537 = vpop.f32.mrf.mxu0
      %538 = vdwg.mxu0
      %v539 = vadd.f32 %v445, %v458
      %v540 = vadd.f32 %v539, %v471
      %v541 = vadd.f32 %v540, %v484
      %v542 = vadd.f32 %v541, %v497
      %v543 = vadd.f32 %v542, %v510
      %v544 = vadd.f32 %v543, %v523
      %v545 = vadd.f32 %v544, %v536
      %546 = vadd.xlane.f32.xlu0 %v545
      %v547 = vpop.xlane.xlu0 %546
      %v548 = vrcp.pop 1024.0
      %v549 = vmul.f32 1024.0, %v548
      %v550 = vsub.f32 1.0, %v549
      %v551 = vmul.f32 %v548, %v550
      %v552 = vadd.f32 %v548, %v551
      %vm553 = vweird.f32 %v548
      %v554 = vsel %vm553, %v548, %v552
      %v555 = vmul.f32 %v547, %v554
      %v556 = vsub.f32 %v445, %v555
      %v557 = vsub.f32 %v458, %v555
      %v558 = vsub.f32 %v471, %v555
      %v559 = vsub.f32 %v484, %v555
      %v560 = vsub.f32 %v497, %v555
      %v561 = vsub.f32 %v510, %v555
      %v562 = vsub.f32 %v523, %v555
      %v563 = vsub.f32 %v536, %v555
      %v564 = vmul.f32 %v556, %v556
      %v565 = vmul.f32 %v557, %v557
      %v566 = vmul.f32 %v558, %v558
      %v567 = vmul.f32 %v559, %v559
      %v568 = vmul.f32 %v560, %v560
      %v569 = vmul.f32 %v561, %v561
      %v570 = vmul.f32 %v562, %v562
      %v571 = vmul.f32 %v563, %v563
      %v572 = vadd.f32 %v564, %v565
      %v573 = vadd.f32 %v572, %v566
      %v574 = vadd.f32 %v573, %v567
      %v575 = vadd.f32 %v574, %v568
      %v576 = vadd.f32 %v575, %v569
      %v577 = vadd.f32 %v576, %v570
      %v578 = vadd.f32 %v577, %v571
      %579 = vadd.xlane.f32.xlu0 %v578
      %v580 = vpop.xlane.xlu0 %579
      %v581 = vmul.f32 %v580, %v554
      %v582 = vadd.f32 %v581, 1e-05
      %v583 = vrsqrt.pop %v582
      %v584 = vmul.f32 %v583, %v582
      %v585 = vmul.f32 %v584, %v583
      %v586 = vmul.f32 0.5, %v585
      %v587 = vsub.f32 1.5, %v586
      %v588 = vmul.f32 %v583, %v587
      %vm589 = vweird.f32 %v582
      %vm590 = vweird.f32 %v583
      %vm591 = vmor %vm589, %vm590
      %v592 = vsel %vm591, %v583, %v588
      %v593 = vmul.f32 %v556, %v592
      %v594 = vmul.f32 %v557, %v592
      %v595 = vmul.f32 %v558, %v592
      %v596 = vmul.f32 %v559, %v592
      %v597 = vmul.f32 %v560, %v592
      %v598 = vmul.f32 %v561, %v592
      %v599 = vmul.f32 %v562, %v592
      %v600 = vmul.f32 %v563, %v592
      %v601 = vld [vmem:[%s2] sm:$0xff]
      %603 = vset.pattern.permute.xlu0 0
      %604 = vperm.xlu0 %603, %v601
      %v605 = vpop.permute.xlu0 %604
      %v607 = vmul.f32 %v593, %v605
      %v608 = vmul.f32 %v594, %v605
      %v609 = vmul.f32 %v595, %v605
      %v610 = vmul.f32 %v596, %v605
      %v611 = vmul.f32 %v597, %v605
      %v612 = vmul.f32 %v598, %v605
      %v613 = vmul.f32 %v599, %v605
      %v614 = vmul.f32 %v600, %v605
      %v615 = vld [vmem:[%s3] sm:$0xff]
      %617 = vset.pattern.permute.xlu0 0
      %618 = vperm.xlu0 %617, %v615
      %v619 = vpop.permute.xlu0 %618
      %v621 = vadd.f32 %v607, %v619
      %v622 = vadd.f32 %v608, %v619
      %v623 = vadd.f32 %v609, %v619
      %v624 = vadd.f32 %v610, %v619
      %v625 = vadd.f32 %v611, %v619
      %v626 = vadd.f32 %v612, %v619
      %v627 = vadd.f32 %v613, %v619
      %v628 = vadd.f32 %v614, %v619
      %vm629 = vcmp.gt.f32.partialorder %v621, 0.0
      %vm630 = vcmp.gt.f32.partialorder %v622, 0.0
      %vm631 = vcmp.gt.f32.partialorder %v623, 0.0
      %vm632 = vcmp.gt.f32.partialorder %v624, 0.0
      %vm633 = vcmp.gt.f32.partialorder %v625, 0.0
      %vm634 = vcmp.gt.f32.partialorder %v626, 0.0
      %vm635 = vcmp.gt.f32.partialorder %v627, 0.0
      %vm636 = vcmp.gt.f32.partialorder %v628, 0.0
      %v637 = vmul.f32 %v621, 0.2
      %v638 = vmul.f32 %v622, 0.2
      %v639 = vmul.f32 %v623, 0.2
      %v640 = vmul.f32 %v624, 0.2
      %v641 = vmul.f32 %v625, 0.2
      %v642 = vmul.f32 %v626, 0.2
      %v643 = vmul.f32 %v627, 0.2
      %v644 = vmul.f32 %v628, 0.2
      %v645 = vsel %vm629, %v621, %v637
      %v646 = vsel %vm630, %v622, %v638
      %v647 = vsel %vm631, %v623, %v639
      %v648 = vsel %vm632, %v624, %v640
      %v649 = vsel %vm633, %v625, %v641
      %v650 = vsel %vm634, %v626, %v642
      %v651 = vsel %vm635, %v627, %v643
      %v652 = vsel %vm636, %v628, %v644
      %653 = vst [vmem:[%s235] sm:$0xff] %v645
      %654 = vst [vmem:[%s235 + $0x8] sm:$0xff] %v646
      %655 = vst [vmem:[%s235 + $0x10] sm:$0xff] %v647
      %656 = vst [vmem:[%s235 + $0x18] sm:$0xff] %v648
      %657 = vst [vmem:[%s235 + $0x20] sm:$0xff] %v649
      %658 = vst [vmem:[%s235 + $0x28] sm:$0xff] %v650
      %659 = vst [vmem:[%s235 + $0x30] sm:$0xff] %v651
      %660 = vst [vmem:[%s235 + $0x38] sm:$0xff] %v652
      %s661 = smul.u32 8, %s20
      %p662 = scmp.lt.s32.totalorder %s19, 1
      %s663 = scalar_select %p662, %s19, 1
      %p664 = scmp.lt.s32.totalorder %s661, 7
      %s665 = scalar_select %p664, %s661, 7
      %s666 = smul.addr %s663, 8
      %s667 = sadd.s32 %s665, %s666
      %s668 = smul.addr %s667, 8
      %s669 = scalar_lea.vmem %s4, %s668
      // Predicated region
      $region37: #{critic_forward.6} parent=35 // pred_check
        %p670 = pneg %p138
      $region38: #{critic_forward.6} parent=35 // pred_check_branch
        %672 = sbr.rel (%p670) target = $region40
      $region39: #{critic_forward.6} parent=35 // pred_region
        %s673 = smul.u32 8, %s20
      $region40: #{critic_forward.6} parent=35 // pred_fallthru
        _
    $region36: #{critic_forward.6} parent=5 // pred_fallthru
      _
    %p674 = scmp.le.s32.totalorder 2, %s10
    // Predicated region
    $region41: #{critic_forward.6} parent=5 // pred_check
      %p675 = pneg %p674
    $region42: #{critic_forward.6} parent=5 // pred_check_branch
      %677 = sbr.rel (%p675) target = $region44
    $region43: #{critic_forward.6} parent=5 // pred_region
      %s678 = ssub.s32 %s10, 2
      // Predicated region
      $region45: #{critic_forward.6} parent=43 // pred_check
        %p679 = pneg %p144
      $region46: #{critic_forward.6} parent=43 // pred_check_branch
        %681 = sbr.rel (%p679) target = $region48
      $region47: #{critic_forward.6} parent=43 // pred_region
        %s682 = smul.u32 8, %s22
        %p683 = scmp.lt.s32.totalorder %s21, 1
        %s684 = scalar_select %p683, %s21, 1
        %p685 = scmp.lt.s32.totalorder %s682, 7
        %s686 = scalar_select %p685, %s682, 7
        %s687 = smul.addr %s684, 8
        %s688 = sadd.s32 %s686, %s687
        %s689 = smul.addr %s688, 8
        %s690 = scalar_lea.vmem %s4, %s689
      $region48: #{critic_forward.6} parent=43 // pred_fallthru
        _
    $region44: #{critic_forward.6} parent=5 // pred_fallthru
      _
  $region6: #{critic_forward.6} parent=0 // loop_footer
    %s14 = sadd.s32 1, %s10
  $region7: #{critic_forward.6} parent=0 // loop_footer_branch
    %9 = sbr.rel target = $region3
  $region8: #{critic_forward.6} parent=0 // loop_exit
    _

// kernel: critic_forward.7
$region0: #{critic_forward.7}
  #allocation0 [shape = 'u32[]', space=smem, size = 0x4, offset = 0x4, fixed_abs, tag = 'smem constant byte address 0x4 - core index']
  #allocation1 [shape = 'u32[72,128]{1,0:T(1,128)}', space=vmem, size = 0x9000, scoped, tag = 'internal scratch']
  %s0 = inlined_call_operand.vmem [shape: bf16[2,128,256], index: 0, kind: input, shape index: {}]
  %s1 = inlined_call_operand.vmem [shape: bf16[16,128], index: 1, kind: input, shape index: {}]
  %s2 = inlined_call_operand.vmem [shape: f32[16,1], index: 2, kind: input, shape index: {}]
  %s3 = inlined_call_operand.vmem [shape: f32[16,1], index: 3, kind: input, shape index: {}]
  %s4 = inlined_call_operand.vmem [shape: f32[2,16,256], index: 4, kind: output, shape index: {}]
  %s5 = sld [smem:[#allocation0]]
  $region49: #{critic_forward.7} parent=0
    _
  %s7 = ssub.s32 1, %s5
  %s8 = scalar_select 0, %s7, %s5
  loop: start=0, step=1, limit=4
  $region2: #{critic_forward.7} parent=0 // loop_pre_header
    _
  $region3: #{critic_forward.7} parent=0 // loop_header
    %s10 = sphi 0, %s14
    %p11 = scmp.ge.s32.totalorder %s10, 4
    %s17 = sphi 0, %s29
    %s18 = sphi 0, %s25
    %s19 = sphi 0, %s17
    %s20 = sphi 0, %s18
    %s21 = sphi 0, %s19
    %s22 = sphi 0, %s20
    %s34 = sphi 0, %s36
    %s37 = sphi 0, %s34
    %s38 = sphi 0, %s37
    %s54 = sphi 0, %s38
    %s58 = sphi 0, %s58
    %s60 = sphi 0, %s58
    %s61 = sphi 0, %s60
    %s75 = sphi 0, %s61
    %s79 = sphi 0, %s79
    %s81 = sphi 0, %s79
    %s82 = sphi 0, %s81
    %s96 = sphi 0, %s82
    %s100 = sphi 0, %s100
    %s102 = sphi 0, %s100
    %s103 = sphi 0, %s102
    %s117 = sphi 0, %s103
    %s125 = sphi 0, %s127
    %s128 = sphi 0, %s125
    %s129 = sphi 0, %s128
    %s145 = sphi 0, %s129
  $region4: #{critic_forward.7} parent=0 // loop_header_branch
    %13 = sbr.rel (%p11) target = $region8
  $region5: #{critic_forward.7} parent=0 // loop_body
    %s15 = ssub.s32 %s10, 1
    %s16 = ssub.s32 %s10, 2
    %s23 = sadd.s32 1, %s18
    %p24 = scmp.ge.s32.totalorder %s23, 1
    %s25 = scalar_select %p24, 0, %s23
    %s26 = sadd.s32 1, %s17
    %s27 = scalar_select %p24, %s26, %s17
    %p28 = scmp.ge.s32.totalorder %s27, 2
    %s29 = scalar_select %p28, 0, %s27
    %s30 = ssub.s32 %s17, %s29
    %s31 = ssub.s32 %s18, %s25
    %s32 = sor.u32 %s30, %s31
    %p33 = scmp.eq.s32.totalorder %s32, 0
    %s35 = sadd.s32 %s34, 1
    %s36 = scalar_select %p33, %s34, %s35
    %p39 = pneg %p33
    %p40 = scmp.eq.s32.totalorder %s10, 1
    %p41 = por %p39, %p40
    %p42 = scmp.ne.s32.totalorder %s34, %s37
    %p43 = scmp.eq.s32.totalorder %s10, 0
    %p44 = por %p42, %p43
    %p45 = scmp.ne.s32.totalorder %s34, %s37
    %p46 = scmp.eq.s32.totalorder %s15, 1
    %p47 = por %p45, %p46
    %p48 = scmp.ne.s32.totalorder %s37, %s38
    %p49 = scmp.eq.s32.totalorder %s15, 0
    %p50 = por %p48, %p49
    %p51 = scmp.ne.s32.totalorder %s37, %s38
    %p52 = scmp.eq.s32.totalorder %s16, 1
    %p53 = por %p51, %p52
    %p55 = scmp.ne.s32.totalorder %s38, %s54
    %p56 = scmp.eq.s32.totalorder %s16, 0
    %p57 = por %p55, %p56
    %s59 = sadd.s32 %s58, 1
    %p62 = scmp.eq.s32.totalorder %s10, 1
    %p63 = scmp.ne.s32.totalorder %s58, %s60
    %p64 = scmp.eq.s32.totalorder %s10, 0
    %p65 = por %p63, %p64
    %p66 = scmp.ne.s32.totalorder %s58, %s60
    %p67 = scmp.eq.s32.totalorder %s15, 1
    %p68 = por %p66, %p67
    %p69 = scmp.ne.s32.totalorder %s60, %s61
    %p70 = scmp.eq.s32.totalorder %s15, 0
    %p71 = por %p69, %p70
    %p72 = scmp.ne.s32.totalorder %s60, %s61
    %p73 = scmp.eq.s32.totalorder %s16, 1
    %p74 = por %p72, %p73
    %p76 = scmp.ne.s32.totalorder %s61, %s75
    %p77 = scmp.eq.s32.totalorder %s16, 0
    %p78 = por %p76, %p77
    %s80 = sadd.s32 %s79, 1
    %p83 = scmp.eq.s32.totalorder %s10, 1
    %p84 = scmp.ne.s32.totalorder %s79, %s81
    %p85 = scmp.eq.s32.totalorder %s10, 0
    %p86 = por %p84, %p85
    %p87 = scmp.ne.s32.totalorder %s79, %s81
    %p88 = scmp.eq.s32.totalorder %s15, 1
    %p89 = por %p87, %p88
    %p90 = scmp.ne.s32.totalorder %s81, %s82
    %p91 = scmp.eq.s32.totalorder %s15, 0
    %p92 = por %p90, %p91
    %p93 = scmp.ne.s32.totalorder %s81, %s82
    %p94 = scmp.eq.s32.totalorder %s16, 1
    %p95 = por %p93, %p94
    %p97 = scmp.ne.s32.totalorder %s82, %s96
    %p98 = scmp.eq.s32.totalorder %s16, 0
    %p99 = por %p97, %p98
    %s101 = sadd.s32 %s100, 1
    %p104 = scmp.eq.s32.totalorder %s10, 1
    %p105 = scmp.ne.s32.totalorder %s100, %s102
    %p106 = scmp.eq.s32.totalorder %s10, 0
    %p107 = por %p105, %p106
    %p108 = scmp.ne.s32.totalorder %s100, %s102
    %p109 = scmp.eq.s32.totalorder %s15, 1
    %p110 = por %p108, %p109
    %p111 = scmp.ne.s32.totalorder %s102, %s103
    %p112 = scmp.eq.s32.totalorder %s15, 0
    %p113 = por %p111, %p112
    %p114 = scmp.ne.s32.totalorder %s102, %s103
    %p115 = scmp.eq.s32.totalorder %s16, 1
    %p116 = por %p114, %p115
    %p118 = scmp.ne.s32.totalorder %s103, %s117
    %p119 = scmp.eq.s32.totalorder %s16, 0
    %p120 = por %p118, %p119
    %s121 = ssub.s32 %s17, %s29
    %s122 = ssub.s32 %s18, %s25
    %s123 = sor.u32 %s121, %s122
    %p124 = scmp.eq.s32.totalorder %s123, 0
    %s126 = sadd.s32 %s125, 1
    %s127 = scalar_select %p124, %s125, %s126
    %p130 = pneg %p124
    %p131 = scmp.eq.s32.totalorder %s10, 1
    %p132 = por %p130, %p131
    %p133 = scmp.ne.s32.totalorder %s125, %s128
    %p134 = scmp.eq.s32.totalorder %s10, 0
    %p135 = por %p133, %p134
    %p136 = scmp.ne.s32.totalorder %s125, %s128
    %p137 = scmp.eq.s32.totalorder %s15, 1
    %p138 = por %p136, %p137
    %p139 = scmp.ne.s32.totalorder %s128, %s129
    %p140 = scmp.eq.s32.totalorder %s15, 0
    %p141 = por %p139, %p140
    %p142 = scmp.ne.s32.totalorder %s128, %s129
    %p143 = scmp.eq.s32.totalorder %s16, 1
    %p144 = por %p142, %p143
    %p146 = scmp.ne.s32.totalorder %s129, %s145
    %p147 = scmp.eq.s32.totalorder %s16, 0
    %p148 = por %p146, %p147
    %p149 = scmp.le.s32.totalorder 1, %s10
    %p150 = scmp.lt.s32.totalorder %s10, 3
    %p151 = pnand %p149, %p150
    %p152 = pneg %p151
    // Predicated region
    $region9: #{critic_forward.7} parent=5 // pred_check
      _
    $region10: #{critic_forward.7} parent=5 // pred_check_branch
      %154 = sbr.rel (%p151) target = $region12
    $region11: #{critic_forward.7} parent=5 // pred_region
      %s155 = ssub.s32 %s10, 1
      // Predicated region
      $region13: #{critic_forward.7} parent=11 // pred_check
        %p156 = pneg %p71
      $region14: #{critic_forward.7} parent=11 // pred_check_branch
        %158 = sbr.rel (%p156) target = $region16
      $region15: #{critic_forward.7} parent=11 // pred_region
        _
      $region16: #{critic_forward.7} parent=11 // pred_fallthru
        _
      // Predicated region
      $region17: #{critic_forward.7} parent=11 // pred_check
        %p159 = pneg %p92
      $region18: #{critic_forward.7} parent=11 // pred_check_branch
        %161 = sbr.rel (%p159) target = $region20
      $region19: #{critic_forward.7} parent=11 // pred_region
        _
      $region20: #{critic_forward.7} parent=11 // pred_fallthru
        _
      // Predicated region
      $region21: #{critic_forward.7} parent=11 // pred_check
        %p162 = pneg %p113
      $region22: #{critic_forward.7} parent=11 // pred_check_branch
        %164 = sbr.rel (%p162) target = $region24
      $region23: #{critic_forward.7} parent=11 // pred_region
        _
      $region24: #{critic_forward.7} parent=11 // pred_fallthru
        _
    $region12: #{critic_forward.7} parent=5 // pred_fallthru
      _
    %p165 = scmp.lt.s32.totalorder %s10, 2
    // Predicated region
    $region25: #{critic_forward.7} parent=5 // pred_check
      %p166 = pneg %p165
    $region26: #{critic_forward.7} parent=5 // pred_check_branch
      %168 = sbr.rel (%p166) target = $region28
    $region27: #{critic_forward.7} parent=5 // pred_region
      // Predicated region
      $region29: #{critic_forward.7} parent=27 // pred_check
        %p169 = pneg %p44
      $region30: #{critic_forward.7} parent=27 // pred_check_branch
        %171 = sbr.rel (%p169) target = $region32
      $region31: #{critic_forward.7} parent=27 // pred_region
        %s172 = smul.u32 2, %s18
        %p173 = scmp.lt.s32.totalorder %s17, 1
        %s174 = scalar_select %p173, %s17, 1
        %p175 = scmp.lt.s32.totalorder %s172, 1
        %s176 = scalar_select %p175, %s172, 1
        %s177 = smul.addr %s174, 32
        %s178 = sadd.s32 %s176, %s177
        %s179 = smul.addr %s178, 4
        %s180 = scalar_lea.vmem %s0, %s179
        %s181 = smul.u32 2, %s18
      $region32: #{critic_forward.7} parent=27 // pred_fallthru
        _
    $region28: #{critic_forward.7} parent=5 // pred_fallthru
      _
    %p182 = scmp.le.s32.totalorder 1, %s10
    %p183 = scmp.lt.s32.totalorder %s10, 3
    %p184 = pnand %p182, %p183
    %p185 = pneg %p184
    // Predicated region
    $region33: #{critic_forward.7} parent=5 // pred_check
      _
    $region34: #{critic_forward.7} parent=5 // pred_check_branch
      %187 = sbr.rel (%p184) target = $region36
    $region35: #{critic_forward.7} parent=5 // pred_region
      %s188 = ssub.s32 %s10, 1
      %s189 = smul.u32 2, %s20
      %p190 = scmp.lt.s32.totalorder %s19, 1
      %s191 = scalar_select %p190, %s19, 1
      %p192 = scmp.lt.s32.totalorder %s189, 1
      %s193 = scalar_select %p192, %s189, 1
      %s194 = smul.addr %s191, 32
      %s195 = sadd.s32 %s193, %s194
      %s196 = smul.addr %s195, 4
      %s197 = scalar_lea.vmem %s0, %s196
      %p198 = pneg %p50
      %p199 = pneg %p47
      %p200 = pneg %p71
      %p201 = pneg %p68
      %p202 = pneg %p92
      %p203 = pneg %p89
      %p204 = pneg %p113
      %p205 = pneg %p110
      %p206 = pneg %p141
      %p207 = pneg %p138
      %s208 = smul.u32 2, %s20
      %p209 = scmp.lt.s32.totalorder %s19, 1
      %s210 = scalar_select %p209, %s19, 1
      %p211 = scmp.lt.s32.totalorder %s208, 1
      %s212 = scalar_select %p211, %s208, 1
      %s213 = smul.addr %s210, 4
      %s214 = sadd.s32 %s212, %s213
      %s215 = smul.addr %s214, 8
      %s216 = scalar_lea.vmem %s4, %s215
      %s217 = smul.u32 2, %s20
      %p218 = scmp.lt.s32.totalorder %s19, 1
      %s219 = scalar_select %p218, %s19, 1
      %p220 = scmp.lt.s32.totalorder %s217, 1
      %s221 = scalar_select %p220, %s217, 1
      %s222 = smul.addr %s219, 32
      %s223 = sadd.s32 %s221, %s222
      %s224 = smul.addr %s223, 4
      %s225 = scalar_lea.vmem %s0, %s224
      %s226 = smul.u32 2, %s20
      %s227 = smul.u32 2, %s20
      %p228 = scmp.lt.s32.totalorder %s19, 1
      %s229 = scalar_select %p228, %s19, 1
      %p230 = scmp.lt.s32.totalorder %s227, 1
      %s231 = scalar_select %p230, %s227, 1
      %s232 = smul.addr %s229, 4
      %s233 = sadd.s32 %s231, %s232
      %s234 = smul.addr %s233, 8
      %s235 = scalar_lea.vmem %s4, %s234
      %s236 = smul.u32 2, %s20
      %v237 = vld [vmem:[%s1] sm:$0xf]
      %v238 = vld [vmem:[%s1 + $0x4] sm:$0xf]
      %v239 = vld [vmem:[%s225] sm:$0xff]
      %v240 = vld [vmem:[%s225 + $0x8] sm:$0xff]
      %v241 = vld [vmem:[%s225 + $0x10] sm:$0xff]
      %v242 = vld [vmem:[%s225 + $0x18] sm:$0xff]
      %v243 = vld [vmem:[%s225 + $0x20] sm:$0xff]
      %v244 = vld [vmem:[%s225 + $0x28] sm:$0xff]
      %v245 = vld [vmem:[%s225 + $0x30] sm:$0xff]
      %v246 = vld [vmem:[%s225 + $0x38] sm:$0xff]
      %v247 = vld [vmem:[%s225 + $0x40] sm:$0xff]
      %v248 = vld [vmem:[%s225 + $0x48] sm:$0xff]
      %v249 = vld [vmem:[%s225 + $0x50] sm:$0xff]
      %v250 = vld [vmem:[%s225 + $0x58] sm:$0xff]
      %v251 = vld [vmem:[%s225 + $0x60] sm:$0xff]
      %v252 = vld [vmem:[%s225 + $0x68] sm:$0xff]
      %v253 = vld [vmem:[%s225 + $0x70] sm:$0xff]
      %v254 = vld [vmem:[%s225 + $0x78] sm:$0xff]
      %v257 = vunpack.c.l.b16 %v237
      %v258 = vunpack.c.l.b16 %v238
      %v259 = vpack.c.b16 %v258, %v257
      %v277 = vunpack.c.l.b16 %v239
      %v278 = vunpack.c.h.b16 %v239
      %v279 = vunpack.c.l.b16 %v240
      %v280 = vunpack.c.h.b16 %v240
      %v281 = vunpack.c.l.b16 %v241
      %v282 = vunpack.c.h.b16 %v241
      %v283 = vunpack.c.l.b16 %v242
      %v284 = vunpack.c.h.b16 %v242
      %v285 = vunpack.c.l.b16 %v243
      %v286 = vunpack.c.h.b16 %v243
      %v287 = vunpack.c.l.b16 %v244
      %v288 = vunpack.c.h.b16 %v244
      %v289 = vunpack.c.l.b16 %v245
      %v290 = vunpack.c.h.b16 %v245
      %v291 = vunpack.c.l.b16 %v246
      %v292 = vunpack.c.h.b16 %v246
      %v293 = vunpack.c.l.b16 %v247
      %v294 = vunpack.c.h.b16 %v247
      %v295 = vunpack.c.l.b16 %v248
      %v296 = vunpack.c.h.b16 %v248
      %v297 = vunpack.c.l.b16 %v249
      %v298 = vunpack.c.h.b16 %v249
      %v299 = vunpack.c.l.b16 %v250
      %v300 = vunpack.c.h.b16 %v250
      %v301 = vunpack.c.l.b16 %v251
      %v302 = vunpack.c.h.b16 %v251
      %v303 = vunpack.c.l.b16 %v252
      %v304 = vunpack.c.h.b16 %v252
      %v305 = vunpack.c.l.b16 %v253
      %v306 = vunpack.c.h.b16 %v253
      %v307 = vunpack.c.l.b16 %v254
      %v308 = vunpack.c.h.b16 %v254
      %v309 = vpack.c.b16 %v279, %v277
      %v310 = vpack.c.b16 %v280, %v278
      %v311 = vpack.c.b16 %v283, %v281
      %v312 = vpack.c.b16 %v284, %v282
      %v313 = vpack.c.b16 %v287, %v285
      %v314 = vpack.c.b16 %v288, %v286
      %v315 = vpack.c.b16 %v291, %v289
      %v316 = vpack.c.b16 %v292, %v290
      %v317 = vpack.c.b16 %v295, %v293
      %v318 = vpack.c.b16 %v296, %v294
      %v319 = vpack.c.b16 %v299, %v297
      %v320 = vpack.c.b16 %v300, %v298
      %v321 = vpack.c.b16 %v303, %v301
      %v322 = vpack.c.b16 %v304, %v302
      %v323 = vpack.c.b16 %v307, %v305
      %v324 = vpack.c.b16 %v308, %v306
      %341 = vmatpush.bf16.msra.mxu0 %v323
      %342 = vmatpush.bf16.msra.mxu0 %v321
      %343 = vmatpush.bf16.msra.mxu0 %v319
      %344 = vmatpush.bf16.msra.mxu0 %v317
      %345 = vmatpush.bf16.msra.mxu0 %v315
      %346 = vmatpush.bf16.msra.mxu0 %v313
      %347 = vmatpush.bf16.msra.mxu0 %v311
      %348 = vmatpush.bf16.msra.mxu0 %v309
      %349 = vmatmul.bf16.gmra.mxu0 %v259
      %v350 = vpop.f32.mrf.mxu0
      %v351 = vadd.f32 0.0, %v350
      %v352 = vpop.f32.mrf.mxu0
      %v353 = vadd.f32 0.0, %v352
      %354 = vdwg.mxu0
      %355 = vmatpush.bf16.msra.mxu0 %v324
      %356 = vmatpush.bf16.msra.mxu0 %v322
      %357 = vmatpush.bf16.msra.mxu0 %v320
      %358 = vmatpush.bf16.msra.mxu0 %v318
      %359 = vmatpush.bf16.msra.mxu0 %v316
      %360 = vmatpush.bf16.msra.mxu0 %v314
      %361 = vmatpush.bf16.msra.mxu0 %v312
      %362 = vmatpush.bf16.msra.mxu0 %v310
      %363 = vmatmul.bf16.gmra.mxu0 %v259
      %v364 = vpop.f32.mrf.mxu0
      %v365 = vadd.f32 0.0, %v364
      %v366 = vpop.f32.mrf.mxu0
      %v367 = vadd.f32 0.0, %v366
      %368 = vdwg.mxu0
      %v369 = vadd.f32 %v351, %v365
      %370 = vadd.xlane.f32.xlu0 %v369
      %v371 = vpop.xlane.xlu0 %370
      %v372 = vadd.f32 %v353, %v367
      %373 = vadd.xlane.f32.xlu0 %v372
      %v374 = vpop.xlane.xlu0 %373
      %v375 = vrcp.pop 256.0
      %v376 = vmul.f32 256.0, %v375
      %v377 = vsub.f32 1.0, %v376
      %v378 = vmul.f32 %v375, %v377
      %v379 = vadd.f32 %v375, %v378
      %vm380 = vweird.f32 %v375
      %v381 = vsel %vm380, %v375, %v379
      %v382 = vmul.f32 %v371, %v381
      %v383 = vmul.f32 %v374, %v381
      %v384 = vsub.f32 %v351, %v382
      %v385 = vsub.f32 %v365, %v382
      %v386 = vsub.f32 %v353, %v383
      %v387 = vsub.f32 %v367, %v383
      %v388 = vmul.f32 %v384, %v384
      %v389 = vmul.f32 %v385, %v385
      %v390 = vmul.f32 %v386, %v386
      %v391 = vmul.f32 %v387, %v387
      %v392 = vadd.f32 %v388, %v389
      %393 = vadd.xlane.f32.xlu0 %v392
      %v394 = vpop.xlane.xlu0 %393
      %v395 = vadd.f32 %v390, %v391
      %396 = vadd.xlane.f32.xlu0 %v395
      %v397 = vpop.xlane.xlu0 %396
      %v398 = vmul.f32 %v394, %v381
      %v399 = vmul.f32 %v397, %v381
      %v400 = vadd.f32 %v398, 1e-05
      %v401 = vadd.f32 %v399, 1e-05
      %v402 = vrsqrt.pop %v400
      %v403 = vmul.f32 %v402, %v400
      %v404 = vmul.f32 %v403, %v402
      %v405 = vmul.f32 0.5, %v404
      %v406 = vsub.f32 1.5, %v405
      %v407 = vmul.f32 %v402, %v406
      %vm408 = vweird.f32 %v400
      %vm409 = vweird.f32 %v402
      %vm410 = vmor %vm408, %vm409
      %v411 = vsel %vm410, %v402, %v407
      %v412 = vrsqrt.pop %v401
      %v413 = vmul.f32 %v412, %v401
      %v414 = vmul.f32 %v413, %v412
      %v415 = vmul.f32 0.5, %v414
      %v416 = vsub.f32 1.5, %v415
      %v417 = vmul.f32 %v412, %v416
      %vm418 = vweird.f32 %v401
      %vm419 = vweird.f32 %v412
      %vm420 = vmor %vm418, %vm419
      %v421 = vsel %vm420, %v412, %v417
      %v422 = vmul.f32 %v384, %v411
      %v423 = vmul.f32 %v385, %v411
      %v424 = vmul.f32 %v386, %v421
      %v425 = vmul.f32 %v387, %v421
      %v426 = vld [vmem:[%s2] sm:$0xff]
      %v427 = vld [vmem:[%s2 + $0x8] sm:$0xff]
      %429 = vset.pattern.permute.xlu0 0
      %430 = vperm.xlu0 %429, %v426
      %v431 = vpop.permute.xlu0 %430
      %434 = vset.pattern.permute.xlu0 0
      %435 = vperm.xlu0 %434, %v427
      %v436 = vpop.permute.xlu0 %435
      %v438 = vmul.f32 %v422, %v431
      %v439 = vmul.f32 %v423, %v431
      %v440 = vmul.f32 %v424, %v436
      %v441 = vmul.f32 %v425, %v436
      %v442 = vld [vmem:[%s3] sm:$0xff]
      %v443 = vld [vmem:[%s3 + $0x8] sm:$0xff]
      %445 = vset.pattern.permute.xlu0 0
      %446 = vperm.xlu0 %445, %v442
      %v447 = vpop.permute.xlu0 %446
      %450 = vset.pattern.permute.xlu0 0
      %451 = vperm.xlu0 %450, %v443
      %v452 = vpop.permute.xlu0 %451
      %v454 = vadd.f32 %v438, %v447
      %v455 = vadd.f32 %v439, %v447
      %v456 = vadd.f32 %v440, %v452
      %v457 = vadd.f32 %v441, %v452
      %vm458 = vcmp.gt.f32.partialorder %v454, 0.0
      %vm459 = vcmp.gt.f32.partialorder %v455, 0.0
      %vm460 = vcmp.gt.f32.partialorder %v456, 0.0
      %vm461 = vcmp.gt.f32.partialorder %v457, 0.0
      %v462 = vmul.f32 %v454, 0.2
      %v463 = vmul.f32 %v455, 0.2
      %v464 = vmul.f32 %v456, 0.2
      %v465 = vmul.f32 %v457, 0.2
      %v466 = vsel %vm458, %v454, %v462
      %v467 = vsel %vm459, %v455, %v463
      %v468 = vsel %vm460, %v456, %v464
      %v469 = vsel %vm461, %v457, %v465
      %470 = vst [vmem:[%s235] sm:$0xff] %v466
      %471 = vst [vmem:[%s235 + $0x8] sm:$0xff] %v467
      %472 = vst [vmem:[%s235 + $0x10] sm:$0xff] %v468
      %473 = vst [vmem:[%s235 + $0x18] sm:$0xff] %v469
      %s474 = smul.u32 2, %s20
      %p475 = scmp.lt.s32.totalorder %s19, 1
      %s476 = scalar_select %p475, %s19, 1
      %p477 = scmp.lt.s32.totalorder %s474, 1
      %s478 = scalar_select %p477, %s474, 1
      %s479 = smul.addr %s476, 4
      %s480 = sadd.s32 %s478, %s479
      %s481 = smul.addr %s480, 8
      %s482 = scalar_lea.vmem %s4, %s481
      // Predicated region
      $region37: #{critic_forward.7} parent=35 // pred_check
        %p483 = pneg %p138
      $region38: #{critic_forward.7} parent=35 // pred_check_branch
        %485 = sbr.rel (%p483) target = $region40
      $region39: #{critic_forward.7} parent=35 // pred_region
        %s486 = smul.u32 2, %s20
      $region40: #{critic_forward.7} parent=35 // pred_fallthru
        _
    $region36: #{critic_forward.7} parent=5 // pred_fallthru
      _
    %p487 = scmp.le.s32.totalorder 2, %s10
    // Predicated region
    $region41: #{critic_forward.7} parent=5 // pred_check
      %p488 = pneg %p487
    $region42: #{critic_forward.7} parent=5 // pred_check_branch
      %490 = sbr.rel (%p488) target = $region44
    $region43: #{critic_forward.7} parent=5 // pred_region
      %s491 = ssub.s32 %s10, 2
      // Predicated region
      $region45: #{critic_forward.7} parent=43 // pred_check
        %p492 = pneg %p144
      $region46: #{critic_forward.7} parent=43 // pred_check_branch
        %494 = sbr.rel (%p492) target = $region48
      $region47: #{critic_forward.7} parent=43 // pred_region
        %s495 = smul.u32 2, %s22
        %p496 = scmp.lt.s32.totalorder %s21, 1
        %s497 = scalar_select %p496, %s21, 1
        %p498 = scmp.lt.s32.totalorder %s495, 1
        %s499 = scalar_select %p498, %s495, 1
        %s500 = smul.addr %s497, 4
        %s501 = sadd.s32 %s499, %s500
        %s502 = smul.addr %s501, 8
        %s503 = scalar_lea.vmem %s4, %s502
      $region48: #{critic_forward.7} parent=43 // pred_fallthru
        _
    $region44: #{critic_forward.7} parent=5 // pred_fallthru
      _
  $region6: #{critic_forward.7} parent=0 // loop_footer
    %s14 = sadd.s32 1, %s10
  $region7: #{critic_forward.7} parent=0 // loop_footer_branch
    %9 = sbr.rel target = $region3
  $region8: #{critic_forward.7} parent=0 // loop_exit
    _

// kernel: critic_forward.8
$region0: #{critic_forward.8}
  #allocation0 [shape = 'u32[]', space=smem, size = 0x4, offset = 0x4, fixed_abs, tag = 'smem constant byte address 0x4 - core index']
  #allocation1 [shape = 'u32[72,128]{1,0:T(1,128)}', space=vmem, size = 0x9000, scoped, tag = 'internal scratch']
  %s0 = inlined_call_operand.vmem [shape: bf16[2,256,64], index: 0, kind: input, shape index: {}]
  %s1 = inlined_call_operand.vmem [shape: bf16[32,256], index: 1, kind: input, shape index: {}]
  %s2 = inlined_call_operand.vmem [shape: f32[32,1], index: 2, kind: input, shape index: {}]
  %s3 = inlined_call_operand.vmem [shape: f32[32,1], index: 3, kind: input, shape index: {}]
  %s4 = inlined_call_operand.vmem [shape: f32[2,32,64], index: 4, kind: output, shape index: {}]
  %s5 = sld [smem:[#allocation0]]
  $region49: #{critic_forward.8} parent=0
    _
  %s7 = ssub.s32 1, %s5
  %s8 = scalar_select 0, %s7, %s5
  loop: start=0, step=1, limit=4
  $region2: #{critic_forward.8} parent=0 // loop_pre_header
    _
  $region3: #{critic_forward.8} parent=0 // loop_header
    %s10 = sphi 0, %s14
    %p11 = scmp.ge.s32.totalorder %s10, 4
    %s17 = sphi 0, %s29
    %s18 = sphi 0, %s25
    %s19 = sphi 0, %s17
    %s20 = sphi 0, %s18
    %s21 = sphi 0, %s19
    %s22 = sphi 0, %s20
    %s34 = sphi 0, %s36
    %s37 = sphi 0, %s34
    %s38 = sphi 0, %s37
    %s54 = sphi 0, %s38
    %s58 = sphi 0, %s58
    %s60 = sphi 0, %s58
    %s61 = sphi 0, %s60
    %s75 = sphi 0, %s61
    %s79 = sphi 0, %s79
    %s81 = sphi 0, %s79
    %s82 = sphi 0, %s81
    %s96 = sphi 0, %s82
    %s100 = sphi 0, %s100
    %s102 = sphi 0, %s100
    %s103 = sphi 0, %s102
    %s117 = sphi 0, %s103
    %s125 = sphi 0, %s127
    %s128 = sphi 0, %s125
    %s129 = sphi 0, %s128
    %s145 = sphi 0, %s129
  $region4: #{critic_forward.8} parent=0 // loop_header_branch
    %13 = sbr.rel (%p11) target = $region8
  $region5: #{critic_forward.8} parent=0 // loop_body
    %s15 = ssub.s32 %s10, 1
    %s16 = ssub.s32 %s10, 2
    %s23 = sadd.s32 1, %s18
    %p24 = scmp.ge.s32.totalorder %s23, 1
    %s25 = scalar_select %p24, 0, %s23
    %s26 = sadd.s32 1, %s17
    %s27 = scalar_select %p24, %s26, %s17
    %p28 = scmp.ge.s32.totalorder %s27, 2
    %s29 = scalar_select %p28, 0, %s27
    %s30 = ssub.s32 %s17, %s29
    %s31 = ssub.s32 %s18, %s25
    %s32 = sor.u32 %s30, %s31
    %p33 = scmp.eq.s32.totalorder %s32, 0
    %s35 = sadd.s32 %s34, 1
    %s36 = scalar_select %p33, %s34, %s35
    %p39 = pneg %p33
    %p40 = scmp.eq.s32.totalorder %s10, 1
    %p41 = por %p39, %p40
    %p42 = scmp.ne.s32.totalorder %s34, %s37
    %p43 = scmp.eq.s32.totalorder %s10, 0
    %p44 = por %p42, %p43
    %p45 = scmp.ne.s32.totalorder %s34, %s37
    %p46 = scmp.eq.s32.totalorder %s15, 1
    %p47 = por %p45, %p46
    %p48 = scmp.ne.s32.totalorder %s37, %s38
    %p49 = scmp.eq.s32.totalorder %s15, 0
    %p50 = por %p48, %p49
    %p51 = scmp.ne.s32.totalorder %s37, %s38
    %p52 = scmp.eq.s32.totalorder %s16, 1
    %p53 = por %p51, %p52
    %p55 = scmp.ne.s32.totalorder %s38, %s54
    %p56 = scmp.eq.s32.totalorder %s16, 0
    %p57 = por %p55, %p56
    %s59 = sadd.s32 %s58, 1
    %p62 = scmp.eq.s32.totalorder %s10, 1
    %p63 = scmp.ne.s32.totalorder %s58, %s60
    %p64 = scmp.eq.s32.totalorder %s10, 0
    %p65 = por %p63, %p64
    %p66 = scmp.ne.s32.totalorder %s58, %s60
    %p67 = scmp.eq.s32.totalorder %s15, 1
    %p68 = por %p66, %p67
    %p69 = scmp.ne.s32.totalorder %s60, %s61
    %p70 = scmp.eq.s32.totalorder %s15, 0
    %p71 = por %p69, %p70
    %p72 = scmp.ne.s32.totalorder %s60, %s61
    %p73 = scmp.eq.s32.totalorder %s16, 1
    %p74 = por %p72, %p73
    %p76 = scmp.ne.s32.totalorder %s61, %s75
    %p77 = scmp.eq.s32.totalorder %s16, 0
    %p78 = por %p76, %p77
    %s80 = sadd.s32 %s79, 1
    %p83 = scmp.eq.s32.totalorder %s10, 1
    %p84 = scmp.ne.s32.totalorder %s79, %s81
    %p85 = scmp.eq.s32.totalorder %s10, 0
    %p86 = por %p84, %p85
    %p87 = scmp.ne.s32.totalorder %s79, %s81
    %p88 = scmp.eq.s32.totalorder %s15, 1
    %p89 = por %p87, %p88
    %p90 = scmp.ne.s32.totalorder %s81, %s82
    %p91 = scmp.eq.s32.totalorder %s15, 0
    %p92 = por %p90, %p91
    %p93 = scmp.ne.s32.totalorder %s81, %s82
    %p94 = scmp.eq.s32.totalorder %s16, 1
    %p95 = por %p93, %p94
    %p97 = scmp.ne.s32.totalorder %s82, %s96
    %p98 = scmp.eq.s32.totalorder %s16, 0
    %p99 = por %p97, %p98
    %s101 = sadd.s32 %s100, 1
    %p104 = scmp.eq.s32.totalorder %s10, 1
    %p105 = scmp.ne.s32.totalorder %s100, %s102
    %p106 = scmp.eq.s32.totalorder %s10, 0
    %p107 = por %p105, %p106
    %p108 = scmp.ne.s32.totalorder %s100, %s102
    %p109 = scmp.eq.s32.totalorder %s15, 1
    %p110 = por %p108, %p109
    %p111 = scmp.ne.s32.totalorder %s102, %s103
    %p112 = scmp.eq.s32.totalorder %s15, 0
    %p113 = por %p111, %p112
    %p114 = scmp.ne.s32.totalorder %s102, %s103
    %p115 = scmp.eq.s32.totalorder %s16, 1
    %p116 = por %p114, %p115
    %p118 = scmp.ne.s32.totalorder %s103, %s117
    %p119 = scmp.eq.s32.totalorder %s16, 0
    %p120 = por %p118, %p119
    %s121 = ssub.s32 %s17, %s29
    %s122 = ssub.s32 %s18, %s25
    %s123 = sor.u32 %s121, %s122
    %p124 = scmp.eq.s32.totalorder %s123, 0
    %s126 = sadd.s32 %s125, 1
    %s127 = scalar_select %p124, %s125, %s126
    %p130 = pneg %p124
    %p131 = scmp.eq.s32.totalorder %s10, 1
    %p132 = por %p130, %p131
    %p133 = scmp.ne.s32.totalorder %s125, %s128
    %p134 = scmp.eq.s32.totalorder %s10, 0
    %p135 = por %p133, %p134
    %p136 = scmp.ne.s32.totalorder %s125, %s128
    %p137 = scmp.eq.s32.totalorder %s15, 1
    %p138 = por %p136, %p137
    %p139 = scmp.ne.s32.totalorder %s128, %s129
    %p140 = scmp.eq.s32.totalorder %s15, 0
    %p141 = por %p139, %p140
    %p142 = scmp.ne.s32.totalorder %s128, %s129
    %p143 = scmp.eq.s32.totalorder %s16, 1
    %p144 = por %p142, %p143
    %p146 = scmp.ne.s32.totalorder %s129, %s145
    %p147 = scmp.eq.s32.totalorder %s16, 0
    %p148 = por %p146, %p147
    %p149 = scmp.le.s32.totalorder 1, %s10
    %p150 = scmp.lt.s32.totalorder %s10, 3
    %p151 = pnand %p149, %p150
    %p152 = pneg %p151
    // Predicated region
    $region9: #{critic_forward.8} parent=5 // pred_check
      _
    $region10: #{critic_forward.8} parent=5 // pred_check_branch
      %154 = sbr.rel (%p151) target = $region12
    $region11: #{critic_forward.8} parent=5 // pred_region
      %s155 = ssub.s32 %s10, 1
      // Predicated region
      $region13: #{critic_forward.8} parent=11 // pred_check
        %p156 = pneg %p71
      $region14: #{critic_forward.8} parent=11 // pred_check_branch
        %158 = sbr.rel (%p156) target = $region16
      $region15: #{critic_forward.8} parent=11 // pred_region
        _
      $region16: #{critic_forward.8} parent=11 // pred_fallthru
        _
      // Predicated region
      $region17: #{critic_forward.8} parent=11 // pred_check
        %p159 = pneg %p92
      $region18: #{critic_forward.8} parent=11 // pred_check_branch
        %161 = sbr.rel (%p159) target = $region20
      $region19: #{critic_forward.8} parent=11 // pred_region
        _
      $region20: #{critic_forward.8} parent=11 // pred_fallthru
        _
      // Predicated region
      $region21: #{critic_forward.8} parent=11 // pred_check
        %p162 = pneg %p113
      $region22: #{critic_forward.8} parent=11 // pred_check_branch
        %164 = sbr.rel (%p162) target = $region24
      $region23: #{critic_forward.8} parent=11 // pred_region
        _
      $region24: #{critic_forward.8} parent=11 // pred_fallthru
        _
    $region12: #{critic_forward.8} parent=5 // pred_fallthru
      _
    %p165 = scmp.lt.s32.totalorder %s10, 2
    // Predicated region
    $region25: #{critic_forward.8} parent=5 // pred_check
      %p166 = pneg %p165
    $region26: #{critic_forward.8} parent=5 // pred_check_branch
      %168 = sbr.rel (%p166) target = $region28
    $region27: #{critic_forward.8} parent=5 // pred_region
      // Predicated region
      $region29: #{critic_forward.8} parent=27 // pred_check
        %p169 = pneg %p44
      $region30: #{critic_forward.8} parent=27 // pred_check_branch
        %171 = sbr.rel (%p169) target = $region32
      $region31: #{critic_forward.8} parent=27 // pred_region
        %p172 = scmp.lt.s32.totalorder %s17, 1
        %s173 = scalar_select %p172, %s17, 1
        %p174 = scmp.lt.s32.totalorder %s18, 0
        %s175 = scalar_select %p174, %s18, 0
        %s176 = smul.addr %s173, 32
        %s177 = sadd.s32 %s175, %s176
        %s178 = smul.addr %s177, 4
        %s179 = scalar_lea.vmem %s0, %s178
      $region32: #{critic_forward.8} parent=27 // pred_fallthru
        _
    $region28: #{critic_forward.8} parent=5 // pred_fallthru
      _
    %p180 = scmp.le.s32.totalorder 1, %s10
    %p181 = scmp.lt.s32.totalorder %s10, 3
    %p182 = pnand %p180, %p181
    %p183 = pneg %p182
    // Predicated region
    $region33: #{critic_forward.8} parent=5 // pred_check
      _
    $region34: #{critic_forward.8} parent=5 // pred_check_branch
      %185 = sbr.rel (%p182) target = $region36
    $region35: #{critic_forward.8} parent=5 // pred_region
      %s186 = ssub.s32 %s10, 1
      %p187 = scmp.lt.s32.totalorder %s19, 1
      %s188 = scalar_select %p187, %s19, 1
      %p189 = scmp.lt.s32.totalorder %s20, 0
      %s190 = scalar_select %p189, %s20, 0
      %s191 = smul.addr %s188, 32
      %s192 = sadd.s32 %s190, %s191
      %s193 = smul.addr %s192, 4
      %s194 = scalar_lea.vmem %s0, %s193
      %p195 = pneg %p50
      %p196 = pneg %p47
      %p197 = pneg %p71
      %p198 = pneg %p68
      %p199 = pneg %p92
      %p200 = pneg %p89
      %p201 = pneg %p113
      %p202 = pneg %p110
      %p203 = pneg %p141
      %p204 = pneg %p138
      %p205 = scmp.lt.s32.totalorder %s19, 1
      %s206 = scalar_select %p205, %s19, 1
      %p207 = scmp.lt.s32.totalorder %s20, 0
      %s208 = scalar_select %p207, %s20, 0
      %s209 = smul.addr %s206, 4
      %s210 = sadd.s32 %s208, %s209
      %s211 = smul.addr %s210, 8
      %s212 = scalar_lea.vmem %s4, %s211
      %p213 = scmp.lt.s32.totalorder %s19, 1
      %s214 = scalar_select %p213, %s19, 1
      %p215 = scmp.lt.s32.totalorder %s20, 0
      %s216 = scalar_select %p215, %s20, 0
      %s217 = smul.addr %s214, 32
      %s218 = sadd.s32 %s216, %s217
      %s219 = smul.addr %s218, 4
      %s220 = scalar_lea.vmem %s0, %s219
      %p221 = scmp.lt.s32.totalorder %s19, 1
      %s222 = scalar_select %p221, %s19, 1
      %p223 = scmp.lt.s32.totalorder %s20, 0
      %s224 = scalar_select %p223, %s20, 0
      %s225 = smul.addr %s222, 4
      %s226 = sadd.s32 %s224, %s225
      %s227 = smul.addr %s226, 8
      %s228 = scalar_lea.vmem %s4, %s227
      %v229 = vld [vmem:[%s1] sm:$0xff]
      %v230 = vld [vmem:[%s1 + $0x8] sm:$0xff]
      %v231 = vld [vmem:[%s1 + $0x10] sm:$0xff]
      %v232 = vld [vmem:[%s1 + $0x18] sm:$0xff]
      %v233 = vld [vmem:[%s220] sm:$0xf]
      %v234 = vld [vmem:[%s220 + $0x4] sm:$0xf]
      %v235 = vld [vmem:[%s220 + $0x8] sm:$0xf]
      %v236 = vld [vmem:[%s220 + $0xc] sm:$0xf]
      %v237 = vld [vmem:[%s220 + $0x10] sm:$0xf]
      %v238 = vld [vmem:[%s220 + $0x14] sm:$0xf]
      %v239 = vld [vmem:[%s220 + $0x18] sm:$0xf]
      %v240 = vld [vmem:[%s220 + $0x1c] sm:$0xf]
      %v241 = vld [vmem:[%s220 + $0x20] sm:$0xf]
      %v242 = vld [vmem:[%s220 + $0x24] sm:$0xf]
      %v243 = vld [vmem:[%s220 + $0x28] sm:$0xf]
      %v244 = vld [vmem:[%s220 + $0x2c] sm:$0xf]
      %v245 = vld [vmem:[%s220 + $0x30] sm:$0xf]
      %v246 = vld [vmem:[%s220 + $0x34] sm:$0xf]
      %v247 = vld [vmem:[%s220 + $0x38] sm:$0xf]
      %v248 = vld [vmem:[%s220 + $0x3c] sm:$0xf]
      %v249 = vld [vmem:[%s220 + $0x40] sm:$0xf]
      %v250 = vld [vmem:[%s220 + $0x44] sm:$0xf]
      %v251 = vld [vmem:[%s220 + $0x48] sm:$0xf]
      %v252 = vld [vmem:[%s220 + $0x4c] sm:$0xf]
      %v253 = vld [vmem:[%s220 + $0x50] sm:$0xf]
      %v254 = vld [vmem:[%s220 + $0x54] sm:$0xf]
      %v255 = vld [vmem:[%s220 + $0x58] sm:$0xf]
      %v256 = vld [vmem:[%s220 + $0x5c] sm:$0xf]
      %v257 = vld [vmem:[%s220 + $0x60] sm:$0xf]
      %v258 = vld [vmem:[%s220 + $0x64] sm:$0xf]
      %v259 = vld [vmem:[%s220 + $0x68] sm:$0xf]
      %v260 = vld [vmem:[%s220 + $0x6c] sm:$0xf]
      %v261 = vld [vmem:[%s220 + $0x70] sm:$0xf]
      %v262 = vld [vmem:[%s220 + $0x74] sm:$0xf]
      %v263 = vld [vmem:[%s220 + $0x78] sm:$0xf]
      %v264 = vld [vmem:[%s220 + $0x7c] sm:$0xf]
      %v269 = vunpack.c.l.b16 %v229
      %v270 = vunpack.c.h.b16 %v229
      %v271 = vunpack.c.l.b16 %v230
      %v272 = vunpack.c.h.b16 %v230
      %v273 = vunpack.c.l.b16 %v231
      %v274 = vunpack.c.h.b16 %v231
      %v275 = vunpack.c.l.b16 %v232
      %v276 = vunpack.c.h.b16 %v232
      %v277 = vpack.c.b16 %v271, %v269
      %v278 = vpack.c.b16 %v272, %v270
      %v279 = vpack.c.b16 %v275, %v273
      %v280 = vpack.c.b16 %v276, %v274
      %v317 = vunpack.c.l.b16 %v233
      %v318 = vunpack.c.l.b16 %v234
      %v319 = vunpack.c.l.b16 %v235
      %v320 = vunpack.c.l.b16 %v236
      %v321 = vunpack.c.l.b16 %v237
      %v322 = vunpack.c.l.b16 %v238
      %v323 = vunpack.c.l.b16 %v239
      %v324 = vunpack.c.l.b16 %v240
      %v325 = vunpack.c.l.b16 %v241
      %v326 = vunpack.c.l.b16 %v242
      %v327 = vunpack.c.l.b16 %v243
      %v328 = vunpack.c.l.b16 %v244
      %v329 = vunpack.c.l.b16 %v245
      %v330 = vunpack.c.l.b16 %v246
      %v331 = vunpack.c.l.b16 %v247
      %v332 = vunpack.c.l.b16 %v248
      %v333 = vunpack.c.l.b16 %v249
      %v334 = vunpack.c.l.b16 %v250
      %v335 = vunpack.c.l.b16 %v251
      %v336 = vunpack.c.l.b16 %v252
      %v337 = vunpack.c.l.b16 %v253
      %v338 = vunpack.c.l.b16 %v254
      %v339 = vunpack.c.l.b16 %v255
      %v340 = vunpack.c.l.b16 %v256
      %v341 = vunpack.c.l.b16 %v257
      %v342 = vunpack.c.l.b16 %v258
      %v343 = vunpack.c.l.b16 %v259
      %v344 = vunpack.c.l.b16 %v260
      %v345 = vunpack.c.l.b16 %v261
      %v346 = vunpack.c.l.b16 %v262
      %v347 = vunpack.c.l.b16 %v263
      %v348 = vunpack.c.l.b16 %v264
      %v349 = vpack.c.b16 %v318, %v317
      %v350 = vpack.c.b16 %v320, %v319
      %v351 = vpack.c.b16 %v322, %v321
      %v352 = vpack.c.b16 %v324, %v323
      %v353 = vpack.c.b16 %v326, %v325
      %v354 = vpack.c.b16 %v328, %v327
      %v355 = vpack.c.b16 %v330, %v329
      %v356 = vpack.c.b16 %v332, %v331
      %v357 = vpack.c.b16 %v334, %v333
      %v358 = vpack.c.b16 %v336, %v335
      %v359 = vpack.c.b16 %v338, %v337
      %v360 = vpack.c.b16 %v340, %v339
      %v361 = vpack.c.b16 %v342, %v341
      %v362 = vpack.c.b16 %v344, %v343
      %v363 = vpack.c.b16 %v346, %v345
      %v364 = vpack.c.b16 %v348, %v347
      %381 = vmatpush.bf16.msra.mxu0 %v356
      %382 = vmatpush.bf16.msra.mxu0 %v355
      %383 = vmatpush.bf16.msra.mxu0 %v354
      %384 = vmatpush.bf16.msra.mxu0 %v353
      %385 = vmatpush.bf16.msra.mxu0 %v352
      %386 = vmatpush.bf16.msra.mxu0 %v351
      %387 = vmatpush.bf16.msra.mxu0 %v350
      %388 = vmatpush.bf16.msra.mxu0 %v349
      %389 = vmatmul.bf16.gmra.mxu0 %v277
      %v390 = vpop.f32.mrf.mxu0
      %v391 = vadd.f32 0.0, %v390
      %v392 = vpop.f32.mrf.mxu0
      %v393 = vadd.f32 0.0, %v392
      %394 = vmatmul.bf16.gmra.mxu0 %v279
      %v395 = vpop.f32.mrf.mxu0
      %v396 = vadd.f32 0.0, %v395
      %v397 = vpop.f32.mrf.mxu0
      %v398 = vadd.f32 0.0, %v397
      %399 = vdwg.mxu0
      %400 = vmatpush.bf16.msra.mxu0 %v364
      %401 = vmatpush.bf16.msra.mxu0 %v363
      %402 = vmatpush.bf16.msra.mxu0 %v362
      %403 = vmatpush.bf16.msra.mxu0 %v361
      %404 = vmatpush.bf16.msra.mxu0 %v360
      %405 = vmatpush.bf16.msra.mxu0 %v359
      %406 = vmatpush.bf16.msra.mxu0 %v358
      %407 = vmatpush.bf16.msra.mxu0 %v357
      %408 = vmatmul.bf16.gmra.mxu0 %v278
      %v409 = vpop.f32.mrf.mxu0
      %v410 = vadd.f32 %v391, %v409
      %v411 = vpop.f32.mrf.mxu0
      %v412 = vadd.f32 %v393, %v411
      %413 = vmatmul.bf16.gmra.mxu0 %v280
      %v414 = vpop.f32.mrf.mxu0
      %v415 = vadd.f32 %v396, %v414
      %v416 = vpop.f32.mrf.mxu0
      %v417 = vadd.f32 %v398, %v416
      %418 = vdwg.mxu0
      %vm419 = vcmask 523264
      %v420 = vsel %vm419, %v410, 0.0
      %421 = vadd.xlane.f32.xlu0 %v420
      %v422 = vpop.xlane.xlu0 %421
      %v423 = vsel %vm419, %v412, 0.0
      %424 = vadd.xlane.f32.xlu0 %v423
      %v425 = vpop.xlane.xlu0 %424
      %v426 = vsel %vm419, %v415, 0.0
      %427 = vadd.xlane.f32.xlu0 %v426
      %v428 = vpop.xlane.xlu0 %427
      %v429 = vsel %vm419, %v417, 0.0
      %430 = vadd.xlane.f32.xlu0 %v429
      %v431 = vpop.xlane.xlu0 %430
      %v432 = vrcp.pop 64.0
      %v433 = vmul.f32 64.0, %v432
      %v434 = vsub.f32 1.0, %v433
      %v435 = vmul.f32 %v432, %v434
      %v436 = vadd.f32 %v432, %v435
      %vm437 = vweird.f32 %v432
      %v438 = vsel %vm437, %v432, %v436
      %v439 = vmul.f32 %v422, %v438
      %v440 = vmul.f32 %v425, %v438
      %v441 = vmul.f32 %v428, %v438
      %v442 = vmul.f32 %v431, %v438
      %v443 = vsub.f32 %v410, %v439
      %v444 = vsub.f32 %v412, %v440
      %v445 = vsub.f32 %v415, %v441
      %v446 = vsub.f32 %v417, %v442
      %v447 = vmul.f32 %v443, %v443
      %v448 = vmul.f32 %v444, %v444
      %v449 = vmul.f32 %v445, %v445
      %v450 = vmul.f32 %v446, %v446
      %v451 = vsel %vm419, %v447, 0.0
      %452 = vadd.xlane.f32.xlu0 %v451
      %v453 = vpop.xlane.xlu0 %452
      %v454 = vsel %vm419, %v448, 0.0
      %455 = vadd.xlane.f32.xlu0 %v454
      %v456 = vpop.xlane.xlu0 %455
      %v457 = vsel %vm419, %v449, 0.0
      %458 = vadd.xlane.f32.xlu0 %v457
      %v459 = vpop.xlane.xlu0 %458
      %v460 = vsel %vm419, %v450, 0.0
      %461 = vadd.xlane.f32.xlu0 %v460
      %v462 = vpop.xlane.xlu0 %461
      %v463 = vmul.f32 %v453, %v438
      %v464 = vmul.f32 %v456, %v438
      %v465 = vmul.f32 %v459, %v438
      %v466 = vmul.f32 %v462, %v438
      %v467 = vadd.f32 %v463, 1e-05
      %v468 = vadd.f32 %v464, 1e-05
      %v469 = vadd.f32 %v465, 1e-05
      %v470 = vadd.f32 %v466, 1e-05
      %v471 = vrsqrt.pop %v467
      %v472 = vmul.f32 %v471, %v467
      %v473 = vmul.f32 %v472, %v471
      %v474 = vmul.f32 0.5, %v473
      %v475 = vsub.f32 1.5, %v474
      %v476 = vmul.f32 %v471, %v475
      %vm477 = vweird.f32 %v467
      %vm478 = vweird.f32 %v471
      %vm479 = vmor %vm477, %vm478
      %v480 = vsel %vm479, %v471, %v476
      %v481 = vrsqrt.pop %v468
      %v482 = vmul.f32 %v481, %v468
      %v483 = vmul.f32 %v482, %v481
      %v484 = vmul.f32 0.5, %v483
      %v485 = vsub.f32 1.5, %v484
      %v486 = vmul.f32 %v481, %v485
      %vm487 = vweird.f32 %v468
      %vm488 = vweird.f32 %v481
      %vm489 = vmor %vm487, %vm488
      %v490 = vsel %vm489, %v481, %v486
      %v491 = vrsqrt.pop %v469
      %v492 = vmul.f32 %v491, %v469
      %v493 = vmul.f32 %v492, %v491
      %v494 = vmul.f32 0.5, %v493
      %v495 = vsub.f32 1.5, %v494
      %v496 = vmul.f32 %v491, %v495
      %vm497 = vweird.f32 %v469
      %vm498 = vweird.f32 %v491
      %vm499 = vmor %vm497, %vm498
      %v500 = vsel %vm499, %v491, %v496
      %v501 = vrsqrt.pop %v470
      %v502 = vmul.f32 %v501, %v470
      %v503 = vmul.f32 %v502, %v501
      %v504 = vmul.f32 0.5, %v503
      %v505 = vsub.f32 1.5, %v504
      %v506 = vmul.f32 %v501, %v505
      %vm507 = vweird.f32 %v470
      %vm508 = vweird.f32 %v501
      %vm509 = vmor %vm507, %vm508
      %v510 = vsel %vm509, %v501, %v506
      %v511 = vmul.f32 %v443, %v480
      %v512 = vmul.f32 %v444, %v490
      %v513 = vmul.f32 %v445, %v500
      %v514 = vmul.f32 %v446, %v510
      %v515 = vld [vmem:[%s2] sm:$0xff]
      %v516 = vld [vmem:[%s2 + $0x8] sm:$0xff]
      %v517 = vld [vmem:[%s2 + $0x10] sm:$0xff]
      %v518 = vld [vmem:[%s2 + $0x18] sm:$0xff]
      %520 = vset.pattern.permute.xlu0 0
      %521 = vperm.xlu0 %520, %v515
      %v522 = vpop.permute.xlu0 %521
      %525 = vset.pattern.permute.xlu0 0
      %526 = vperm.xlu0 %525, %v516
      %v527 = vpop.permute.xlu0 %526
      %530 = vset.pattern.permute.xlu0 0
      %531 = vperm.xlu0 %530, %v517
      %v532 = vpop.permute.xlu0 %531
      %535 = vset.pattern.permute.xlu0 0
      %536 = vperm.xlu0 %535, %v518
      %v537 = vpop.permute.xlu0 %536
      %v539 = vmul.f32 %v511, %v522
      %v540 = vmul.f32 %v512, %v527
      %v541 = vmul.f32 %v513, %v532
      %v542 = vmul.f32 %v514, %v537
      %v543 = vld [vmem:[%s3] sm:$0xff]
      %v544 = vld [vmem:[%s3 + $0x8] sm:$0xff]
      %v545 = vld [vmem:[%s3 + $0x10] sm:$0xff]
      %v546 = vld [vmem:[%s3 + $0x18] sm:$0xff]
      %548 = vset.pattern.permute.xlu0 0
      %549 = vperm.xlu0 %548, %v543
      %v550 = vpop.permute.xlu0 %549
      %553 = vset.pattern.permute.xlu0 0
      %554 = vperm.xlu0 %553, %v544
      %v555 = vpop.permute.xlu0 %554
      %558 = vset.pattern.permute.xlu0 0
      %559 = vperm.xlu0 %558, %v545
      %v560 = vpop.permute.xlu0 %559
      %563 = vset.pattern.permute.xlu0 0
      %564 = vperm.xlu0 %563, %v546
      %v565 = vpop.permute.xlu0 %564
      %v567 = vadd.f32 %v539, %v550
      %v568 = vadd.f32 %v540, %v555
      %v569 = vadd.f32 %v541, %v560
      %v570 = vadd.f32 %v542, %v565
      %vm571 = vcmp.gt.f32.partialorder %v567, 0.0
      %vm572 = vcmp.gt.f32.partialorder %v568, 0.0
      %vm573 = vcmp.gt.f32.partialorder %v569, 0.0
      %vm574 = vcmp.gt.f32.partialorder %v570, 0.0
      %v575 = vmul.f32 %v567, 0.2
      %v576 = vmul.f32 %v568, 0.2
      %v577 = vmul.f32 %v569, 0.2
      %v578 = vmul.f32 %v570, 0.2
      %v579 = vsel %vm571, %v567, %v575
      %v580 = vsel %vm572, %v568, %v576
      %v581 = vsel %vm573, %v569, %v577
      %v582 = vsel %vm574, %v570, %v578
      %583 = vst.msk [vmem:[%s228] sm:$0xff] %vm419, %v579
      %584 = vst.msk [vmem:[%s228 + $0x8] sm:$0xff] %vm419, %v580
      %585 = vst.msk [vmem:[%s228 + $0x10] sm:$0xff] %vm419, %v581
      %586 = vst.msk [vmem:[%s228 + $0x18] sm:$0xff] %vm419, %v582
      %p587 = scmp.lt.s32.totalorder %s19, 1
      %s588 = scalar_select %p587, %s19, 1
      %p589 = scmp.lt.s32.totalorder %s20, 0
      %s590 = scalar_select %p589, %s20, 0
      %s591 = smul.addr %s588, 4
      %s592 = sadd.s32 %s590, %s591
      %s593 = smul.addr %s592, 8
      %s594 = scalar_lea.vmem %s4, %s593
      // Predicated region
      $region37: #{critic_forward.8} parent=35 // pred_check
        %p595 = pneg %p138
      $region38: #{critic_forward.8} parent=35 // pred_check_branch
        %597 = sbr.rel (%p595) target = $region40
      $region39: #{critic_forward.8} parent=35 // pred_region
        _
      $region40: #{critic_forward.8} parent=35 // pred_fallthru
        _
    $region36: #{critic_forward.8} parent=5 // pred_fallthru
      _
    %p598 = scmp.le.s32.totalorder 2, %s10
    // Predicated region
    $region41: #{critic_forward.8} parent=5 // pred_check
      %p599 = pneg %p598
    $region42: #{critic_forward.8} parent=5 // pred_check_branch
      %601 = sbr.rel (%p599) target = $region44
    $region43: #{critic_forward.8} parent=5 // pred_region
      %s602 = ssub.s32 %s10, 2
      // Predicated region
      $region45: #{critic_forward.8} parent=43 // pred_check
        %p603 = pneg %p144
      $region46: #{critic_forward.8} parent=43 // pred_check_branch
        %605 = sbr.rel (%p603) target = $region48
      $region47: #{critic_forward.8} parent=43 // pred_region
        %p606 = scmp.lt.s32.totalorder %s21, 1
        %s607 = scalar_select %p606, %s21, 1
        %p608 = scmp.lt.s32.totalorder %s22, 0
        %s609 = scalar_select %p608, %s22, 0
        %s610 = smul.addr %s607, 4
        %s611 = sadd.s32 %s609, %s610
        %s612 = smul.addr %s611, 8
        %s613 = scalar_lea.vmem %s4, %s612
      $region48: #{critic_forward.8} parent=43 // pred_fallthru
        _
    $region44: #{critic_forward.8} parent=5 // pred_fallthru
      _
  $region6: #{critic_forward.8} parent=0 // loop_footer
    %s14 = sadd.s32 1, %s10
  $region7: #{critic_forward.8} parent=0 // loop_footer_branch
    %9 = sbr.rel target = $region3
  $region8: #{critic_forward.8} parent=0 // loop_exit
    _

// kernel: critic_forward.9
$region0: #{critic_forward.9}
  #allocation0 [shape = 'u32[]', space=smem, size = 0x4, offset = 0x4, fixed_abs, tag = 'smem constant byte address 0x4 - core index']
  #allocation1 [shape = 'u32[72,128]{1,0:T(1,128)}', space=vmem, size = 0x9000, scoped, tag = 'internal scratch']
  #allocation2 [shape = 'f32[1,1]{1,0:T(1,128)S(1)}', space=vmem, size = 0x200, scoped, tag = 'scoped memory for critic_forward.9']
  %s0 = inlined_call_operand.vmem [shape: bf16[2,512,16], index: 0, kind: input, shape index: {}]
  %s1 = inlined_call_operand.vmem [shape: bf16[64,512], index: 1, kind: input, shape index: {}]
  %s2 = inlined_call_operand.vmem [shape: f32[64,1], index: 2, kind: input, shape index: {}]
  %s3 = inlined_call_operand.vmem [shape: f32[64,1], index: 3, kind: input, shape index: {}]
  %s4 = inlined_call_operand.vmem [shape: f32[64,16], index: 4, kind: input, shape index: {}]
  %s5 = inlined_call_operand.<no memory space> [shape: f32[1,1], index: 5, kind: input, shape index: {}]
  %s6 = inlined_call_operand.vmem [shape: f32[2,1,1], index: 6, kind: output, shape index: {}]
  %s7 = sld [smem:[#allocation0]]
  $region57: #{critic_forward.9} parent=0
    _
  %s9 = ssub.s32 1, %s7
  %s10 = scalar_select 0, %s9, %s7
  %v11 = vstv %s5
  %12 = vst [vmem:[#allocation2] sm:$0x1] %v11
  loop: start=0, step=1, limit=4
  $region2: #{critic_forward.9} parent=0 // loop_pre_header
    _
  $region3: #{critic_forward.9} parent=0 // loop_header
    %s14 = sphi 0, %s18
    %p15 = scmp.ge.s32.totalorder %s14, 4
    %s24 = sphi 0, %s26
    %s27 = sphi 0, %s24
    %s28 = sphi 0, %s27
    %s44 = sphi 0, %s28
    %s48 = sphi 0, %s48
    %s50 = sphi 0, %s48
    %s51 = sphi 0, %s50
    %s65 = sphi 0, %s51
    %s69 = sphi 0, %s69
    %s71 = sphi 0, %s69
    %s72 = sphi 0, %s71
    %s86 = sphi 0, %s72
    %s90 = sphi 0, %s90
    %s92 = sphi 0, %s90
    %s93 = sphi 0, %s92
    %s107 = sphi 0, %s93
    %s111 = sphi 0, %s111
    %s113 = sphi 0, %s111
    %s114 = sphi 0, %s113
    %s128 = sphi 0, %s114
    %s132 = sphi 0, %s132
    %s134 = sphi 0, %s132
    %s135 = sphi 0, %s134
    %s149 = sphi 0, %s135
    %s155 = sphi 0, %s157
    %s158 = sphi 0, %s155
    %s159 = sphi 0, %s158
    %s175 = sphi 0, %s159
  $region4: #{critic_forward.9} parent=0 // loop_header_branch
    %17 = sbr.rel (%p15) target = $region8
  $region5: #{critic_forward.9} parent=0 // loop_body
    %s19 = ssub.s32 %s14, 1
    %s20 = ssub.s32 %s14, 2
    %s21 = sadd.s32 %s14, 1
    %s22 = ssub.s32 %s14, %s21
    %p23 = scmp.eq.s32.totalorder %s22, 0
    %s25 = sadd.s32 %s24, 1
    %s26 = scalar_select %p23, %s24, %s25
    %p29 = pneg %p23
    %p30 = scmp.eq.s32.totalorder %s14, 1
    %p31 = por %p29, %p30
    %p32 = scmp.ne.s32.totalorder %s24, %s27
    %p33 = scmp.eq.s32.totalorder %s14, 0
    %p34 = por %p32, %p33
    %p35 = scmp.ne.s32.totalorder %s24, %s27
    %p36 = scmp.eq.s32.totalorder %s19, 1
    %p37 = por %p35, %p36
    %p38 = scmp.ne.s32.totalorder %s27, %s28
    %p39 = scmp.eq.s32.totalorder %s19, 0
    %p40 = por %p38, %p39
    %p41 = scmp.ne.s32.totalorder %s27, %s28
    %p42 = scmp.eq.s32.totalorder %s20, 1
    %p43 = por %p41, %p42
    %p45 = scmp.ne.s32.totalorder %s28, %s44
    %p46 = scmp.eq.s32.totalorder %s20, 0
    %p47 = por %p45, %p46
    %s49 = sadd.s32 %s48, 1
    %p52 = scmp.eq.s32.totalorder %s14, 1
    %p53 = scmp.ne.s32.totalorder %s48, %s50
    %p54 = scmp.eq.s32.totalorder %s14, 0
    %p55 = por %p53, %p54
    %p56 = scmp.ne.s32.totalorder %s48, %s50
    %p57 = scmp.eq.s32.totalorder %s19, 1
    %p58 = por %p56, %p57
    %p59 = scmp.ne.s32.totalorder %s50, %s51
    %p60 = scmp.eq.s32.totalorder %s19, 0
    %p61 = por %p59, %p60
    %p62 = scmp.ne.s32.totalorder %s50, %s51
    %p63 = scmp.eq.s32.totalorder %s20, 1
    %p64 = por %p62, %p63
    %p66 = scmp.ne.s32.totalorder %s51, %s65
    %p67 = scmp.eq.s32.totalorder %s20, 0
    %p68 = por %p66, %p67
    %s70 = sadd.s32 %s69, 1
    %p73 = scmp.eq.s32.totalorder %s14, 1
    %p74 = scmp.ne.s32.totalorder %s69, %s71
    %p75 = scmp.eq.s32.totalorder %s14, 0
    %p76 = por %p74, %p75
    %p77 = scmp.ne.s32.totalorder %s69, %s71
    %p78 = scmp.eq.s32.totalorder %s19, 1
    %p79 = por %p77, %p78
    %p80 = scmp.ne.s32.totalorder %s71, %s72
    %p81 = scmp.eq.s32.totalorder %s19, 0
    %p82 = por %p80, %p81
    %p83 = scmp.ne.s32.totalorder %s71, %s72
    %p84 = scmp.eq.s32.totalorder %s20, 1
    %p85 = por %p83, %p84
    %p87 = scmp.ne.s32.totalorder %s72, %s86
    %p88 = scmp.eq.s32.totalorder %s20, 0
    %p89 = por %p87, %p88
    %s91 = sadd.s32 %s90, 1
    %p94 = scmp.eq.s32.totalorder %s14, 1
    %p95 = scmp.ne.s32.totalorder %s90, %s92
    %p96 = scmp.eq.s32.totalorder %s14, 0
    %p97 = por %p95, %p96
    %p98 = scmp.ne.s32.totalorder %s90, %s92
    %p99 = scmp.eq.s32.totalorder %s19, 1
    %p100 = por %p98, %p99
    %p101 = scmp.ne.s32.totalorder %s92, %s93
    %p102 = scmp.eq.s32.totalorder %s19, 0
    %p103 = por %p101, %p102
    %p104 = scmp.ne.s32.totalorder %s92, %s93
    %p105 = scmp.eq.s32.totalorder %s20, 1
    %p106 = por %p104, %p105
    %p108 = scmp.ne.s32.totalorder %s93, %s107
    %p109 = scmp.eq.s32.totalorder %s20, 0
    %p110 = por %p108, %p109
    %s112 = sadd.s32 %s111, 1
    %p115 = scmp.eq.s32.totalorder %s14, 1
    %p116 = scmp.ne.s32.totalorder %s111, %s113
    %p117 = scmp.eq.s32.totalorder %s14, 0
    %p118 = por %p116, %p117
    %p119 = scmp.ne.s32.totalorder %s111, %s113
    %p120 = scmp.eq.s32.totalorder %s19, 1
    %p121 = por %p119, %p120
    %p122 = scmp.ne.s32.totalorder %s113, %s114
    %p123 = scmp.eq.s32.totalorder %s19, 0
    %p124 = por %p122, %p123
    %p125 = scmp.ne.s32.totalorder %s113, %s114
    %p126 = scmp.eq.s32.totalorder %s20, 1
    %p127 = por %p125, %p126
    %p129 = scmp.ne.s32.totalorder %s114, %s128
    %p130 = scmp.eq.s32.totalorder %s20, 0
    %p131 = por %p129, %p130
    %s133 = sadd.s32 %s132, 1
    %p136 = scmp.eq.s32.totalorder %s14, 1
    %p137 = scmp.ne.s32.totalorder %s132, %s134
    %p138 = scmp.eq.s32.totalorder %s14, 0
    %p139 = por %p137, %p138
    %p140 = scmp.ne.s32.totalorder %s132, %s134
    %p141 = scmp.eq.s32.totalorder %s19, 1
    %p142 = por %p140, %p141
    %p143 = scmp.ne.s32.totalorder %s134, %s135
    %p144 = scmp.eq.s32.totalorder %s19, 0
    %p145 = por %p143, %p144
    %p146 = scmp.ne.s32.totalorder %s134, %s135
    %p147 = scmp.eq.s32.totalorder %s20, 1
    %p148 = por %p146, %p147
    %p150 = scmp.ne.s32.totalorder %s135, %s149
    %p151 = scmp.eq.s32.totalorder %s20, 0
    %p152 = por %p150, %p151
    %s153 = ssub.s32 %s14, %s21
    %p154 = scmp.eq.s32.totalorder %s153, 0
    %s156 = sadd.s32 %s155, 1
    %s157 = scalar_select %p154, %s155, %s156
    %p160 = pneg %p154
    %p161 = scmp.eq.s32.totalorder %s14, 1
    %p162 = por %p160, %p161
    %p163 = scmp.ne.s32.totalorder %s155, %s158
    %p164 = scmp.eq.s32.totalorder %s14, 0
    %p165 = por %p163, %p164
    %p166 = scmp.ne.s32.totalorder %s155, %s158
    %p167 = scmp.eq.s32.totalorder %s19, 1
    %p168 = por %p166, %p167
    %p169 = scmp.ne.s32.totalorder %s158, %s159
    %p170 = scmp.eq.s32.totalorder %s19, 0
    %p171 = por %p169, %p170
    %p172 = scmp.ne.s32.totalorder %s158, %s159
    %p173 = scmp.eq.s32.totalorder %s20, 1
    %p174 = por %p172, %p173
    %p176 = scmp.ne.s32.totalorder %s159, %s175
    %p177 = scmp.eq.s32.totalorder %s20, 0
    %p178 = por %p176, %p177
    %p179 = scmp.le.s32.totalorder 1, %s14
    %p180 = scmp.lt.s32.totalorder %s14, 3
    %p181 = pnand %p179, %p180
    %p182 = pneg %p181
    // Predicated region
    $region9: #{critic_forward.9} parent=5 // pred_check
      _
    $region10: #{critic_forward.9} parent=5 // pred_check_branch
      %184 = sbr.rel (%p181) target = $region12
    $region11: #{critic_forward.9} parent=5 // pred_region
      %s185 = ssub.s32 %s14, 1
      // Predicated region
      $region13: #{critic_forward.9} parent=11 // pred_check
        %p186 = pneg %p61
      $region14: #{critic_forward.9} parent=11 // pred_check_branch
        %188 = sbr.rel (%p186) target = $region16
      $region15: #{critic_forward.9} parent=11 // pred_region
        _
      $region16: #{critic_forward.9} parent=11 // pred_fallthru
        _
      // Predicated region
      $region17: #{critic_forward.9} parent=11 // pred_check
        %p189 = pneg %p82
      $region18: #{critic_forward.9} parent=11 // pred_check_branch
        %191 = sbr.rel (%p189) target = $region20
      $region19: #{critic_forward.9} parent=11 // pred_region
        _
      $region20: #{critic_forward.9} parent=11 // pred_fallthru
        _
      // Predicated region
      $region21: #{critic_forward.9} parent=11 // pred_check
        %p192 = pneg %p103
      $region22: #{critic_forward.9} parent=11 // pred_check_branch
        %194 = sbr.rel (%p192) target = $region24
      $region23: #{critic_forward.9} parent=11 // pred_region
        _
      $region24: #{critic_forward.9} parent=11 // pred_fallthru
        _
      // Predicated region
      $region25: #{critic_forward.9} parent=11 // pred_check
        %p195 = pneg %p124
      $region26: #{critic_forward.9} parent=11 // pred_check_branch
        %197 = sbr.rel (%p195) target = $region28
      $region27: #{critic_forward.9} parent=11 // pred_region
        _
      $region28: #{critic_forward.9} parent=11 // pred_fallthru
        _
      // Predicated region
      $region29: #{critic_forward.9} parent=11 // pred_check
        %p198 = pneg %p145
      $region30: #{critic_forward.9} parent=11 // pred_check_branch
        %200 = sbr.rel (%p198) target = $region32
      $region31: #{critic_forward.9} parent=11 // pred_region
        _
      $region32: #{critic_forward.9} parent=11 // pred_fallthru
        _
    $region12: #{critic_forward.9} parent=5 // pred_fallthru
      _
    %p201 = scmp.lt.s32.totalorder %s14, 2
    // Predicated region
    $region33: #{critic_forward.9} parent=5 // pred_check
      %p202 = pneg %p201
    $region34: #{critic_forward.9} parent=5 // pred_check_branch
      %204 = sbr.rel (%p202) target = $region36
    $region35: #{critic_forward.9} parent=5 // pred_region
      // Predicated region
      $region37: #{critic_forward.9} parent=35 // pred_check
        %p205 = pneg %p34
      $region38: #{critic_forward.9} parent=35 // pred_check_branch
        %207 = sbr.rel (%p205) target = $region40
      $region39: #{critic_forward.9} parent=35 // pred_region
        %p208 = scmp.lt.s32.totalorder %s14, 1
        %s209 = scalar_select %p208, %s14, 1
        %s210 = smul.addr %s209, 64
        %s211 = smul.addr %s210, 4
        %s212 = scalar_lea.vmem %s0, %s211
      $region40: #{critic_forward.9} parent=35 // pred_fallthru
        _
    $region36: #{critic_forward.9} parent=5 // pred_fallthru
      _
    %p213 = scmp.le.s32.totalorder 1, %s14
    %p214 = scmp.lt.s32.totalorder %s14, 3
    %p215 = pnand %p213, %p214
    %p216 = pneg %p215
    // Predicated region
    $region41: #{critic_forward.9} parent=5 // pred_check
      _
    $region42: #{critic_forward.9} parent=5 // pred_check_branch
      %218 = sbr.rel (%p215) target = $region44
    $region43: #{critic_forward.9} parent=5 // pred_region
      %s219 = ssub.s32 %s14, 1
      %p220 = scmp.lt.s32.totalorder %s19, 1
      %s221 = scalar_select %p220, %s19, 1
      %s222 = smul.addr %s221, 64
      %s223 = smul.addr %s222, 4
      %s224 = scalar_lea.vmem %s0, %s223
      %p225 = pneg %p40
      %p226 = pneg %p37
      %p227 = pneg %p61
      %p228 = pneg %p58
      %p229 = pneg %p82
      %p230 = pneg %p79
      %p231 = pneg %p103
      %p232 = pneg %p100
      %p233 = pneg %p124
      %p234 = pneg %p121
      %p235 = pneg %p145
      %p236 = pneg %p142
      %p237 = pneg %p171
      %p238 = pneg %p168
      %p239 = scmp.lt.s32.totalorder %s19, 1
      %s240 = scalar_select %p239, %s19, 1
      %s241 = scalar_lea.vmem %s6, %s240
      %p242 = scmp.lt.s32.totalorder %s19, 1
      %s243 = scalar_select %p242, %s19, 1
      %s244 = smul.addr %s243, 64
      %s245 = smul.addr %s244, 4
      %s246 = scalar_lea.vmem %s0, %s245
      %p247 = scmp.lt.s32.totalorder %s19, 1
      %s248 = scalar_select %p247, %s19, 1
      %s249 = scalar_lea.vmem %s6, %s248
      %v250 = vld [vmem:[%s1] sm:$0xff]
      %v251 = vld [vmem:[%s1 + $0x8] sm:$0xff]
      %v252 = vld [vmem:[%s1 + $0x10] sm:$0xff]
      %v253 = vld [vmem:[%s1 + $0x18] sm:$0xff]
      %v254 = vld [vmem:[%s1 + $0x20] sm:$0xff]
      %v255 = vld [vmem:[%s1 + $0x28] sm:$0xff]
      %v256 = vld [vmem:[%s1 + $0x30] sm:$0xff]
      %v257 = vld [vmem:[%s1 + $0x38] sm:$0xff]
      %v258 = vld [vmem:[%s1 + $0x40] sm:$0xff]
      %v259 = vld [vmem:[%s1 + $0x48] sm:$0xff]
      %v260 = vld [vmem:[%s1 + $0x50] sm:$0xff]
      %v261 = vld [vmem:[%s1 + $0x58] sm:$0xff]
      %v262 = vld [vmem:[%s1 + $0x60] sm:$0xff]
      %v263 = vld [vmem:[%s1 + $0x68] sm:$0xff]
      %v264 = vld [vmem:[%s1 + $0x70] sm:$0xff]
      %v265 = vld [vmem:[%s1 + $0x78] sm:$0xff]
      %v266 = vld [vmem:[%s246] sm:$0xf]
      %v267 = vld [vmem:[%s246 + $0x4] sm:$0xf]
      %v268 = vld [vmem:[%s246 + $0x8] sm:$0xf]
      %v269 = vld [vmem:[%s246 + $0xc] sm:$0xf]
      %v270 = vld [vmem:[%s246 + $0x10] sm:$0xf]
      %v271 = vld [vmem:[%s246 + $0x14] sm:$0xf]
      %v272 = vld [vmem:[%s246 + $0x18] sm:$0xf]
      %v273 = vld [vmem:[%s246 + $0x1c] sm:$0xf]
      %v274 = vld [vmem:[%s246 + $0x20] sm:$0xf]
      %v275 = vld [vmem:[%s246 + $0x24] sm:$0xf]
      %v276 = vld [vmem:[%s246 + $0x28] sm:$0xf]
      %v277 = vld [vmem:[%s246 + $0x2c] sm:$0xf]
      %v278 = vld [vmem:[%s246 + $0x30] sm:$0xf]
      %v279 = vld [vmem:[%s246 + $0x34] sm:$0xf]
      %v280 = vld [vmem:[%s246 + $0x38] sm:$0xf]
      %v281 = vld [vmem:[%s246 + $0x3c] sm:$0xf]
      %v282 = vld [vmem:[%s246 + $0x40] sm:$0xf]
      %v283 = vld [vmem:[%s246 + $0x44] sm:$0xf]
      %v284 = vld [vmem:[%s246 + $0x48] sm:$0xf]
      %v285 = vld [vmem:[%s246 + $0x4c] sm:$0xf]
      %v286 = vld [vmem:[%s246 + $0x50] sm:$0xf]
      %v287 = vld [vmem:[%s246 + $0x54] sm:$0xf]
      %v288 = vld [vmem:[%s246 + $0x58] sm:$0xf]
      %v289 = vld [vmem:[%s246 + $0x5c] sm:$0xf]
      %v290 = vld [vmem:[%s246 + $0x60] sm:$0xf]
      %v291 = vld [vmem:[%s246 + $0x64] sm:$0xf]
      %v292 = vld [vmem:[%s246 + $0x68] sm:$0xf]
      %v293 = vld [vmem:[%s246 + $0x6c] sm:$0xf]
      %v294 = vld [vmem:[%s246 + $0x70] sm:$0xf]
      %v295 = vld [vmem:[%s246 + $0x74] sm:$0xf]
      %v296 = vld [vmem:[%s246 + $0x78] sm:$0xf]
      %v297 = vld [vmem:[%s246 + $0x7c] sm:$0xf]
      %v298 = vld [vmem:[%s246 + $0x80] sm:$0xf]
      %v299 = vld [vmem:[%s246 + $0x84] sm:$0xf]
      %v300 = vld [vmem:[%s246 + $0x88] sm:$0xf]
      %v301 = vld [vmem:[%s246 + $0x8c] sm:$0xf]
      %v302 = vld [vmem:[%s246 + $0x90] sm:$0xf]
      %v303 = vld [vmem:[%s246 + $0x94] sm:$0xf]
      %v304 = vld [vmem:[%s246 + $0x98] sm:$0xf]
      %v305 = vld [vmem:[%s246 + $0x9c] sm:$0xf]
      %v306 = vld [vmem:[%s246 + $0xa0] sm:$0xf]
      %v307 = vld [vmem:[%s246 + $0xa4] sm:$0xf]
      %v308 = vld [vmem:[%s246 + $0xa8] sm:$0xf]
      %v309 = vld [vmem:[%s246 + $0xac] sm:$0xf]
      %v310 = vld [vmem:[%s246 + $0xb0] sm:$0xf]
      %v311 = vld [vmem:[%s246 + $0xb4] sm:$0xf]
      %v312 = vld [vmem:[%s246 + $0xb8] sm:$0xf]
      %v313 = vld [vmem:[%s246 + $0xbc] sm:$0xf]
      %v314 = vld [vmem:[%s246 + $0xc0] sm:$0xf]
      %v315 = vld [vmem:[%s246 + $0xc4] sm:$0xf]
      %v316 = vld [vmem:[%s246 + $0xc8] sm:$0xf]
      %v317 = vld [vmem:[%s246 + $0xcc] sm:$0xf]
      %v318 = vld [vmem:[%s246 + $0xd0] sm:$0xf]
      %v319 = vld [vmem:[%s246 + $0xd4] sm:$0xf]
      %v320 = vld [vmem:[%s246 + $0xd8] sm:$0xf]
      %v321 = vld [vmem:[%s246 + $0xdc] sm:$0xf]
      %v322 = vld [vmem:[%s246 + $0xe0] sm:$0xf]
      %v323 = vld [vmem:[%s246 + $0xe4] sm:$0xf]
      %v324 = vld [vmem:[%s246 + $0xe8] sm:$0xf]
      %v325 = vld [vmem:[%s246 + $0xec] sm:$0xf]
      %v326 = vld [vmem:[%s246 + $0xf0] sm:$0xf]
      %v327 = vld [vmem:[%s246 + $0xf4] sm:$0xf]
      %v328 = vld [vmem:[%s246 + $0xf8] sm:$0xf]
      %v329 = vld [vmem:[%s246 + $0xfc] sm:$0xf]
      %v346 = vunpack.c.l.b16 %v250
      %v347 = vunpack.c.h.b16 %v250
      %v348 = vunpack.c.l.b16 %v251
      %v349 = vunpack.c.h.b16 %v251
      %v350 = vunpack.c.l.b16 %v252
      %v351 = vunpack.c.h.b16 %v252
      %v352 = vunpack.c.l.b16 %v253
      %v353 = vunpack.c.h.b16 %v253
      %v354 = vunpack.c.l.b16 %v254
      %v355 = vunpack.c.h.b16 %v254
      %v356 = vunpack.c.l.b16 %v255
      %v357 = vunpack.c.h.b16 %v255
      %v358 = vunpack.c.l.b16 %v256
      %v359 = vunpack.c.h.b16 %v256
      %v360 = vunpack.c.l.b16 %v257
      %v361 = vunpack.c.h.b16 %v257
      %v362 = vunpack.c.l.b16 %v258
      %v363 = vunpack.c.h.b16 %v258
      %v364 = vunpack.c.l.b16 %v259
      %v365 = vunpack.c.h.b16 %v259
      %v366 = vunpack.c.l.b16 %v260
      %v367 = vunpack.c.h.b16 %v260
      %v368 = vunpack.c.l.b16 %v261
      %v369 = vunpack.c.h.b16 %v261
      %v370 = vunpack.c.l.b16 %v262
      %v371 = vunpack.c.h.b16 %v262
      %v372 = vunpack.c.l.b16 %v263
      %v373 = vunpack.c.h.b16 %v263
      %v374 = vunpack.c.l.b16 %v264
      %v375 = vunpack.c.h.b16 %v264
      %v376 = vunpack.c.l.b16 %v265
      %v377 = vunpack.c.h.b16 %v265
      %v378 = vpack.c.b16 %v350, %v346
      %v379 = vpack.c.b16 %v351, %v347
      %v380 = vpack.c.b16 %v352, %v348
      %v381 = vpack.c.b16 %v353, %v349
      %v382 = vpack.c.b16 %v358, %v354
      %v383 = vpack.c.b16 %v359, %v355
      %v384 = vpack.c.b16 %v360, %v356
      %v385 = vpack.c.b16 %v361, %v357
      %v386 = vpack.c.b16 %v366, %v362
      %v387 = vpack.c.b16 %v367, %v363
      %v388 = vpack.c.b16 %v368, %v364
      %v389 = vpack.c.b16 %v369, %v365
      %v390 = vpack.c.b16 %v374, %v370
      %v391 = vpack.c.b16 %v375, %v371
      %v392 = vpack.c.b16 %v376, %v372
      %v393 = vpack.c.b16 %v377, %v373
      %v474 = vunpack.c.l.b16 %v266
      %v475 = vunpack.c.l.b16 %v267
      %v476 = vunpack.c.l.b16 %v268
      %v477 = vunpack.c.l.b16 %v269
      %v478 = vunpack.c.l.b16 %v270
      %v479 = vunpack.c.l.b16 %v271
      %v480 = vunpack.c.l.b16 %v272
      %v481 = vunpack.c.l.b16 %v273
      %v482 = vunpack.c.l.b16 %v274
      %v483 = vunpack.c.l.b16 %v275
      %v484 = vunpack.c.l.b16 %v276
      %v485 = vunpack.c.l.b16 %v277
      %v486 = vunpack.c.l.b16 %v278
      %v487 = vunpack.c.l.b16 %v279
      %v488 = vunpack.c.l.b16 %v280
      %v489 = vunpack.c.l.b16 %v281
      %v490 = vunpack.c.l.b16 %v282
      %v491 = vunpack.c.l.b16 %v283
      %v492 = vunpack.c.l.b16 %v284
      %v493 = vunpack.c.l.b16 %v285
      %v494 = vunpack.c.l.b16 %v286
      %v495 = vunpack.c.l.b16 %v287
      %v496 = vunpack.c.l.b16 %v288
      %v497 = vunpack.c.l.b16 %v289
      %v498 = vunpack.c.l.b16 %v290
      %v499 = vunpack.c.l.b16 %v291
      %v500 = vunpack.c.l.b16 %v292
      %v501 = vunpack.c.l.b16 %v293
      %v502 = vunpack.c.l.b16 %v294
      %v503 = vunpack.c.l.b16 %v295
      %v504 = vunpack.c.l.b16 %v296
      %v505 = vunpack.c.l.b16 %v297
      %v506 = vunpack.c.l.b16 %v298
      %v507 = vunpack.c.l.b16 %v299
      %v508 = vunpack.c.l.b16 %v300
      %v509 = vunpack.c.l.b16 %v301
      %v510 = vunpack.c.l.b16 %v302
      %v511 = vunpack.c.l.b16 %v303
      %v512 = vunpack.c.l.b16 %v304
      %v513 = vunpack.c.l.b16 %v305
      %v514 = vunpack.c.l.b16 %v306
      %v515 = vunpack.c.l.b16 %v307
      %v516 = vunpack.c.l.b16 %v308
      %v517 = vunpack.c.l.b16 %v309
      %v518 = vunpack.c.l.b16 %v310
      %v519 = vunpack.c.l.b16 %v311
      %v520 = vunpack.c.l.b16 %v312
      %v521 = vunpack.c.l.b16 %v313
      %v522 = vunpack.c.l.b16 %v314
      %v523 = vunpack.c.l.b16 %v315
      %v524 = vunpack.c.l.b16 %v316
      %v525 = vunpack.c.l.b16 %v317
      %v526 = vunpack.c.l.b16 %v318
      %v527 = vunpack.c.l.b16 %v319
      %v528 = vunpack.c.l.b16 %v320
      %v529 = vunpack.c.l.b16 %v321
      %v530 = vunpack.c.l.b16 %v322
      %v531 = vunpack.c.l.b16 %v323
      %v532 = vunpack.c.l.b16 %v324
      %v533 = vunpack.c.l.b16 %v325
      %v534 = vunpack.c.l.b16 %v326
      %v535 = vunpack.c.l.b16 %v327
      %v536 = vunpack.c.l.b16 %v328
      %v537 = vunpack.c.l.b16 %v329
      %v538 = vpack.c.b16 %v475, %v474
      %v539 = vpack.c.b16 %v477, %v476
      %v540 = vpack.c.b16 %v479, %v478
      %v541 = vpack.c.b16 %v481, %v480
      %v542 = vpack.c.b16 %v483, %v482
      %v543 = vpack.c.b16 %v485, %v484
      %v544 = vpack.c.b16 %v487, %v486
      %v545 = vpack.c.b16 %v489, %v488
      %v546 = vpack.c.b16 %v491, %v490
      %v547 = vpack.c.b16 %v493, %v492
      %v548 = vpack.c.b16 %v495, %v494
      %v549 = vpack.c.b16 %v497, %v496
      %v550 = vpack.c.b16 %v499, %v498
      %v551 = vpack.c.b16 %v501, %v500
      %v552 = vpack.c.b16 %v503, %v502
      %v553 = vpack.c.b16 %v505, %v504
      %v554 = vpack.c.b16 %v507, %v506
      %v555 = vpack.c.b16 %v509, %v508
      %v556 = vpack.c.b16 %v511, %v510
      %v557 = vpack.c.b16 %v513, %v512
      %v558 = vpack.c.b16 %v515, %v514
      %v559 = vpack.c.b16 %v517, %v516
      %v560 = vpack.c.b16 %v519, %v518
      %v561 = vpack.c.b16 %v521, %v520
      %v562 = vpack.c.b16 %v523, %v522
      %v563 = vpack.c.b16 %v525, %v524
      %v564 = vpack.c.b16 %v527, %v526
      %v565 = vpack.c.b16 %v529, %v528
      %v566 = vpack.c.b16 %v531, %v530
      %v567 = vpack.c.b16 %v533, %v532
      %v568 = vpack.c.b16 %v535, %v534
      %v569 = vpack.c.b16 %v537, %v536
      %602 = vmatpush.bf16.msra.mxu0 %v545
      %603 = vmatpush.bf16.msra.mxu0 %v544
      %604 = vmatpush.bf16.msra.mxu0 %v543
      %605 = vmatpush.bf16.msra.mxu0 %v542
      %606 = vmatpush.bf16.msra.mxu0 %v541
      %607 = vmatpush.bf16.msra.mxu0 %v540
      %608 = vmatpush.bf16.msra.mxu0 %v539
      %609 = vmatpush.bf16.msra.mxu0 %v538
      %610 = vmatmul.bf16.gmra.mxu0 %v378
      %v611 = vpop.f32.mrf.mxu0
      %v612 = vadd.f32 0.0, %v611
      %v613 = vpop.f32.mrf.mxu0
      %v614 = vadd.f32 0.0, %v613
      %615 = vmatmul.bf16.gmra.mxu0 %v382
      %v616 = vpop.f32.mrf.mxu0
      %v617 = vadd.f32 0.0, %v616
      %v618 = vpop.f32.mrf.mxu0
      %v619 = vadd.f32 0.0, %v618
      %620 = vmatmul.bf16.gmra.mxu0 %v386
      %v621 = vpop.f32.mrf.mxu0
      %v622 = vadd.f32 0.0, %v621
      %v623 = vpop.f32.mrf.mxu0
      %v624 = vadd.f32 0.0, %v623
      %625 = vmatmul.bf16.gmra.mxu0 %v390
      %v626 = vpop.f32.mrf.mxu0
      %v627 = vadd.f32 0.0, %v626
      %v628 = vpop.f32.mrf.mxu0
      %v629 = vadd.f32 0.0, %v628
      %630 = vdwg.mxu0
      %631 = vmatpush.bf16.msra.mxu0 %v553
      %632 = vmatpush.bf16.msra.mxu0 %v552
      %633 = vmatpush.bf16.msra.mxu0 %v551
      %634 = vmatpush.bf16.msra.mxu0 %v550
      %635 = vmatpush.bf16.msra.mxu0 %v549
      %636 = vmatpush.bf16.msra.mxu0 %v548
      %637 = vmatpush.bf16.msra.mxu0 %v547
      %638 = vmatpush.bf16.msra.mxu0 %v546
      %639 = vmatmul.bf16.gmra.mxu0 %v379
      %v640 = vpop.f32.mrf.mxu0
      %v641 = vadd.f32 %v612, %v640
      %v642 = vpop.f32.mrf.mxu0
      %v643 = vadd.f32 %v614, %v642
      %644 = vmatmul.bf16.gmra.mxu0 %v383
      %v645 = vpop.f32.mrf.mxu0
      %v646 = vadd.f32 %v617, %v645
      %v647 = vpop.f32.mrf.mxu0
      %v648 = vadd.f32 %v619, %v647
      %649 = vmatmul.bf16.gmra.mxu0 %v387
      %v650 = vpop.f32.mrf.mxu0
      %v651 = vadd.f32 %v622, %v650
      %v652 = vpop.f32.mrf.mxu0
      %v653 = vadd.f32 %v624, %v652
      %654 = vmatmul.bf16.gmra.mxu0 %v391
      %v655 = vpop.f32.mrf.mxu0
      %v656 = vadd.f32 %v627, %v655
      %v657 = vpop.f32.mrf.mxu0
      %v658 = vadd.f32 %v629, %v657
      %659 = vdwg.mxu0
      %660 = vmatpush.bf16.msra.mxu0 %v561
      %661 = vmatpush.bf16.msra.mxu0 %v560
      %662 = vmatpush.bf16.msra.mxu0 %v559
      %663 = vmatpush.bf16.msra.mxu0 %v558
      %664 = vmatpush.bf16.msra.mxu0 %v557
      %665 = vmatpush.bf16.msra.mxu0 %v556
      %666 = vmatpush.bf16.msra.mxu0 %v555
      %667 = vmatpush.bf16.msra.mxu0 %v554
      %668 = vmatmul.bf16.gmra.mxu0 %v380
      %v669 = vpop.f32.mrf.mxu0
      %v670 = vadd.f32 %v641, %v669
      %v671 = vpop.f32.mrf.mxu0
      %v672 = vadd.f32 %v643, %v671
      %673 = vmatmul.bf16.gmra.mxu0 %v384
      %v674 = vpop.f32.mrf.mxu0
      %v675 = vadd.f32 %v646, %v674
      %v676 = vpop.f32.mrf.mxu0
      %v677 = vadd.f32 %v648, %v676
      %678 = vmatmul.bf16.gmra.mxu0 %v388
      %v679 = vpop.f32.mrf.mxu0
      %v680 = vadd.f32 %v651, %v679
      %v681 = vpop.f32.mrf.mxu0
      %v682 = vadd.f32 %v653, %v681
      %683 = vmatmul.bf16.gmra.mxu0 %v392
      %v684 = vpop.f32.mrf.mxu0
      %v685 = vadd.f32 %v656, %v684
      %v686 = vpop.f32.mrf.mxu0
      %v687 = vadd.f32 %v658, %v686
      %688 = vdwg.mxu0
      %689 = vmatpush.bf16.msra.mxu0 %v569
      %690 = vmatpush.bf16.msra.mxu0 %v568
      %691 = vmatpush.bf16.msra.mxu0 %v567
      %692 = vmatpush.bf16.msra.mxu0 %v566
      %693 = vmatpush.bf16.msra.mxu0 %v565
      %694 = vmatpush.bf16.msra.mxu0 %v564
      %695 = vmatpush.bf16.msra.mxu0 %v563
      %696 = vmatpush.bf16.msra.mxu0 %v562
      %697 = vmatmul.bf16.gmra.mxu0 %v381
      %v698 = vpop.f32.mrf.mxu0
      %v699 = vadd.f32 %v670, %v698
      %v700 = vpop.f32.mrf.mxu0
      %v701 = vadd.f32 %v672, %v700
      %702 = vmatmul.bf16.gmra.mxu0 %v385
      %v703 = vpop.f32.mrf.mxu0
      %v704 = vadd.f32 %v675, %v703
      %v705 = vpop.f32.mrf.mxu0
      %v706 = vadd.f32 %v677, %v705
      %707 = vmatmul.bf16.gmra.mxu0 %v389
      %v708 = vpop.f32.mrf.mxu0
      %v709 = vadd.f32 %v680, %v708
      %v710 = vpop.f32.mrf.mxu0
      %v711 = vadd.f32 %v682, %v710
      %712 = vmatmul.bf16.gmra.mxu0 %v393
      %v713 = vpop.f32.mrf.mxu0
      %v714 = vadd.f32 %v685, %v713
      %v715 = vpop.f32.mrf.mxu0
      %v716 = vadd.f32 %v687, %v715
      %717 = vdwg.mxu0
      %vm718 = vcmask 130048
      %v719 = vsel %vm718, %v699, 0.0
      %720 = vadd.xlane.f32.xlu0 %v719
      %v721 = vpop.xlane.xlu0 %720
      %v722 = vsel %vm718, %v701, 0.0
      %723 = vadd.xlane.f32.xlu0 %v722
      %v724 = vpop.xlane.xlu0 %723
      %v725 = vsel %vm718, %v704, 0.0
      %726 = vadd.xlane.f32.xlu0 %v725
      %v727 = vpop.xlane.xlu0 %726
      %v728 = vsel %vm718, %v706, 0.0
      %729 = vadd.xlane.f32.xlu0 %v728
      %v730 = vpop.xlane.xlu0 %729
      %v731 = vsel %vm718, %v709, 0.0
      %732 = vadd.xlane.f32.xlu0 %v731
      %v733 = vpop.xlane.xlu0 %732
      %v734 = vsel %vm718, %v711, 0.0
      %735 = vadd.xlane.f32.xlu0 %v734
      %v736 = vpop.xlane.xlu0 %735
      %v737 = vsel %vm718, %v714, 0.0
      %738 = vadd.xlane.f32.xlu0 %v737
      %v739 = vpop.xlane.xlu0 %738
      %v740 = vsel %vm718, %v716, 0.0
      %741 = vadd.xlane.f32.xlu0 %v740
      %v742 = vpop.xlane.xlu0 %741
      %v743 = vrcp.pop 16.0
      %v744 = vmul.f32 16.0, %v743
      %v745 = vsub.f32 1.0, %v744
      %v746 = vmul.f32 %v743, %v745
      %v747 = vadd.f32 %v743, %v746
      %vm748 = vweird.f32 %v743
      %v749 = vsel %vm748, %v743, %v747
      %v750 = vmul.f32 %v721, %v749
      %v751 = vmul.f32 %v724, %v749
      %v752 = vmul.f32 %v727, %v749
      %v753 = vmul.f32 %v730, %v749
      %v754 = vmul.f32 %v733, %v749
      %v755 = vmul.f32 %v736, %v749
      %v756 = vmul.f32 %v739, %v749
      %v757 = vmul.f32 %v742, %v749
      %v758 = vsub.f32 %v699, %v750
      %v759 = vsub.f32 %v701, %v751
      %v760 = vsub.f32 %v704, %v752
      %v761 = vsub.f32 %v706, %v753
      %v762 = vsub.f32 %v709, %v754
      %v763 = vsub.f32 %v711, %v755
      %v764 = vsub.f32 %v714, %v756
      %v765 = vsub.f32 %v716, %v757
      %v766 = vmul.f32 %v758, %v758
      %v767 = vmul.f32 %v759, %v759
      %v768 = vmul.f32 %v760, %v760
      %v769 = vmul.f32 %v761, %v761
      %v770 = vmul.f32 %v762, %v762
      %v771 = vmul.f32 %v763, %v763
      %v772 = vmul.f32 %v764, %v764
      %v773 = vmul.f32 %v765, %v765
      %v774 = vsel %vm718, %v766, 0.0
      %775 = vadd.xlane.f32.xlu0 %v774
      %v776 = vpop.xlane.xlu0 %775
      %v777 = vsel %vm718, %v767, 0.0
      %778 = vadd.xlane.f32.xlu0 %v777
      %v779 = vpop.xlane.xlu0 %778
      %v780 = vsel %vm718, %v768, 0.0
      %781 = vadd.xlane.f32.xlu0 %v780
      %v782 = vpop.xlane.xlu0 %781
      %v783 = vsel %vm718, %v769, 0.0
      %784 = vadd.xlane.f32.xlu0 %v783
      %v785 = vpop.xlane.xlu0 %784
      %v786 = vsel %vm718, %v770, 0.0
      %787 = vadd.xlane.f32.xlu0 %v786
      %v788 = vpop.xlane.xlu0 %787
      %v789 = vsel %vm718, %v771, 0.0
      %790 = vadd.xlane.f32.xlu0 %v789
      %v791 = vpop.xlane.xlu0 %790
      %v792 = vsel %vm718, %v772, 0.0
      %793 = vadd.xlane.f32.xlu0 %v792
      %v794 = vpop.xlane.xlu0 %793
      %v795 = vsel %vm718, %v773, 0.0
      %796 = vadd.xlane.f32.xlu0 %v795
      %v797 = vpop.xlane.xlu0 %796
      %v798 = vmul.f32 %v776, %v749
      %v799 = vmul.f32 %v779, %v749
      %v800 = vmul.f32 %v782, %v749
      %v801 = vmul.f32 %v785, %v749
      %v802 = vmul.f32 %v788, %v749
      %v803 = vmul.f32 %v791, %v749
      %v804 = vmul.f32 %v794, %v749
      %v805 = vmul.f32 %v797, %v749
      %v806 = vadd.f32 %v798, 1e-05
      %v807 = vadd.f32 %v799, 1e-05
      %v808 = vadd.f32 %v800, 1e-05
      %v809 = vadd.f32 %v801, 1e-05
      %v810 = vadd.f32 %v802, 1e-05
      %v811 = vadd.f32 %v803, 1e-05
      %v812 = vadd.f32 %v804, 1e-05
      %v813 = vadd.f32 %v805, 1e-05
      %v814 = vrsqrt.pop %v806
      %v815 = vmul.f32 %v814, %v806
      %v816 = vmul.f32 %v815, %v814
      %v817 = vmul.f32 0.5, %v816
      %v818 = vsub.f32 1.5, %v817
      %v819 = vmul.f32 %v814, %v818
      %vm820 = vweird.f32 %v806
      %vm821 = vweird.f32 %v814
      %vm822 = vmor %vm820, %vm821
      %v823 = vsel %vm822, %v814, %v819
      %v824 = vrsqrt.pop %v807
      %v825 = vmul.f32 %v824, %v807
      %v826 = vmul.f32 %v825, %v824
      %v827 = vmul.f32 0.5, %v826
      %v828 = vsub.f32 1.5, %v827
      %v829 = vmul.f32 %v824, %v828
      %vm830 = vweird.f32 %v807
      %vm831 = vweird.f32 %v824
      %vm832 = vmor %vm830, %vm831
      %v833 = vsel %vm832, %v824, %v829
      %v834 = vrsqrt.pop %v808
      %v835 = vmul.f32 %v834, %v808
      %v836 = vmul.f32 %v835, %v834
      %v837 = vmul.f32 0.5, %v836
      %v838 = vsub.f32 1.5, %v837
      %v839 = vmul.f32 %v834, %v838
      %vm840 = vweird.f32 %v808
      %vm841 = vweird.f32 %v834
      %vm842 = vmor %vm840, %vm841
      %v843 = vsel %vm842, %v834, %v839
      %v844 = vrsqrt.pop %v809
      %v845 = vmul.f32 %v844, %v809
      %v846 = vmul.f32 %v845, %v844
      %v847 = vmul.f32 0.5, %v846
      %v848 = vsub.f32 1.5, %v847
      %v849 = vmul.f32 %v844, %v848
      %vm850 = vweird.f32 %v809
      %vm851 = vweird.f32 %v844
      %vm852 = vmor %vm850, %vm851
      %v853 = vsel %vm852, %v844, %v849
      %v854 = vrsqrt.pop %v810
      %v855 = vmul.f32 %v854, %v810
      %v856 = vmul.f32 %v855, %v854
      %v857 = vmul.f32 0.5, %v856
      %v858 = vsub.f32 1.5, %v857
      %v859 = vmul.f32 %v854, %v858
      %vm860 = vweird.f32 %v810
      %vm861 = vweird.f32 %v854
      %vm862 = vmor %vm860, %vm861
      %v863 = vsel %vm862, %v854, %v859
      %v864 = vrsqrt.pop %v811
      %v865 = vmul.f32 %v864, %v811
      %v866 = vmul.f32 %v865, %v864
      %v867 = vmul.f32 0.5, %v866
      %v868 = vsub.f32 1.5, %v867
      %v869 = vmul.f32 %v864, %v868
      %vm870 = vweird.f32 %v811
      %vm871 = vweird.f32 %v864
      %vm872 = vmor %vm870, %vm871
      %v873 = vsel %vm872, %v864, %v869
      %v874 = vrsqrt.pop %v812
      %v875 = vmul.f32 %v874, %v812
      %v876 = vmul.f32 %v875, %v874
      %v877 = vmul.f32 0.5, %v876
      %v878 = vsub.f32 1.5, %v877
      %v879 = vmul.f32 %v874, %v878
      %vm880 = vweird.f32 %v812
      %vm881 = vweird.f32 %v874
      %vm882 = vmor %vm880, %vm881
      %v883 = vsel %vm882, %v874, %v879
      %v884 = vrsqrt.pop %v813
      %v885 = vmul.f32 %v884, %v813
      %v886 = vmul.f32 %v885, %v884
      %v887 = vmul.f32 0.5, %v886
      %v888 = vsub.f32 1.5, %v887
      %v889 = vmul.f32 %v884, %v888
      %vm890 = vweird.f32 %v813
      %vm891 = vweird.f32 %v884
      %vm892 = vmor %vm890, %vm891
      %v893 = vsel %vm892, %v884, %v889
      %v894 = vmul.f32 %v758, %v823
      %v895 = vmul.f32 %v759, %v833
      %v896 = vmul.f32 %v760, %v843
      %v897 = vmul.f32 %v761, %v853
      %v898 = vmul.f32 %v762, %v863
      %v899 = vmul.f32 %v763, %v873
      %v900 = vmul.f32 %v764, %v883
      %v901 = vmul.f32 %v765, %v893
      %v902 = vld [vmem:[%s2] sm:$0xff]
      %v903 = vld [vmem:[%s2 + $0x8] sm:$0xff]
      %v904 = vld [vmem:[%s2 + $0x10] sm:$0xff]
      %v905 = vld [vmem:[%s2 + $0x18] sm:$0xff]
      %v906 = vld [vmem:[%s2 + $0x20] sm:$0xff]
      %v907 = vld [vmem:[%s2 + $0x28] sm:$0xff]
      %v908 = vld [vmem:[%s2 + $0x30] sm:$0xff]
      %v909 = vld [vmem:[%s2 + $0x38] sm:$0xff]
      %911 = vset.pattern.permute.xlu0 0
      %912 = vperm.xlu0 %911, %v902
      %v913 = vpop.permute.xlu0 %912
      %916 = vset.pattern.permute.xlu0 0
      %917 = vperm.xlu0 %916, %v903
      %v918 = vpop.permute.xlu0 %917
      %921 = vset.pattern.permute.xlu0 0
      %922 = vperm.xlu0 %921, %v904
      %v923 = vpop.permute.xlu0 %922
      %926 = vset.pattern.permute.xlu0 0
      %927 = vperm.xlu0 %926, %v905
      %v928 = vpop.permute.xlu0 %927
      %931 = vset.pattern.permute.xlu0 0
      %932 = vperm.xlu0 %931, %v906
      %v933 = vpop.permute.xlu0 %932
      %936 = vset.pattern.permute.xlu0 0
      %937 = vperm.xlu0 %936, %v907
      %v938 = vpop.permute.xlu0 %937
      %941 = vset.pattern.permute.xlu0 0
      %942 = vperm.xlu0 %941, %v908
      %v943 = vpop.permute.xlu0 %942
      %946 = vset.pattern.permute.xlu0 0
      %947 = vperm.xlu0 %946, %v909
      %v948 = vpop.permute.xlu0 %947
      %v950 = vmul.f32 %v894, %v913
      %v951 = vmul.f32 %v895, %v918
      %v952 = vmul.f32 %v896, %v923
      %v953 = vmul.f32 %v897, %v928
      %v954 = vmul.f32 %v898, %v933
      %v955 = vmul.f32 %v899, %v938
      %v956 = vmul.f32 %v900, %v943
      %v957 = vmul.f32 %v901, %v948
      %v958 = vld [vmem:[%s3] sm:$0xff]
      %v959 = vld [vmem:[%s3 + $0x8] sm:$0xff]
      %v960 = vld [vmem:[%s3 + $0x10] sm:$0xff]
      %v961 = vld [vmem:[%s3 + $0x18] sm:$0xff]
      %v962 = vld [vmem:[%s3 + $0x20] sm:$0xff]
      %v963 = vld [vmem:[%s3 + $0x28] sm:$0xff]
      %v964 = vld [vmem:[%s3 + $0x30] sm:$0xff]
      %v965 = vld [vmem:[%s3 + $0x38] sm:$0xff]
      %967 = vset.pattern.permute.xlu0 0
      %968 = vperm.xlu0 %967, %v958
      %v969 = vpop.permute.xlu0 %968
      %972 = vset.pattern.permute.xlu0 0
      %973 = vperm.xlu0 %972, %v959
      %v974 = vpop.permute.xlu0 %973
      %977 = vset.pattern.permute.xlu0 0
      %978 = vperm.xlu0 %977, %v960
      %v979 = vpop.permute.xlu0 %978
      %982 = vset.pattern.permute.xlu0 0
      %983 = vperm.xlu0 %982, %v961
      %v984 = vpop.permute.xlu0 %983
      %987 = vset.pattern.permute.xlu0 0
      %988 = vperm.xlu0 %987, %v962
      %v989 = vpop.permute.xlu0 %988
      %992 = vset.pattern.permute.xlu0 0
      %993 = vperm.xlu0 %992, %v963
      %v994 = vpop.permute.xlu0 %993
      %997 = vset.pattern.permute.xlu0 0
      %998 = vperm.xlu0 %997, %v964
      %v999 = vpop.permute.xlu0 %998
      %1002 = vset.pattern.permute.xlu0 0
      %1003 = vperm.xlu0 %1002, %v965
      %v1004 = vpop.permute.xlu0 %1003
      %v1006 = vadd.f32 %v950, %v969
      %v1007 = vadd.f32 %v951, %v974
      %v1008 = vadd.f32 %v952, %v979
      %v1009 = vadd.f32 %v953, %v984
      %v1010 = vadd.f32 %v954, %v989
      %v1011 = vadd.f32 %v955, %v994
      %v1012 = vadd.f32 %v956, %v999
      %v1013 = vadd.f32 %v957, %v1004
      %vm1014 = vcmp.gt.f32.partialorder %v1006, 0.0
      %vm1015 = vcmp.gt.f32.partialorder %v1007, 0.0
      %vm1016 = vcmp.gt.f32.partialorder %v1008, 0.0
      %vm1017 = vcmp.gt.f32.partialorder %v1009, 0.0
      %vm1018 = vcmp.gt.f32.partialorder %v1010, 0.0
      %vm1019 = vcmp.gt.f32.partialorder %v1011, 0.0
      %vm1020 = vcmp.gt.f32.partialorder %v1012, 0.0
      %vm1021 = vcmp.gt.f32.partialorder %v1013, 0.0
      %v1022 = vmul.f32 %v1006, 0.2
      %v1023 = vmul.f32 %v1007, 0.2
      %v1024 = vmul.f32 %v1008, 0.2
      %v1025 = vmul.f32 %v1009, 0.2
      %v1026 = vmul.f32 %v1010, 0.2
      %v1027 = vmul.f32 %v1011, 0.2
      %v1028 = vmul.f32 %v1012, 0.2
      %v1029 = vmul.f32 %v1013, 0.2
      %v1030 = vsel %vm1014, %v1006, %v1022
      %v1031 = vsel %vm1015, %v1007, %v1023
      %v1032 = vsel %vm1016, %v1008, %v1024
      %v1033 = vsel %vm1017, %v1009, %v1025
      %v1034 = vsel %vm1018, %v1010, %v1026
      %v1035 = vsel %vm1019, %v1011, %v1027
      %v1036 = vsel %vm1020, %v1012, %v1028
      %v1037 = vsel %vm1021, %v1013, %v1029
      %v1038 = vld [vmem:[%s4] sm:$0xff]
      %v1039 = vld [vmem:[%s4 + $0x8] sm:$0xff]
      %v1040 = vld [vmem:[%s4 + $0x10] sm:$0xff]
      %v1041 = vld [vmem:[%s4 + $0x18] sm:$0xff]
      %v1042 = vld [vmem:[%s4 + $0x20] sm:$0xff]
      %v1043 = vld [vmem:[%s4 + $0x28] sm:$0xff]
      %v1044 = vld [vmem:[%s4 + $0x30] sm:$0xff]
      %v1045 = vld [vmem:[%s4 + $0x38] sm:$0xff]
      %v1046 = vmul.f32 %v1030, %v1038
      %v1047 = vmul.f32 %v1031, %v1039
      %v1048 = vmul.f32 %v1032, %v1040
      %v1049 = vmul.f32 %v1033, %v1041
      %v1050 = vmul.f32 %v1034, %v1042
      %v1051 = vmul.f32 %v1035, %v1043
      %v1052 = vmul.f32 %v1036, %v1044
      %v1053 = vmul.f32 %v1037, %v1045
      %v1054 = vsel %vm718, %v1046, 0.0
      %1055 = vadd.xlane.f32.xlu0 %v1054
      %v1056 = vpop.xlane.xlu0 %1055
      %v1057 = vsel %vm718, %v1047, 0.0
      %1058 = vadd.xlane.f32.xlu0 %v1057
      %v1059 = vpop.xlane.xlu0 %1058
      %v1060 = vsel %vm718, %v1048, 0.0
      %1061 = vadd.xlane.f32.xlu0 %v1060
      %v1062 = vpop.xlane.xlu0 %1061
      %v1063 = vsel %vm718, %v1049, 0.0
      %1064 = vadd.xlane.f32.xlu0 %v1063
      %v1065 = vpop.xlane.xlu0 %1064
      %v1066 = vsel %vm718, %v1050, 0.0
      %1067 = vadd.xlane.f32.xlu0 %v1066
      %v1068 = vpop.xlane.xlu0 %1067
      %v1069 = vsel %vm718, %v1051, 0.0
      %1070 = vadd.xlane.f32.xlu0 %v1069
      %v1071 = vpop.xlane.xlu0 %1070
      %v1072 = vsel %vm718, %v1052, 0.0
      %1073 = vadd.xlane.f32.xlu0 %v1072
      %v1074 = vpop.xlane.xlu0 %1073
      %v1075 = vsel %vm718, %v1053, 0.0
      %1076 = vadd.xlane.f32.xlu0 %v1075
      %v1077 = vpop.xlane.xlu0 %1076
      %v1078 = vadd.f32 %v1056, %v1059
      %v1079 = vadd.f32 %v1078, %v1062
      %v1080 = vadd.f32 %v1079, %v1065
      %v1081 = vadd.f32 %v1080, %v1068
      %v1082 = vadd.f32 %v1081, %v1071
      %v1083 = vadd.f32 %v1082, %v1074
      %v1084 = vadd.f32 %v1083, %v1077
      %v1085 = vrot.slane %v1084, 4
      %v1086 = vadd.f32 %v1084, %v1085
      %v1087 = vrot.slane %v1086, 2
      %v1088 = vadd.f32 %v1086, %v1087
      %v1089 = vrot.slane %v1088, 1
      %v1090 = vadd.f32 %v1088, %v1089
      %v1091 = vld [vmem:[#allocation2] sm:$0x1]
      %v1092 = vadd.f32 %v1090, %v1091
      %vm1093 = vcmask 0
      %1094 = vst.msk [vmem:[%s249] sm:$0x1] %vm1093, %v1092
      %p1095 = scmp.lt.s32.totalorder %s19, 1
      %s1096 = scalar_select %p1095, %s19, 1
      %s1097 = scalar_lea.vmem %s6, %s1096
      // Predicated region
      $region45: #{critic_forward.9} parent=43 // pred_check
        %p1098 = pneg %p168
      $region46: #{critic_forward.9} parent=43 // pred_check_branch
        %1100 = sbr.rel (%p1098) target = $region48
      $region47: #{critic_forward.9} parent=43 // pred_region
        _
      $region48: #{critic_forward.9} parent=43 // pred_fallthru
        _
    $region44: #{critic_forward.9} parent=5 // pred_fallthru
      _
    %p1101 = scmp.le.s32.totalorder 2, %s14
    // Predicated region
    $region49: #{critic_forward.9} parent=5 // pred_check
      %p1102 = pneg %p1101
    $region50: #{critic_forward.9} parent=5 // pred_check_branch
      %1104 = sbr.rel (%p1102) target = $region52
    $region51: #{critic_forward.9} parent=5 // pred_region
      %s1105 = ssub.s32 %s14, 2
      // Predicated region
      $region53: #{critic_forward.9} parent=51 // pred_check
        %p1106 = pneg %p174
      $region54: #{critic_forward.9} parent=51 // pred_check_branch
        %1108 = sbr.rel (%p1106) target = $region56
      $region55: #{critic_forward.9} parent=51 // pred_region
        %p1109 = scmp.lt.s32.totalorder %s20, 1
        %s1110 = scalar_select %p1109, %s20, 1
        %s1111 = scalar_lea.vmem %s6, %s1110
      $region56: #{critic_forward.9} parent=51 // pred_fallthru
        _
    $region52: #{critic_forward.9} parent=5 // pred_fallthru
      _
  $region6: #{critic_forward.9} parent=0 // loop_footer
    %s18 = sadd.s32 1, %s14
  $region7: #{critic_forward.9} parent=0 // loop_footer_branch
    %13 = sbr.rel target = $region3
  $region8: #{critic_forward.9} parent=0 // loop_exit
    _

</llo_original>
